<compile_context>
chip_gen: v7x
topology: tpu7x:2x2x1
jax: 0.10.0
libtpu: 0.0.40
codegen_flags: <defaults>
</compile_context>

<pallas_src>
import functools

import jax
import jax.numpy as jnp
import numpy as np
from jax.experimental import pallas as pl
from jax.experimental.pallas import tpu as pltpu

# ------------------------------ sizes ---------------------------------------
EMBED = 512            # cfg.MODEL.EMBEDDING.FEATURE_SIZE (must be 512)
WIDTH = EMBED // 2     # bottleneck width = 256
VIS_SIZE = 64          # visual backbone channels
TXT_SIZE = 64          # textual feature channels
B, H, W, L = 2, 4, 4, 8


# --------------------------- fused pallas kernel -----------------------------
def _head_kernel(lhs_ref, wsv_ref, bsv_ref,
                 b1b1, b1b2, b1b3, b2b1, b2b2, b2b3, b3b1, b3b2, b3b3, tb,
                 h_b1w1, h_b1w2, h_b1w3, h_b2w1, h_b2w2, h_b2w3,
                 h_b3w1, h_b3w2, h_b3w3, h_tw,
                 v_out, t_out,
                 s_b1w1, s_b1w2, s_b1w3, s_b2w1, s_b2w2, s_b2w3,
                 s_b3w1, s_b3w2, s_b3w3, s_tw, sem,
                 *, batch, seq):
    bf16, f32 = jnp.bfloat16, jnp.float32
    bl = batch * seq

    # --- start streaming every bottleneck / hash weight HBM -> VMEM now; each
    #     copy is waited on immediately before its matmul consumes it, so the
    #     DMA overlaps the stem + earlier-layer compute. ---
    hbm_ws = (h_b1w1, h_b1w2, h_b1w3, h_b2w1, h_b2w2, h_b2w3,
              h_b3w1, h_b3w2, h_b3w3, h_tw)
    vmem_ws = (s_b1w1, s_b1w2, s_b1w3, s_b2w1, s_b2w2, s_b2w3,
               s_b3w1, s_b3w2, s_b3w3, s_tw)
    copies = [pltpu.make_async_copy(src, dst, sem.at[i])
              for i, (src, dst) in enumerate(zip(hbm_ws, vmem_ws))]
    for c in copies:
        c.start()

    def mm(a, w_ref):
        # bf16 x bf16 on the MXU, f32 accumulation.
        return jnp.dot(a.astype(bf16), w_ref[...], preferred_element_type=f32)

    # batch-boundary masks for the flattened (batch*seq) token axis
    row = jax.lax.broadcasted_iota(jnp.int32, (bl, WIDTH), 0)
    first_row = (row % seq) == 0             # zero the "previous token" here
    last_row = (row % seq) == (seq - 1)      # zero the "next token" here
    zero_row = jnp.zeros((1, WIDTH), bf16)

    def conv3(h, w_ref, b_ref):
        # 3x3 conv (pad=1) on a (1, L) spatial grid == kernel-3 1-D conv along L.
        # Shifts via zero-padded slice+concat; batch boundaries masked; the 3
        # taps are folded into one K = 3*WIDTH matmul (w_ref is (3*WIDTH, WIDTH)).
        hb = h.astype(bf16)                  # cast once, before shifting/stacking
        h_prev = jnp.where(first_row, jnp.zeros_like(hb),
                           jnp.concatenate([zero_row, hb[:-1, :]], axis=0))
        h_next = jnp.where(last_row, jnp.zeros_like(hb),
                           jnp.concatenate([hb[1:, :], zero_row], axis=0))
        stacked = jnp.concatenate([h_prev, hb, h_next], axis=1)   # (bl, 3*WIDTH)
        return jnp.dot(stacked, w_ref[...], preferred_element_type=f32) + b_ref[...]

    # --- merged stem + folded-visual matmul (they share K = feature size):
    #     LHS rows = [txt tokens ; pooled_v], weight cols = [stem 2E ; visual E].
    z = mm(lhs_ref[...], wsv_ref) + bsv_ref[...]          # (bl+batch, 3*EMBED)
    v_out[...] = z[bl:, 2 * EMBED:]                        # folded visual embed+hash
    h = jnp.maximum(z[:bl, :2 * EMBED], 0.0)               # stem conv1x1+BN+ReLU

    def bottleneck(h, idx0, b1, b2, b3, fused_downsample):
        copies[idx0].wait()
        if fused_downsample:
            # conv1 (Cin->WIDTH) and downsample (Cin->EMBED) fused along N.
            both = mm(h, vmem_ws[idx0]) + b1[...]          # (bl, WIDTH+EMBED)
            out = jnp.maximum(both[:, :WIDTH], 0.0)
            identity = both[:, WIDTH:]
        else:
            identity = h
            out = jnp.maximum(mm(h, vmem_ws[idx0]) + b1[...], 0.0)
        copies[idx0 + 1].wait()
        out = jnp.maximum(conv3(out, vmem_ws[idx0 + 1], b2), 0.0)  # conv3x3+BN+ReLU
        copies[idx0 + 2].wait()
        out = mm(out, vmem_ws[idx0 + 2]) + b3[...]                  # conv1x1+BN
        return jnp.maximum(out + identity, 0.0)

    # three Bottlenecks (expansion=1; first one has a downsample branch)
    h = bottleneck(h, 0, b1b1, b1b2, b1b3, True)
    h = bottleneck(h, 3, b2b1, b2b2, b2b3, False)
    h = bottleneck(h, 6, b3b1, b3b2, b3b3, False)

    # AdaptiveAvgPool2d(1) over the (1, L) spatial grid + squeeze
    pooled_t = jnp.mean(h.reshape(batch, seq, EMBED), axis=1)       # (batch, EMBED)
    copies[9].wait()
    t_out[...] = mm(pooled_t, s_tw) + tb[...]                       # textual_hash


# ------------------------------ wrapper --------------------------------------
def baseline_head(visual_feature, textual_feature, params):
    # visual_feature: NCHW (B, Cv, H, W);  textual_feature: (B, L, Ct)
    Bsz, Cv, Hh, Ww = visual_feature.shape
    _, Ltok, Ct = textual_feature.shape
    assert Cv == Ct, "stem/visual K-merge assumes visual_size == textual_size"

    vmem_inputs, hbm_weights = params

    # visual AdaptiveAvgPool2d(1) done in XLA; kernel receives pooled_v directly.
    pooled_v = jnp.mean(visual_feature.reshape(Bsz, Cv, Hh * Ww), axis=-1)
    lhs = jnp.concatenate([textual_feature.reshape(Bsz * Ltok, Ct), pooled_v],
                          axis=0)                                   # (B*L + B, C)

    vmem = lambda: pl.BlockSpec(memory_space=pltpu.MemorySpace.VMEM)
    hbm = lambda: pl.BlockSpec(memory_space=pl.ANY)

    scratch = [pltpu.VMEM(w.shape, w.dtype) for w in hbm_weights]
    scratch.append(pltpu.SemaphoreType.DMA((len(hbm_weights),)))

    v_out, t_out = pl.pallas_call(
        functools.partial(_head_kernel, batch=Bsz, seq=Ltok),
        out_shape=(jax.ShapeDtypeStruct((Bsz, EMBED), jnp.float32),
                   jax.ShapeDtypeStruct((Bsz, EMBED), jnp.float32)),
        in_specs=[vmem() for _ in range(1 + len(vmem_inputs))]
                 + [hbm() for _ in hbm_weights],
        out_specs=(vmem(), vmem()),
        scratch_shapes=scratch,
        compiler_params=pltpu.CompilerParams(
            vmem_limit_bytes=12 * 1024 * 1024),      # ~5 MiB actually used
        cost_estimate=pl.CostEstimate(flops=70_000_000, transcendentals=0,
                                      bytes_accessed=5_000_000),
    )(lhs, *vmem_inputs, *hbm_weights)
    return v_out, t_out


# --------------------------- parameter init ----------------------------------
def _linear(key, fan_in, fan_out):
    # nn.Linear: kaiming_normal_(mode='fan_out') weight, zero bias. Returns W^T (bf16).
    w = jax.random.normal(key, (fan_out, fan_in), jnp.float32) * np.sqrt(2.0 / fan_out)
    return w.T.astype(jnp.bfloat16), jnp.zeros((1, fan_out), jnp.float32)


def _conv_bn(key, cin, cout, k=1, eps=1e-5):
    # conv (bias=False) + BatchNorm2d (eval mode) folded into one affine.
    # For k == 3 only the middle row of the 3x3 kernel matters (H == 1).
    kw, kg, kb, km, kv = jax.random.split(key, 5)
    w = jax.random.normal(kw, (cout, cin, k), jnp.float32) * np.sqrt(2.0 / (cin * k))
    gamma = 1.0 + 0.1 * jax.random.normal(kg, (cout,), jnp.float32)
    beta = 0.1 * jax.random.normal(kb, (cout,), jnp.float32)
    mean = 0.1 * jax.random.normal(km, (cout,), jnp.float32)
    var = (1.0 + 0.1 * jax.random.normal(kv, (cout,), jnp.float32)) ** 2
    scale = gamma / jnp.sqrt(var + eps)
    wf = w * scale[:, None, None]
    bf = (beta - mean * scale).reshape(1, cout)
    wt = jnp.transpose(wf, (2, 1, 0))                # (k, cin, cout) for x @ W
    if k == 1:
        wt = wt[0]                                   # (cin, cout)
    return wt.astype(jnp.bfloat16), bf


def _bottleneck_params(key, cin, downsample):
    ks = jax.random.split(key, 4)
    p = {'c1': _conv_bn(ks[0], cin, WIDTH, 1),       # conv1 1x1 + BN
         'c2': _conv_bn(ks[1], WIDTH, WIDTH, 3),     # conv2 3x3 + BN
         'c3': _conv_bn(ks[2], WIDTH, EMBED, 1)}     # conv3 1x1 + BN
    if downsample:
        p['ds'] = _conv_bn(ks[3], cin, EMBED, 1)     # downsample 1x1 + BN
    return p


def _build_kernel_params(vw1, vb1, vw2, vb2, w0, b0, bn1, bn2, bn3, tw, tb):
    f32 = jnp.float32
    # fold visual_embed_layer @ visual_hash_module (no nonlinearity/BN between)
    w_vis = (vw1.astype(f32) @ vw2.astype(f32)).astype(jnp.bfloat16)   # (Cv, EMBED)
    b_vis = vb1 @ vw2.astype(f32) + vb2                                # (1, EMBED)
    # merge the stem conv1x1 and the folded visual linear along N (shared K)
    w_sv = jnp.concatenate([w0, w_vis], axis=1)                        # (C, 3*EMBED)
    b_sv = jnp.concatenate([b0, b_vis], axis=1)

    fold3 = lambda w3: w3.reshape(-1, w3.shape[-1])                    # (3,ci,co)->(3ci,co)
    # bottleneck 1: fuse conv1 and downsample along N (they share the same LHS)
    c1w, c1b = bn1['c1']
    dsw, dsb = bn1['ds']
    b1w1 = jnp.concatenate([c1w, dsw], axis=1)                         # (1024, 768)
    b1b1 = jnp.concatenate([c1b, dsb], axis=1)

    vmem_inputs = (w_sv, b_sv,
                   b1b1, bn1['c2'][1], bn1['c3'][1],
                   bn2['c1'][1], bn2['c2'][1], bn2['c3'][1],
                   bn3['c1'][1], bn3['c2'][1], bn3['c3'][1],
                   tb)
    hbm_weights = (b1w1, fold3(bn1['c2'][0]), bn1['c3'][0],
                   bn2['c1'][0], fold3(bn2['c2'][0]), bn2['c3'][0],
                   bn3['c1'][0], fold3(bn3['c2'][0]), bn3['c3'][0],
                   tw)
    return vmem_inputs, hbm_weights


# ------------------------ pure-JAX reference (check) --------------------------
def _reference(vis_nchw, txt, vw1, vb1, vw2, vb2, w0, b0, bn1, bn2, bn3, tw, tb):
    # Mirrors the kernel's numerics (bf16 matmul operands, f32 accumulation) but
    # with straightforward un-fused ops, so it independently checks the folds.
    bf16, f32 = jnp.bfloat16, jnp.float32

    def mm(a, w, b):
        return jnp.dot(a.astype(bf16), w, preferred_element_type=f32) + b

    def lin(x, w, b):
        return jnp.einsum('blc,cd->bld', x.astype(bf16), w,
                          preferred_element_type=f32) + b

    def conv3(x, w, b):                      # w: (3, cin, cout)
        xb = x.astype(bf16)
        zeros = jnp.zeros_like(xb[:, :1])
        xm = jnp.concatenate([zeros, xb[:, :-1]], axis=1)
        xp = jnp.concatenate([xb[:, 1:], zeros], axis=1)
        e = lambda a, wk: jnp.einsum('blc,cd->bld', a, wk, preferred_element_type=f32)
        return e(xm, w[0]) + e(xb, w[1]) + e(xp, w[2]) + b

    def bottleneck(x, p):
        idn = lin(x, *p['ds']) if 'ds' in p else x
        out = jax.nn.relu(lin(x, *p['c1']))
        out = jax.nn.relu(conv3(out, *p['c2']))
        out = lin(out, *p['c3'])
        return jax.nn.relu(out + idn)

    v = vis_nchw.reshape(vis_nchw.shape[0], vis_nchw.shape[1], -1).mean(axis=-1)
    v = mm(v, vw1, vb1[0])                   # visual_embed_layer
    v = mm(v, vw2, vb2[0])                   # visual_hash_module

    h = jax.nn.relu(lin(txt, w0, b0))        # stem conv1x1 + BN + ReLU
    h = bottleneck(h, bn1)
    h = bottleneck(h, bn2)
    h = bottleneck(h, bn3)
    t = mm(h.mean(axis=1), tw, tb[0])        # pool + textual_hash_module
    return v, t


# ---------------------------------- main --------------------------------------
if __name__ == "__main__":
    keys = jax.random.split(jax.random.PRNGKey(0), 8)

    # visual path params
    vw1, vb1 = _linear(keys[0], VIS_SIZE, EMBED)         # visual_embed_layer
    vw2, vb2 = _linear(keys[1], EMBED, EMBED)            # visual_hash_module

    # textual path params
    w0, b0 = _conv_bn(keys[2], TXT_SIZE, 2 * EMBED, 1)   # conv1x1 + BN (+ReLU) stem
    bn1 = _bottleneck_params(keys[3], 2 * EMBED, True)
    bn2 = _bottleneck_params(keys[4], EMBED, False)
    bn3 = _bottleneck_params(keys[5], EMBED, False)
    tw, tb = _linear(keys[6], EMBED, EMBED)              # textual_hash_module

    params = _build_kernel_params(vw1, vb1, vw2, vb2, w0, b0, bn1, bn2, bn3, tw, tb)

    # deterministic inputs
    k_v, k_t = jax.random.split(keys[7])
    visual_feature = jax.random.normal(k_v, (B, VIS_SIZE, H, W), jnp.float32)   # NCHW
    textual_feature = jax.random.normal(k_t, (B, L, TXT_SIZE), jnp.float32)

    visual_embed, textual_embed = baseline_head(visual_feature, textual_feature,
                                                params)
    jax.block_until_ready((visual_embed, textual_embed))

    v_ref, t_ref = _reference(visual_feature, textual_feature,
                              vw1, vb1, vw2, vb2, w0, b0, bn1, bn2, bn3, tw, tb)

    np.testing.assert_allclose(np.asarray(visual_embed), np.asarray(v_ref),
                               rtol=1e-2, atol=1e-2)
    np.testing.assert_allclose(np.asarray(textual_embed), np.asarray(t_ref),
                               rtol=1e-2, atol=1e-2)

    assert visual_embed.shape == (B, EMBED) and textual_embed.shape == (B, EMBED)
    print("KERNEL_OK")
</pallas_src>

<mosaic_0001>
module attributes {stable_mosaic.version = 11 : i64} {
  func.func @_head_kernel(%arg0: memref<18x64xf32, #tpu.memory_space<vmem>>, %arg1: memref<64x1536xbf16, #tpu.memory_space<vmem>>, %arg2: memref<1x1536xf32, #tpu.memory_space<vmem>>, %arg3: memref<1x768xf32, #tpu.memory_space<vmem>>, %arg4: memref<1x256xf32, #tpu.memory_space<vmem>>, %arg5: memref<1x512xf32, #tpu.memory_space<vmem>>, %arg6: memref<1x256xf32, #tpu.memory_space<vmem>>, %arg7: memref<1x256xf32, #tpu.memory_space<vmem>>, %arg8: memref<1x512xf32, #tpu.memory_space<vmem>>, %arg9: memref<1x256xf32, #tpu.memory_space<vmem>>, %arg10: memref<1x256xf32, #tpu.memory_space<vmem>>, %arg11: memref<1x512xf32, #tpu.memory_space<vmem>>, %arg12: memref<1x512xf32, #tpu.memory_space<vmem>>, %arg13: memref<1024x768xbf16, #tpu.memory_space<any>>, %arg14: memref<768x256xbf16, #tpu.memory_space<any>>, %arg15: memref<256x512xbf16, #tpu.memory_space<any>>, %arg16: memref<512x256xbf16, #tpu.memory_space<any>>, %arg17: memref<768x256xbf16, #tpu.memory_space<any>>, %arg18: memref<256x512xbf16, #tpu.memory_space<any>>, %arg19: memref<512x256xbf16, #tpu.memory_space<any>>, %arg20: memref<768x256xbf16, #tpu.memory_space<any>>, %arg21: memref<256x512xbf16, #tpu.memory_space<any>>, %arg22: memref<512x512xbf16, #tpu.memory_space<any>>, %arg23: memref<2x512xf32, #tpu.memory_space<vmem>>, %arg24: memref<2x512xf32, #tpu.memory_space<vmem>>, %arg25: memref<1024x768xbf16, #tpu.memory_space<vmem>>, %arg26: memref<768x256xbf16, #tpu.memory_space<vmem>>, %arg27: memref<256x512xbf16, #tpu.memory_space<vmem>>, %arg28: memref<512x256xbf16, #tpu.memory_space<vmem>>, %arg29: memref<768x256xbf16, #tpu.memory_space<vmem>>, %arg30: memref<256x512xbf16, #tpu.memory_space<vmem>>, %arg31: memref<512x256xbf16, #tpu.memory_space<vmem>>, %arg32: memref<768x256xbf16, #tpu.memory_space<vmem>>, %arg33: memref<256x512xbf16, #tpu.memory_space<vmem>>, %arg34: memref<512x512xbf16, #tpu.memory_space<vmem>>, %arg35: memref<10x!tpu.dma_semaphore, #tpu.memory_space<semaphore_mem>>) attributes {dimension_semantics = [], scalar_prefetch = 0 : i64, scratch_operands = 11 : i64, tpu.core_type = #tpu.core_type<tc>} {
    %c0_i32 = arith.constant 0 : i32
    %0 = tpu.memref_slice %arg35[%c0_i32] : memref<10x!tpu.dma_semaphore, #tpu.memory_space<semaphore_mem>> -> memref<1x!tpu.dma_semaphore, #tpu.memory_space<semaphore_mem>>
    %1 = tpu.memref_squeeze %0 : memref<1x!tpu.dma_semaphore, #tpu.memory_space<semaphore_mem>> -> memref<!tpu.dma_semaphore, #tpu.memory_space<semaphore_mem>>
    tpu.enqueue_dma source(%arg13 : memref<1024x768xbf16, #tpu.memory_space<any>>) target(%arg25 : memref<1024x768xbf16, #tpu.memory_space<vmem>>) target_semaphore(%1 : memref<!tpu.dma_semaphore, #tpu.memory_space<semaphore_mem>>)
    %c1_i32 = arith.constant 1 : i32
    %2 = tpu.memref_slice %arg35[%c1_i32] : memref<10x!tpu.dma_semaphore, #tpu.memory_space<semaphore_mem>> -> memref<1x!tpu.dma_semaphore, #tpu.memory_space<semaphore_mem>>
    %3 = tpu.memref_squeeze %2 : memref<1x!tpu.dma_semaphore, #tpu.memory_space<semaphore_mem>> -> memref<!tpu.dma_semaphore, #tpu.memory_space<semaphore_mem>>
    tpu.enqueue_dma source(%arg14 : memref<768x256xbf16, #tpu.memory_space<any>>) target(%arg26 : memref<768x256xbf16, #tpu.memory_space<vmem>>) target_semaphore(%3 : memref<!tpu.dma_semaphore, #tpu.memory_space<semaphore_mem>>)
    %c2_i32 = arith.constant 2 : i32
    %4 = tpu.memref_slice %arg35[%c2_i32] : memref<10x!tpu.dma_semaphore, #tpu.memory_space<semaphore_mem>> -> memref<1x!tpu.dma_semaphore, #tpu.memory_space<semaphore_mem>>
    %5 = tpu.memref_squeeze %4 : memref<1x!tpu.dma_semaphore, #tpu.memory_space<semaphore_mem>> -> memref<!tpu.dma_semaphore, #tpu.memory_space<semaphore_mem>>
    tpu.enqueue_dma source(%arg15 : memref<256x512xbf16, #tpu.memory_space<any>>) target(%arg27 : memref<256x512xbf16, #tpu.memory_space<vmem>>) target_semaphore(%5 : memref<!tpu.dma_semaphore, #tpu.memory_space<semaphore_mem>>)
    %c3_i32 = arith.constant 3 : i32
    %6 = tpu.memref_slice %arg35[%c3_i32] : memref<10x!tpu.dma_semaphore, #tpu.memory_space<semaphore_mem>> -> memref<1x!tpu.dma_semaphore, #tpu.memory_space<semaphore_mem>>
    %7 = tpu.memref_squeeze %6 : memref<1x!tpu.dma_semaphore, #tpu.memory_space<semaphore_mem>> -> memref<!tpu.dma_semaphore, #tpu.memory_space<semaphore_mem>>
    tpu.enqueue_dma source(%arg16 : memref<512x256xbf16, #tpu.memory_space<any>>) target(%arg28 : memref<512x256xbf16, #tpu.memory_space<vmem>>) target_semaphore(%7 : memref<!tpu.dma_semaphore, #tpu.memory_space<semaphore_mem>>)
    %c4_i32 = arith.constant 4 : i32
    %8 = tpu.memref_slice %arg35[%c4_i32] : memref<10x!tpu.dma_semaphore, #tpu.memory_space<semaphore_mem>> -> memref<1x!tpu.dma_semaphore, #tpu.memory_space<semaphore_mem>>
    %9 = tpu.memref_squeeze %8 : memref<1x!tpu.dma_semaphore, #tpu.memory_space<semaphore_mem>> -> memref<!tpu.dma_semaphore, #tpu.memory_space<semaphore_mem>>
    tpu.enqueue_dma source(%arg17 : memref<768x256xbf16, #tpu.memory_space<any>>) target(%arg29 : memref<768x256xbf16, #tpu.memory_space<vmem>>) target_semaphore(%9 : memref<!tpu.dma_semaphore, #tpu.memory_space<semaphore_mem>>)
    %c5_i32 = arith.constant 5 : i32
    %10 = tpu.memref_slice %arg35[%c5_i32] : memref<10x!tpu.dma_semaphore, #tpu.memory_space<semaphore_mem>> -> memref<1x!tpu.dma_semaphore, #tpu.memory_space<semaphore_mem>>
    %11 = tpu.memref_squeeze %10 : memref<1x!tpu.dma_semaphore, #tpu.memory_space<semaphore_mem>> -> memref<!tpu.dma_semaphore, #tpu.memory_space<semaphore_mem>>
    tpu.enqueue_dma source(%arg18 : memref<256x512xbf16, #tpu.memory_space<any>>) target(%arg30 : memref<256x512xbf16, #tpu.memory_space<vmem>>) target_semaphore(%11 : memref<!tpu.dma_semaphore, #tpu.memory_space<semaphore_mem>>)
    %c6_i32 = arith.constant 6 : i32
    %12 = tpu.memref_slice %arg35[%c6_i32] : memref<10x!tpu.dma_semaphore, #tpu.memory_space<semaphore_mem>> -> memref<1x!tpu.dma_semaphore, #tpu.memory_space<semaphore_mem>>
    %13 = tpu.memref_squeeze %12 : memref<1x!tpu.dma_semaphore, #tpu.memory_space<semaphore_mem>> -> memref<!tpu.dma_semaphore, #tpu.memory_space<semaphore_mem>>
    tpu.enqueue_dma source(%arg19 : memref<512x256xbf16, #tpu.memory_space<any>>) target(%arg31 : memref<512x256xbf16, #tpu.memory_space<vmem>>) target_semaphore(%13 : memref<!tpu.dma_semaphore, #tpu.memory_space<semaphore_mem>>)
    %c7_i32 = arith.constant 7 : i32
    %14 = tpu.memref_slice %arg35[%c7_i32] : memref<10x!tpu.dma_semaphore, #tpu.memory_space<semaphore_mem>> -> memref<1x!tpu.dma_semaphore, #tpu.memory_space<semaphore_mem>>
    %15 = tpu.memref_squeeze %14 : memref<1x!tpu.dma_semaphore, #tpu.memory_space<semaphore_mem>> -> memref<!tpu.dma_semaphore, #tpu.memory_space<semaphore_mem>>
    tpu.enqueue_dma source(%arg20 : memref<768x256xbf16, #tpu.memory_space<any>>) target(%arg32 : memref<768x256xbf16, #tpu.memory_space<vmem>>) target_semaphore(%15 : memref<!tpu.dma_semaphore, #tpu.memory_space<semaphore_mem>>)
    %c8_i32 = arith.constant 8 : i32
    %16 = tpu.memref_slice %arg35[%c8_i32] : memref<10x!tpu.dma_semaphore, #tpu.memory_space<semaphore_mem>> -> memref<1x!tpu.dma_semaphore, #tpu.memory_space<semaphore_mem>>
    %17 = tpu.memref_squeeze %16 : memref<1x!tpu.dma_semaphore, #tpu.memory_space<semaphore_mem>> -> memref<!tpu.dma_semaphore, #tpu.memory_space<semaphore_mem>>
    tpu.enqueue_dma source(%arg21 : memref<256x512xbf16, #tpu.memory_space<any>>) target(%arg33 : memref<256x512xbf16, #tpu.memory_space<vmem>>) target_semaphore(%17 : memref<!tpu.dma_semaphore, #tpu.memory_space<semaphore_mem>>)
    %c9_i32 = arith.constant 9 : i32
    %18 = tpu.memref_slice %arg35[%c9_i32] : memref<10x!tpu.dma_semaphore, #tpu.memory_space<semaphore_mem>> -> memref<1x!tpu.dma_semaphore, #tpu.memory_space<semaphore_mem>>
    %19 = tpu.memref_squeeze %18 : memref<1x!tpu.dma_semaphore, #tpu.memory_space<semaphore_mem>> -> memref<!tpu.dma_semaphore, #tpu.memory_space<semaphore_mem>>
    tpu.enqueue_dma source(%arg22 : memref<512x512xbf16, #tpu.memory_space<any>>) target(%arg34 : memref<512x512xbf16, #tpu.memory_space<vmem>>) target_semaphore(%19 : memref<!tpu.dma_semaphore, #tpu.memory_space<semaphore_mem>>)
    %20 = tpu.iota {dimensions = array<i32: 0>} : vector<16x256xi32>
    %c8_i32_0 = arith.constant 8 : i32
    %c0_i32_1 = arith.constant 0 : i32
    %21 = arith.cmpi eq, %c8_i32_0, %c0_i32_1 : i32
    %c1_i32_2 = arith.constant 1 : i32
    %22 = arith.select %21, %c1_i32_2, %c8_i32_0 : i32
    %23 = vector.broadcast %22 : i32 to vector<16x256xi32>
    %24 = arith.remsi %20, %23 : vector<16x256xi32>
    %c0_i32_3 = arith.constant 0 : i32
    %25 = vector.broadcast %c0_i32_3 : i32 to vector<16x256xi32>
    %26 = arith.cmpi ne, %24, %25 : vector<16x256xi32>
    %c0_i32_4 = arith.constant 0 : i32
    %27 = vector.broadcast %c0_i32_4 : i32 to vector<16x256xi32>
    %28 = arith.cmpi slt, %24, %27 : vector<16x256xi32>
    %c0_i32_5 = arith.constant 0 : i32
    %29 = arith.cmpi slt, %22, %c0_i32_5 : i32
    %30 = vector.broadcast %29 : i1 to vector<16x256xi1>
    %31 = vector.broadcast %30 : vector<16x256xi1> to vector<16x256xi1>
    %32 = arith.xori %28, %31 : vector<16x256xi1>
    %33 = arith.andi %32, %26 : vector<16x256xi1>
    %34 = vector.broadcast %22 : i32 to vector<16x256xi32>
    %35 = arith.addi %24, %34 : vector<16x256xi32>
    %36 = arith.select %33, %35, %24 : vector<16x256xi1>, vector<16x256xi32>
    %c0_i32_6 = arith.constant 0 : i32
    %37 = vector.broadcast %c0_i32_6 : i32 to vector<16x256xi32>
    %38 = arith.cmpi eq, %36, %37 : vector<16x256xi32>
    %c8_i32_7 = arith.constant 8 : i32
    %c0_i32_8 = arith.constant 0 : i32
    %39 = arith.cmpi eq, %c8_i32_7, %c0_i32_8 : i32
    %c1_i32_9 = arith.constant 1 : i32
    %40 = arith.select %39, %c1_i32_9, %c8_i32_7 : i32
    %41 = vector.broadcast %40 : i32 to vector<16x256xi32>
    %42 = arith.remsi %20, %41 : vector<16x256xi32>
    %c0_i32_10 = arith.constant 0 : i32
    %43 = vector.broadcast %c0_i32_10 : i32 to vector<16x256xi32>
    %44 = arith.cmpi ne, %42, %43 : vector<16x256xi32>
    %c0_i32_11 = arith.constant 0 : i32
    %45 = vector.broadcast %c0_i32_11 : i32 to vector<16x256xi32>
    %46 = arith.cmpi slt, %42, %45 : vector<16x256xi32>
    %c0_i32_12 = arith.constant 0 : i32
    %47 = arith.cmpi slt, %40, %c0_i32_12 : i32
    %48 = vector.broadcast %47 : i1 to vector<16x256xi1>
    %49 = vector.broadcast %48 : vector<16x256xi1> to vector<16x256xi1>
    %50 = arith.xori %46, %49 : vector<16x256xi1>
    %51 = arith.andi %50, %44 : vector<16x256xi1>
    %52 = vector.broadcast %40 : i32 to vector<16x256xi32>
    %53 = arith.addi %42, %52 : vector<16x256xi32>
    %54 = arith.select %51, %53, %42 : vector<16x256xi1>, vector<16x256xi32>
    %c7_i32_13 = arith.constant 7 : i32
    %55 = vector.broadcast %c7_i32_13 : i32 to vector<16x256xi32>
    %56 = arith.cmpi eq, %54, %55 : vector<16x256xi32>
    %cst = arith.constant 0.000000e+00 : bf16
    %57 = vector.broadcast %cst : bf16 to vector<1x256xbf16>
    %c0 = arith.constant 0 : index
    %c0_14 = arith.constant 0 : index
    %58 = vector.load %arg0[%c0, %c0_14] : memref<18x64xf32, #tpu.memory_space<vmem>>, vector<18x64xf32>
    %59 = arith.truncf %58 : vector<18x64xf32> to vector<18x64xbf16>
    %c0_15 = arith.constant 0 : index
    %c0_16 = arith.constant 0 : index
    %60 = vector.load %arg1[%c0_15, %c0_16] : memref<64x1536xbf16, #tpu.memory_space<vmem>>, vector<64x1536xbf16>
    %cst_17 = arith.constant dense<0.000000e+00> : vector<18x1536xf32>
    %61 = tpu.matmul %59, %60, %cst_17 {dimension_numbers = #tpu.dot_dimension_numbers<[1], [0], [0], [1], [0, 0, 1, 1], [], []>} : vector<18x64xbf16>, vector<64x1536xbf16>, vector<18x1536xf32> -> vector<18x1536xf32>
    %c0_18 = arith.constant 0 : index
    %c0_19 = arith.constant 0 : index
    %62 = vector.load %arg2[%c0_18, %c0_19] : memref<1x1536xf32, #tpu.memory_space<vmem>>, vector<1x1536xf32>
    %63 = vector.broadcast %62 : vector<1x1536xf32> to vector<18x1536xf32>
    %64 = arith.addf %61, %63 : vector<18x1536xf32>
    %65 = vector.extract_strided_slice %64 {offsets = [16, 1024], sizes = [2, 512], strides = [1, 1]} : vector<18x1536xf32> to vector<2x512xf32>
    %c0_20 = arith.constant 0 : index
    %c0_21 = arith.constant 0 : index
    %66 = vector.load %arg23[%c0_20, %c0_21] : memref<2x512xf32, #tpu.memory_space<vmem>>, vector<2x512xf32>
    tpu.vector_store %arg23[%c0_20, %c0_21], %65 {strides = array<i32>} : memref<2x512xf32, #tpu.memory_space<vmem>>, vector<2x512xf32>,
    %67 = vector.extract_strided_slice %64 {offsets = [0, 0], sizes = [16, 1024], strides = [1, 1]} : vector<18x1536xf32> to vector<16x1024xf32>
    %cst_22 = arith.constant 0.000000e+00 : f32
    %68 = vector.broadcast %cst_22 : f32 to vector<16x1024xf32>
    %69 = arith.maximumf %67, %68 : vector<16x1024xf32>
    %c0_i32_23 = arith.constant 0 : i32
    %70 = tpu.memref_slice %arg35[%c0_i32_23] : memref<10x!tpu.dma_semaphore, #tpu.memory_space<semaphore_mem>> -> memref<1x!tpu.dma_semaphore, #tpu.memory_space<semaphore_mem>>
    %71 = tpu.memref_squeeze %70 : memref<1x!tpu.dma_semaphore, #tpu.memory_space<semaphore_mem>> -> memref<!tpu.dma_semaphore, #tpu.memory_space<semaphore_mem>>
    tpu.wait_dma2 semaphore(%71 : memref<!tpu.dma_semaphore, #tpu.memory_space<semaphore_mem>>) src(%arg13 : memref<1024x768xbf16, #tpu.memory_space<any>>) dst(%arg25 : memref<1024x768xbf16, #tpu.memory_space<vmem>>)
    %72 = arith.truncf %69 : vector<16x1024xf32> to vector<16x1024xbf16>
    %c0_24 = arith.constant 0 : index
    %c0_25 = arith.constant 0 : index
    %73 = vector.load %arg25[%c0_24, %c0_25] : memref<1024x768xbf16, #tpu.memory_space<vmem>>, vector<1024x768xbf16>
    %cst_26 = arith.constant dense<0.000000e+00> : vector<16x768xf32>
    %74 = tpu.matmul %72, %73, %cst_26 {dimension_numbers = #tpu.dot_dimension_numbers<[1], [0], [0], [1], [0, 0, 1, 1], [], []>} : vector<16x1024xbf16>, vector<1024x768xbf16>, vector<16x768xf32> -> vector<16x768xf32>
    %c0_27 = arith.constant 0 : index
    %c0_28 = arith.constant 0 : index
    %75 = vector.load %arg3[%c0_27, %c0_28] : memref<1x768xf32, #tpu.memory_space<vmem>>, vector<1x768xf32>
    %76 = vector.broadcast %75 : vector<1x768xf32> to vector<16x768xf32>
    %77 = arith.addf %74, %76 : vector<16x768xf32>
    %78 = vector.extract_strided_slice %77 {offsets = [0, 0], sizes = [16, 256], strides = [1, 1]} : vector<16x768xf32> to vector<16x256xf32>
    %cst_29 = arith.constant 0.000000e+00 : f32
    %79 = vector.broadcast %cst_29 : f32 to vector<16x256xf32>
    %80 = arith.maximumf %78, %79 : vector<16x256xf32>
    %81 = vector.extract_strided_slice %77 {offsets = [0, 256], sizes = [16, 512], strides = [1, 1]} : vector<16x768xf32> to vector<16x512xf32>
    %c1_i32_30 = arith.constant 1 : i32
    %82 = tpu.memref_slice %arg35[%c1_i32_30] : memref<10x!tpu.dma_semaphore, #tpu.memory_space<semaphore_mem>> -> memref<1x!tpu.dma_semaphore, #tpu.memory_space<semaphore_mem>>
    %83 = tpu.memref_squeeze %82 : memref<1x!tpu.dma_semaphore, #tpu.memory_space<semaphore_mem>> -> memref<!tpu.dma_semaphore, #tpu.memory_space<semaphore_mem>>
    tpu.wait_dma2 semaphore(%83 : memref<!tpu.dma_semaphore, #tpu.memory_space<semaphore_mem>>) src(%arg14 : memref<768x256xbf16, #tpu.memory_space<any>>) dst(%arg26 : memref<768x256xbf16, #tpu.memory_space<vmem>>)
    %84 = arith.truncf %80 : vector<16x256xf32> to vector<16x256xbf16>
    %cst_31 = arith.constant 0.000000e+00 : bf16
    %85 = vector.broadcast %cst_31 : bf16 to vector<16x256xbf16>
    %86 = vector.extract_strided_slice %84 {offsets = [0, 0], sizes = [15, 256], strides = [1, 1]} : vector<16x256xbf16> to vector<15x256xbf16>
    %87 = tpu.concatenate %57, %86 in 0 : vector<1x256xbf16>, vector<15x256xbf16> -> vector<16x256xbf16>
    %88 = arith.select %38, %85, %87 : vector<16x256xi1>, vector<16x256xbf16>
    %cst_32 = arith.constant 0.000000e+00 : bf16
    %89 = vector.broadcast %cst_32 : bf16 to vector<16x256xbf16>
    %90 = vector.extract_strided_slice %84 {offsets = [1, 0], sizes = [15, 256], strides = [1, 1]} : vector<16x256xbf16> to vector<15x256xbf16>
    %91 = tpu.concatenate %90, %57 in 0 : vector<15x256xbf16>, vector<1x256xbf16> -> vector<16x256xbf16>
    %92 = arith.select %56, %89, %91 : vector<16x256xi1>, vector<16x256xbf16>
    %93 = tpu.concatenate %88, %84, %92 in 1 : vector<16x256xbf16>, vector<16x256xbf16>, vector<16x256xbf16> -> vector<16x768xbf16>
    %c0_33 = arith.constant 0 : index
    %c0_34 = arith.constant 0 : index
    %94 = vector.load %arg26[%c0_33, %c0_34] : memref<768x256xbf16, #tpu.memory_space<vmem>>, vector<768x256xbf16>
    %cst_35 = arith.constant dense<0.000000e+00> : vector<16x256xf32>
    %95 = tpu.matmul %93, %94, %cst_35 {dimension_numbers = #tpu.dot_dimension_numbers<[1], [0], [0], [1], [0, 0, 1, 1], [], []>} : vector<16x768xbf16>, vector<768x256xbf16>, vector<16x256xf32> -> vector<16x256xf32>
    %c0_36 = arith.constant 0 : index
    %c0_37 = arith.constant 0 : index
    %96 = vector.load %arg4[%c0_36, %c0_37] : memref<1x256xf32, #tpu.memory_space<vmem>>, vector<1x256xf32>
    %97 = vector.broadcast %96 : vector<1x256xf32> to vector<16x256xf32>
    %98 = arith.addf %95, %97 : vector<16x256xf32>
    %cst_38 = arith.constant 0.000000e+00 : f32
    %99 = vector.broadcast %cst_38 : f32 to vector<16x256xf32>
    %100 = arith.maximumf %98, %99 : vector<16x256xf32>
    %c2_i32_39 = arith.constant 2 : i32
    %101 = tpu.memref_slice %arg35[%c2_i32_39] : memref<10x!tpu.dma_semaphore, #tpu.memory_space<semaphore_mem>> -> memref<1x!tpu.dma_semaphore, #tpu.memory_space<semaphore_mem>>
    %102 = tpu.memref_squeeze %101 : memref<1x!tpu.dma_semaphore, #tpu.memory_space<semaphore_mem>> -> memref<!tpu.dma_semaphore, #tpu.memory_space<semaphore_mem>>
    tpu.wait_dma2 semaphore(%102 : memref<!tpu.dma_semaphore, #tpu.memory_space<semaphore_mem>>) src(%arg15 : memref<256x512xbf16, #tpu.memory_space<any>>) dst(%arg27 : memref<256x512xbf16, #tpu.memory_space<vmem>>)
    %103 = arith.truncf %100 : vector<16x256xf32> to vector<16x256xbf16>
    %c0_40 = arith.constant 0 : index
    %c0_41 = arith.constant 0 : index
    %104 = vector.load %arg27[%c0_40, %c0_41] : memref<256x512xbf16, #tpu.memory_space<vmem>>, vector<256x512xbf16>
    %cst_42 = arith.constant dense<0.000000e+00> : vector<16x512xf32>
    %105 = tpu.matmul %103, %104, %cst_42 {dimension_numbers = #tpu.dot_dimension_numbers<[1], [0], [0], [1], [0, 0, 1, 1], [], []>} : vector<16x256xbf16>, vector<256x512xbf16>, vector<16x512xf32> -> vector<16x512xf32>
    %c0_43 = arith.constant 0 : index
    %c0_44 = arith.constant 0 : index
    %106 = vector.load %arg5[%c0_43, %c0_44] : memref<1x512xf32, #tpu.memory_space<vmem>>, vector<1x512xf32>
    %107 = vector.broadcast %106 : vector<1x512xf32> to vector<16x512xf32>
    %108 = arith.addf %105, %107 : vector<16x512xf32>
    %109 = arith.addf %108, %81 : vector<16x512xf32>
    %cst_45 = arith.constant 0.000000e+00 : f32
    %110 = vector.broadcast %cst_45 : f32 to vector<16x512xf32>
    %111 = arith.maximumf %109, %110 : vector<16x512xf32>
    %c3_i32_46 = arith.constant 3 : i32
    %112 = tpu.memref_slice %arg35[%c3_i32_46] : memref<10x!tpu.dma_semaphore, #tpu.memory_space<semaphore_mem>> -> memref<1x!tpu.dma_semaphore, #tpu.memory_space<semaphore_mem>>
    %113 = tpu.memref_squeeze %112 : memref<1x!tpu.dma_semaphore, #tpu.memory_space<semaphore_mem>> -> memref<!tpu.dma_semaphore, #tpu.memory_space<semaphore_mem>>
    tpu.wait_dma2 semaphore(%113 : memref<!tpu.dma_semaphore, #tpu.memory_space<semaphore_mem>>) src(%arg16 : memref<512x256xbf16, #tpu.memory_space<any>>) dst(%arg28 : memref<512x256xbf16, #tpu.memory_space<vmem>>)
    %114 = arith.truncf %111 : vector<16x512xf32> to vector<16x512xbf16>
    %c0_47 = arith.constant 0 : index
    %c0_48 = arith.constant 0 : index
    %115 = vector.load %arg28[%c0_47, %c0_48] : memref<512x256xbf16, #tpu.memory_space<vmem>>, vector<512x256xbf16>
    %cst_49 = arith.constant dense<0.000000e+00> : vector<16x256xf32>
    %116 = tpu.matmul %114, %115, %cst_49 {dimension_numbers = #tpu.dot_dimension_numbers<[1], [0], [0], [1], [0, 0, 1, 1], [], []>} : vector<16x512xbf16>, vector<512x256xbf16>, vector<16x256xf32> -> vector<16x256xf32>
    %c0_50 = arith.constant 0 : index
    %c0_51 = arith.constant 0 : index
    %117 = vector.load %arg6[%c0_50, %c0_51] : memref<1x256xf32, #tpu.memory_space<vmem>>, vector<1x256xf32>
    %118 = vector.broadcast %117 : vector<1x256xf32> to vector<16x256xf32>
    %119 = arith.addf %116, %118 : vector<16x256xf32>
    %cst_52 = arith.constant 0.000000e+00 : f32
    %120 = vector.broadcast %cst_52 : f32 to vector<16x256xf32>
    %121 = arith.maximumf %119, %120 : vector<16x256xf32>
    %c4_i32_53 = arith.constant 4 : i32
    %122 = tpu.memref_slice %arg35[%c4_i32_53] : memref<10x!tpu.dma_semaphore, #tpu.memory_space<semaphore_mem>> -> memref<1x!tpu.dma_semaphore, #tpu.memory_space<semaphore_mem>>
    %123 = tpu.memref_squeeze %122 : memref<1x!tpu.dma_semaphore, #tpu.memory_space<semaphore_mem>> -> memref<!tpu.dma_semaphore, #tpu.memory_space<semaphore_mem>>
    tpu.wait_dma2 semaphore(%123 : memref<!tpu.dma_semaphore, #tpu.memory_space<semaphore_mem>>) src(%arg17 : memref<768x256xbf16, #tpu.memory_space<any>>) dst(%arg29 : memref<768x256xbf16, #tpu.memory_space<vmem>>)
    %124 = arith.truncf %121 : vector<16x256xf32> to vector<16x256xbf16>
    %cst_54 = arith.constant 0.000000e+00 : bf16
    %125 = vector.broadcast %cst_54 : bf16 to vector<16x256xbf16>
    %126 = vector.extract_strided_slice %124 {offsets = [0, 0], sizes = [15, 256], strides = [1, 1]} : vector<16x256xbf16> to vector<15x256xbf16>
    %127 = tpu.concatenate %57, %126 in 0 : vector<1x256xbf16>, vector<15x256xbf16> -> vector<16x256xbf16>
    %128 = arith.select %38, %125, %127 : vector<16x256xi1>, vector<16x256xbf16>
    %cst_55 = arith.constant 0.000000e+00 : bf16
    %129 = vector.broadcast %cst_55 : bf16 to vector<16x256xbf16>
    %130 = vector.extract_strided_slice %124 {offsets = [1, 0], sizes = [15, 256], strides = [1, 1]} : vector<16x256xbf16> to vector<15x256xbf16>
    %131 = tpu.concatenate %130, %57 in 0 : vector<15x256xbf16>, vector<1x256xbf16> -> vector<16x256xbf16>
    %132 = arith.select %56, %129, %131 : vector<16x256xi1>, vector<16x256xbf16>
    %133 = tpu.concatenate %128, %124, %132 in 1 : vector<16x256xbf16>, vector<16x256xbf16>, vector<16x256xbf16> -> vector<16x768xbf16>
    %c0_56 = arith.constant 0 : index
    %c0_57 = arith.constant 0 : index
    %134 = vector.load %arg29[%c0_56, %c0_57] : memref<768x256xbf16, #tpu.memory_space<vmem>>, vector<768x256xbf16>
    %cst_58 = arith.constant dense<0.000000e+00> : vector<16x256xf32>
    %135 = tpu.matmul %133, %134, %cst_58 {dimension_numbers = #tpu.dot_dimension_numbers<[1], [0], [0], [1], [0, 0, 1, 1], [], []>} : vector<16x768xbf16>, vector<768x256xbf16>, vector<16x256xf32> -> vector<16x256xf32>
    %c0_59 = arith.constant 0 : index
    %c0_60 = arith.constant 0 : index
    %136 = vector.load %arg7[%c0_59, %c0_60] : memref<1x256xf32, #tpu.memory_space<vmem>>, vector<1x256xf32>
    %137 = vector.broadcast %136 : vector<1x256xf32> to vector<16x256xf32>
    %138 = arith.addf %135, %137 : vector<16x256xf32>
    %cst_61 = arith.constant 0.000000e+00 : f32
    %139 = vector.broadcast %cst_61 : f32 to vector<16x256xf32>
    %140 = arith.maximumf %138, %139 : vector<16x256xf32>
    %c5_i32_62 = arith.constant 5 : i32
    %141 = tpu.memref_slice %arg35[%c5_i32_62] : memref<10x!tpu.dma_semaphore, #tpu.memory_space<semaphore_mem>> -> memref<1x!tpu.dma_semaphore, #tpu.memory_space<semaphore_mem>>
    %142 = tpu.memref_squeeze %141 : memref<1x!tpu.dma_semaphore, #tpu.memory_space<semaphore_mem>> -> memref<!tpu.dma_semaphore, #tpu.memory_space<semaphore_mem>>
    tpu.wait_dma2 semaphore(%142 : memref<!tpu.dma_semaphore, #tpu.memory_space<semaphore_mem>>) src(%arg18 : memref<256x512xbf16, #tpu.memory_space<any>>) dst(%arg30 : memref<256x512xbf16, #tpu.memory_space<vmem>>)
    %143 = arith.truncf %140 : vector<16x256xf32> to vector<16x256xbf16>
    %c0_63 = arith.constant 0 : index
    %c0_64 = arith.constant 0 : index
    %144 = vector.load %arg30[%c0_63, %c0_64] : memref<256x512xbf16, #tpu.memory_space<vmem>>, vector<256x512xbf16>
    %cst_65 = arith.constant dense<0.000000e+00> : vector<16x512xf32>
    %145 = tpu.matmul %143, %144, %cst_65 {dimension_numbers = #tpu.dot_dimension_numbers<[1], [0], [0], [1], [0, 0, 1, 1], [], []>} : vector<16x256xbf16>, vector<256x512xbf16>, vector<16x512xf32> -> vector<16x512xf32>
    %c0_66 = arith.constant 0 : index
    %c0_67 = arith.constant 0 : index
    %146 = vector.load %arg8[%c0_66, %c0_67] : memref<1x512xf32, #tpu.memory_space<vmem>>, vector<1x512xf32>
    %147 = vector.broadcast %146 : vector<1x512xf32> to vector<16x512xf32>
    %148 = arith.addf %145, %147 : vector<16x512xf32>
    %149 = arith.addf %148, %111 : vector<16x512xf32>
    %cst_68 = arith.constant 0.000000e+00 : f32
    %150 = vector.broadcast %cst_68 : f32 to vector<16x512xf32>
    %151 = arith.maximumf %149, %150 : vector<16x512xf32>
    %c6_i32_69 = arith.constant 6 : i32
    %152 = tpu.memref_slice %arg35[%c6_i32_69] : memref<10x!tpu.dma_semaphore, #tpu.memory_space<semaphore_mem>> -> memref<1x!tpu.dma_semaphore, #tpu.memory_space<semaphore_mem>>
    %153 = tpu.memref_squeeze %152 : memref<1x!tpu.dma_semaphore, #tpu.memory_space<semaphore_mem>> -> memref<!tpu.dma_semaphore, #tpu.memory_space<semaphore_mem>>
    tpu.wait_dma2 semaphore(%153 : memref<!tpu.dma_semaphore, #tpu.memory_space<semaphore_mem>>) src(%arg19 : memref<512x256xbf16, #tpu.memory_space<any>>) dst(%arg31 : memref<512x256xbf16, #tpu.memory_space<vmem>>)
    %154 = arith.truncf %151 : vector<16x512xf32> to vector<16x512xbf16>
    %c0_70 = arith.constant 0 : index
    %c0_71 = arith.constant 0 : index
    %155 = vector.load %arg31[%c0_70, %c0_71] : memref<512x256xbf16, #tpu.memory_space<vmem>>, vector<512x256xbf16>
    %cst_72 = arith.constant dense<0.000000e+00> : vector<16x256xf32>
    %156 = tpu.matmul %154, %155, %cst_72 {dimension_numbers = #tpu.dot_dimension_numbers<[1], [0], [0], [1], [0, 0, 1, 1], [], []>} : vector<16x512xbf16>, vector<512x256xbf16>, vector<16x256xf32> -> vector<16x256xf32>
    %c0_73 = arith.constant 0 : index
    %c0_74 = arith.constant 0 : index
    %157 = vector.load %arg9[%c0_73, %c0_74] : memref<1x256xf32, #tpu.memory_space<vmem>>, vector<1x256xf32>
    %158 = vector.broadcast %157 : vector<1x256xf32> to vector<16x256xf32>
    %159 = arith.addf %156, %158 : vector<16x256xf32>
    %cst_75 = arith.constant 0.000000e+00 : f32
    %160 = vector.broadcast %cst_75 : f32 to vector<16x256xf32>
    %161 = arith.maximumf %159, %160 : vector<16x256xf32>
    %c7_i32_76 = arith.constant 7 : i32
    %162 = tpu.memref_slice %arg35[%c7_i32_76] : memref<10x!tpu.dma_semaphore, #tpu.memory_space<semaphore_mem>> -> memref<1x!tpu.dma_semaphore, #tpu.memory_space<semaphore_mem>>
    %163 = tpu.memref_squeeze %162 : memref<1x!tpu.dma_semaphore, #tpu.memory_space<semaphore_mem>> -> memref<!tpu.dma_semaphore, #tpu.memory_space<semaphore_mem>>
    tpu.wait_dma2 semaphore(%163 : memref<!tpu.dma_semaphore, #tpu.memory_space<semaphore_mem>>) src(%arg20 : memref<768x256xbf16, #tpu.memory_space<any>>) dst(%arg32 : memref<768x256xbf16, #tpu.memory_space<vmem>>)
    %164 = arith.truncf %161 : vector<16x256xf32> to vector<16x256xbf16>
    %cst_77 = arith.constant 0.000000e+00 : bf16
    %165 = vector.broadcast %cst_77 : bf16 to vector<16x256xbf16>
    %166 = vector.extract_strided_slice %164 {offsets = [0, 0], sizes = [15, 256], strides = [1, 1]} : vector<16x256xbf16> to vector<15x256xbf16>
    %167 = tpu.concatenate %57, %166 in 0 : vector<1x256xbf16>, vector<15x256xbf16> -> vector<16x256xbf16>
    %168 = arith.select %38, %165, %167 : vector<16x256xi1>, vector<16x256xbf16>
    %cst_78 = arith.constant 0.000000e+00 : bf16
    %169 = vector.broadcast %cst_78 : bf16 to vector<16x256xbf16>
    %170 = vector.extract_strided_slice %164 {offsets = [1, 0], sizes = [15, 256], strides = [1, 1]} : vector<16x256xbf16> to vector<15x256xbf16>
    %171 = tpu.concatenate %170, %57 in 0 : vector<15x256xbf16>, vector<1x256xbf16> -> vector<16x256xbf16>
    %172 = arith.select %56, %169, %171 : vector<16x256xi1>, vector<16x256xbf16>
    %173 = tpu.concatenate %168, %164, %172 in 1 : vector<16x256xbf16>, vector<16x256xbf16>, vector<16x256xbf16> -> vector<16x768xbf16>
    %c0_79 = arith.constant 0 : index
    %c0_80 = arith.constant 0 : index
    %174 = vector.load %arg32[%c0_79, %c0_80] : memref<768x256xbf16, #tpu.memory_space<vmem>>, vector<768x256xbf16>
    %cst_81 = arith.constant dense<0.000000e+00> : vector<16x256xf32>
    %175 = tpu.matmul %173, %174, %cst_81 {dimension_numbers = #tpu.dot_dimension_numbers<[1], [0], [0], [1], [0, 0, 1, 1], [], []>} : vector<16x768xbf16>, vector<768x256xbf16>, vector<16x256xf32> -> vector<16x256xf32>
    %c0_82 = arith.constant 0 : index
    %c0_83 = arith.constant 0 : index
    %176 = vector.load %arg10[%c0_82, %c0_83] : memref<1x256xf32, #tpu.memory_space<vmem>>, vector<1x256xf32>
    %177 = vector.broadcast %176 : vector<1x256xf32> to vector<16x256xf32>
    %178 = arith.addf %175, %177 : vector<16x256xf32>
    %cst_84 = arith.constant 0.000000e+00 : f32
    %179 = vector.broadcast %cst_84 : f32 to vector<16x256xf32>
    %180 = arith.maximumf %178, %179 : vector<16x256xf32>
    %c8_i32_85 = arith.constant 8 : i32
    %181 = tpu.memref_slice %arg35[%c8_i32_85] : memref<10x!tpu.dma_semaphore, #tpu.memory_space<semaphore_mem>> -> memref<1x!tpu.dma_semaphore, #tpu.memory_space<semaphore_mem>>
    %182 = tpu.memref_squeeze %181 : memref<1x!tpu.dma_semaphore, #tpu.memory_space<semaphore_mem>> -> memref<!tpu.dma_semaphore, #tpu.memory_space<semaphore_mem>>
    tpu.wait_dma2 semaphore(%182 : memref<!tpu.dma_semaphore, #tpu.memory_space<semaphore_mem>>) src(%arg21 : memref<256x512xbf16, #tpu.memory_space<any>>) dst(%arg33 : memref<256x512xbf16, #tpu.memory_space<vmem>>)
    %183 = arith.truncf %180 : vector<16x256xf32> to vector<16x256xbf16>
    %c0_86 = arith.constant 0 : index
    %c0_87 = arith.constant 0 : index
    %184 = vector.load %arg33[%c0_86, %c0_87] : memref<256x512xbf16, #tpu.memory_space<vmem>>, vector<256x512xbf16>
    %cst_88 = arith.constant dense<0.000000e+00> : vector<16x512xf32>
    %185 = tpu.matmul %183, %184, %cst_88 {dimension_numbers = #tpu.dot_dimension_numbers<[1], [0], [0], [1], [0, 0, 1, 1], [], []>} : vector<16x256xbf16>, vector<256x512xbf16>, vector<16x512xf32> -> vector<16x512xf32>
    %c0_89 = arith.constant 0 : index
    %c0_90 = arith.constant 0 : index
    %186 = vector.load %arg11[%c0_89, %c0_90] : memref<1x512xf32, #tpu.memory_space<vmem>>, vector<1x512xf32>
    %187 = vector.broadcast %186 : vector<1x512xf32> to vector<16x512xf32>
    %188 = arith.addf %185, %187 : vector<16x512xf32>
    %189 = arith.addf %188, %151 : vector<16x512xf32>
    %cst_91 = arith.constant 0.000000e+00 : f32
    %190 = vector.broadcast %cst_91 : f32 to vector<16x512xf32>
    %191 = arith.maximumf %189, %190 : vector<16x512xf32>
    %192 = vector.shape_cast %191 : vector<16x512xf32> to vector<2x8x512xf32>
    %cst_92 = arith.constant dense<0.000000e+00> : vector<2x512xf32>
    %193 = vector.multi_reduction <add>, %192, %cst_92 [1] : vector<2x8x512xf32> to vector<2x512xf32>
    %cst_93 = arith.constant 8.000000e+00 : f32
    %194 = vector.broadcast %cst_93 : f32 to vector<2x512xf32>
    %195 = arith.divf %193, %194 : vector<2x512xf32>
    %c9_i32_94 = arith.constant 9 : i32
    %196 = tpu.memref_slice %arg35[%c9_i32_94] : memref<10x!tpu.dma_semaphore, #tpu.memory_space<semaphore_mem>> -> memref<1x!tpu.dma_semaphore, #tpu.memory_space<semaphore_mem>>
    %197 = tpu.memref_squeeze %196 : memref<1x!tpu.dma_semaphore, #tpu.memory_space<semaphore_mem>> -> memref<!tpu.dma_semaphore, #tpu.memory_space<semaphore_mem>>
    tpu.wait_dma2 semaphore(%197 : memref<!tpu.dma_semaphore, #tpu.memory_space<semaphore_mem>>) src(%arg22 : memref<512x512xbf16, #tpu.memory_space<any>>) dst(%arg34 : memref<512x512xbf16, #tpu.memory_space<vmem>>)
    %198 = arith.truncf %195 : vector<2x512xf32> to vector<2x512xbf16>
    %c0_95 = arith.constant 0 : index
    %c0_96 = arith.constant 0 : index
    %199 = vector.load %arg34[%c0_95, %c0_96] : memref<512x512xbf16, #tpu.memory_space<vmem>>, vector<512x512xbf16>
    %cst_97 = arith.constant dense<0.000000e+00> : vector<2x512xf32>
    %200 = tpu.matmul %198, %199, %cst_97 {dimension_numbers = #tpu.dot_dimension_numbers<[1], [0], [0], [1], [0, 0, 1, 1], [], []>} : vector<2x512xbf16>, vector<512x512xbf16>, vector<2x512xf32> -> vector<2x512xf32>
    %c0_98 = arith.constant 0 : index
    %c0_99 = arith.constant 0 : index
    %201 = vector.load %arg12[%c0_98, %c0_99] : memref<1x512xf32, #tpu.memory_space<vmem>>, vector<1x512xf32>
    %202 = vector.broadcast %201 : vector<1x512xf32> to vector<2x512xf32>
    %203 = arith.addf %200, %202 : vector<2x512xf32>
    %c0_100 = arith.constant 0 : index
    %c0_101 = arith.constant 0 : index
    %204 = vector.load %arg24[%c0_100, %c0_101] : memref<2x512xf32, #tpu.memory_space<vmem>>, vector<2x512xf32>
    tpu.vector_store %arg24[%c0_100, %c0_101], %203 {strides = array<i32>} : memref<2x512xf32, #tpu.memory_space<vmem>>, vector<2x512xf32>,
    return
  }
}

</mosaic_0001>

<llo_original>
// kernel: tpu_custom_call.1
$region0: #{tpu_custom_call.1}
  #allocation0 [shape = 'u32[]', space=smem, size = 0x4, offset = 0x4, fixed_abs, tag = 'smem constant byte address 0x4 - core index']
  #allocation1 [shape = 'u32[144,128]{1,0:T(1,128)}', space=vmem, size = 0x12000, scoped, tag = 'internal scratch']
  #allocation2 [shape = 'bf16[1024,768]{1,0:T(16,128)(2,1)}', space=vmem, size = 0x180000, scoped, tag = 'scratch operand']
  #allocation3 [shape = 'bf16[768,256]{1,0:T(16,128)(2,1)}', space=vmem, size = 0x60000, scoped, tag = 'scratch operand']
  #allocation4 [shape = 'bf16[256,512]{1,0:T(16,128)(2,1)}', space=vmem, size = 0x40000, scoped, tag = 'scratch operand']
  #allocation5 [shape = 'bf16[512,256]{1,0:T(16,128)(2,1)}', space=vmem, size = 0x40000, scoped, tag = 'scratch operand']
  #allocation6 [shape = 'bf16[768,256]{1,0:T(16,128)(2,1)}', space=vmem, size = 0x60000, scoped, tag = 'scratch operand']
  #allocation7 [shape = 'bf16[256,512]{1,0:T(16,128)(2,1)}', space=vmem, size = 0x40000, scoped, tag = 'scratch operand']
  #allocation8 [shape = 'bf16[512,256]{1,0:T(16,128)(2,1)}', space=vmem, size = 0x40000, scoped, tag = 'scratch operand']
  #allocation9 [shape = 'bf16[768,256]{1,0:T(16,128)(2,1)}', space=vmem, size = 0x60000, scoped, tag = 'scratch operand']
  #allocation10 [shape = 'bf16[256,512]{1,0:T(16,128)(2,1)}', space=vmem, size = 0x40000, scoped, tag = 'scratch operand']
  #allocation11 [shape = 'bf16[512,512]{1,0:T(16,128)(2,1)}', space=vmem, size = 0x80000, scoped, tag = 'scratch operand']
  #allocation12 [shape = 's32[10]{0}', space=sflag, size = 0x28, scoped, tag = 'scratch operand']
  #allocation37 [shape = 's32[]', space=sflag, size = 0x4, offset = 0, fixed_abs, tag = 'sflag constant byte address 0x0 - dummy sync flag']
  #allocation39 [shape = 's32[]', space=sflag, size = 0x4, offset = 0, fixed_abs, tag = 'sflag constant byte address 0x0 - dummy sync flag']
  #allocation41 [shape = 's32[]', space=sflag, size = 0x4, offset = 0, fixed_abs, tag = 'sflag constant byte address 0x0 - dummy sync flag']
  #allocation43 [shape = 's32[]', space=sflag, size = 0x4, offset = 0, fixed_abs, tag = 'sflag constant byte address 0x0 - dummy sync flag']
  #allocation45 [shape = 's32[]', space=sflag, size = 0x4, offset = 0, fixed_abs, tag = 'sflag constant byte address 0x0 - dummy sync flag']
  #allocation47 [shape = 's32[]', space=sflag, size = 0x4, offset = 0, fixed_abs, tag = 'sflag constant byte address 0x0 - dummy sync flag']
  #allocation49 [shape = 's32[]', space=sflag, size = 0x4, offset = 0, fixed_abs, tag = 'sflag constant byte address 0x0 - dummy sync flag']
  #allocation51 [shape = 's32[]', space=sflag, size = 0x4, offset = 0, fixed_abs, tag = 'sflag constant byte address 0x0 - dummy sync flag']
  #allocation53 [shape = 's32[]', space=sflag, size = 0x4, offset = 0, fixed_abs, tag = 'sflag constant byte address 0x0 - dummy sync flag']
  #allocation55 [shape = 's32[]', space=sflag, size = 0x4, offset = 0, fixed_abs, tag = 'sflag constant byte address 0x0 - dummy sync flag']
  %s0 = inlined_call_operand.hbm [shape: f32[18,64], index: 0, kind: input, shape index: {}]
  %s1 = inlined_call_operand.hbm [shape: bf16[64,1536], index: 1, kind: input, shape index: {}]
  %s2 = inlined_call_operand.hbm [shape: f32[1,1536], index: 2, kind: input, shape index: {}]
  %s3 = inlined_call_operand.hbm [shape: f32[1,768], index: 3, kind: input, shape index: {}]
  %s4 = inlined_call_operand.hbm [shape: f32[1,256], index: 4, kind: input, shape index: {}]
  %s5 = inlined_call_operand.hbm [shape: f32[1,512], index: 5, kind: input, shape index: {}]
  %s6 = inlined_call_operand.hbm [shape: f32[1,256], index: 6, kind: input, shape index: {}]
  %s7 = inlined_call_operand.hbm [shape: f32[1,256], index: 7, kind: input, shape index: {}]
  %s8 = inlined_call_operand.hbm [shape: f32[1,512], index: 8, kind: input, shape index: {}]
  %s9 = inlined_call_operand.hbm [shape: f32[1,256], index: 9, kind: input, shape index: {}]
  %s10 = inlined_call_operand.hbm [shape: f32[1,256], index: 10, kind: input, shape index: {}]
  %s11 = inlined_call_operand.hbm [shape: f32[1,512], index: 11, kind: input, shape index: {}]
  %s12 = inlined_call_operand.hbm [shape: f32[1,512], index: 12, kind: input, shape index: {}]
  %s13 = inlined_call_operand.hbm [shape: bf16[1024,768], index: 13, kind: input, shape index: {}]
  %s14 = inlined_call_operand.hbm [shape: bf16[768,256], index: 14, kind: input, shape index: {}]
  %s15 = inlined_call_operand.hbm [shape: bf16[256,512], index: 15, kind: input, shape index: {}]
  %s16 = inlined_call_operand.hbm [shape: bf16[512,256], index: 16, kind: input, shape index: {}]
  %s17 = inlined_call_operand.hbm [shape: bf16[768,256], index: 17, kind: input, shape index: {}]
  %s18 = inlined_call_operand.hbm [shape: bf16[256,512], index: 18, kind: input, shape index: {}]
  %s19 = inlined_call_operand.hbm [shape: bf16[512,256], index: 19, kind: input, shape index: {}]
  %s20 = inlined_call_operand.hbm [shape: bf16[768,256], index: 20, kind: input, shape index: {}]
  %s21 = inlined_call_operand.hbm [shape: bf16[256,512], index: 21, kind: input, shape index: {}]
  %s22 = inlined_call_operand.hbm [shape: bf16[512,512], index: 22, kind: input, shape index: {}]
  %s23 = inlined_call_operand.hbm [shape: f32[2,512], index: 23, kind: output, shape index: {0}]
  %s24 = inlined_call_operand.hbm [shape: f32[2,512], index: 24, kind: output, shape index: {1}]
  %25 = xla_tuple %s23, %s24
  %s26 = sld [smem:[#allocation0]]
  $region122: #{tpu_custom_call.1} parent=0
    _
  %s28 = ssub.s32 1, %s26
  %s29 = scalar_select 0, %s28, %s26
  $region1: #{tpu_custom_call.1} parent=0
    #allocation13 [shape = 'u8[12288]{0}', space=vmem, size = 0x3000, scoped, tag = 'input window, operand 0, single buffered']
    #allocation14 [shape = 's32[1]{0}', space=sflag, size = 0x4, scoped, tag = 'scoped memory for tpu_custom_call.1']
    #allocation15 [shape = 's32[1]{0}', space=sflag, size = 0x4, scoped, tag = 'scoped memory for tpu_custom_call.1']
    #allocation16 [shape = 'u8[196608]{0}', space=vmem, size = 0x30000, scoped, tag = 'input window, operand 1, single buffered']
    #allocation17 [shape = 's32[1]{0}', space=sflag, size = 0x4, scoped, tag = 'scoped memory for tpu_custom_call.1']
    #allocation18 [shape = 'u8[6144]{0}', space=vmem, size = 0x1800, scoped, tag = 'input window, operand 2, single buffered']
    #allocation19 [shape = 'u8[3072]{0}', space=vmem, size = 0xc00, scoped, tag = 'input window, operand 3, single buffered']
    #allocation20 [shape = 's32[1]{0}', space=sflag, size = 0x4, scoped, tag = 'scoped memory for tpu_custom_call.1']
    #allocation21 [shape = 'u8[1024]{0}', space=vmem, size = 0x400, scoped, tag = 'input window, operand 4, single buffered']
    #allocation22 [shape = 'u8[2048]{0}', space=vmem, size = 0x800, scoped, tag = 'input window, operand 5, single buffered']
    #allocation23 [shape = 's32[1]{0}', space=sflag, size = 0x4, scoped, tag = 'scoped memory for tpu_custom_call.1']
    #allocation24 [shape = 'u8[1024]{0}', space=vmem, size = 0x400, scoped, tag = 'input window, operand 6, single buffered']
    #allocation25 [shape = 'u8[1024]{0}', space=vmem, size = 0x400, scoped, tag = 'input window, operand 7, single buffered']
    #allocation26 [shape = 's32[1]{0}', space=sflag, size = 0x4, scoped, tag = 'scoped memory for tpu_custom_call.1']
    #allocation27 [shape = 'u8[2048]{0}', space=vmem, size = 0x800, scoped, tag = 'input window, operand 8, single buffered']
    #allocation28 [shape = 'u8[1024]{0}', space=vmem, size = 0x400, scoped, tag = 'input window, operand 9, single buffered']
    #allocation29 [shape = 's32[1]{0}', space=sflag, size = 0x4, scoped, tag = 'scoped memory for tpu_custom_call.1']
    #allocation30 [shape = 'u8[1024]{0}', space=vmem, size = 0x400, scoped, tag = 'input window, operand 10, single buffered']
    #allocation31 [shape = 'u8[2048]{0}', space=vmem, size = 0x800, scoped, tag = 'input window, operand 11, single buffered']
    #allocation32 [shape = 's32[1]{0}', space=sflag, size = 0x4, scoped, tag = 'scoped memory for tpu_custom_call.1']
    #allocation33 [shape = 'u8[2048]{0}', space=vmem, size = 0x800, scoped, tag = 'input window, operand 12, single buffered']
    #allocation34 [shape = 'u8[4096]{0}', space=vmem, size = 0x1000, scoped, tag = 'output window, operand 0, single buffered']
    #allocation35 [shape = 'u8[4096]{0}', space=vmem, size = 0x1000, scoped, tag = 'output window, operand 1, single buffered']
    #allocation36 [shape = 's32[1]{0}', space=sflag, size = 0x4, scoped, tag = 'scoped memory for tpu_custom_call.1']
    #allocation38 [shape = 'u32[9]{0}', space=smem, size = 0x24, scoped, tag = 'DMA stride descriptor']
    #allocation40 [shape = 'u32[9]{0}', space=smem, size = 0x24, scoped, tag = 'DMA stride descriptor']
    #allocation42 [shape = 'u32[9]{0}', space=smem, size = 0x24, scoped, tag = 'DMA stride descriptor']
    #allocation44 [shape = 'u32[9]{0}', space=smem, size = 0x24, scoped, tag = 'DMA stride descriptor']
    #allocation46 [shape = 'u32[9]{0}', space=smem, size = 0x24, scoped, tag = 'DMA stride descriptor']
    #allocation48 [shape = 'u32[9]{0}', space=smem, size = 0x24, scoped, tag = 'DMA stride descriptor']
    #allocation50 [shape = 'u32[9]{0}', space=smem, size = 0x24, scoped, tag = 'DMA stride descriptor']
    #allocation52 [shape = 'u32[9]{0}', space=smem, size = 0x24, scoped, tag = 'DMA stride descriptor']
    #allocation54 [shape = 'u32[9]{0}', space=smem, size = 0x24, scoped, tag = 'DMA stride descriptor']
    #allocation56 [shape = 'u32[9]{0}', space=smem, size = 0x24, scoped, tag = 'DMA stride descriptor']
    %30 = vsyncpa [#allocation14], 0
    %31 = vsyncpa [#allocation17], 0
    %32 = vsyncpa [#allocation20], 0
    %33 = vsyncpa [#allocation23], 0
    %34 = vsyncpa [#allocation26], 0
    %35 = vsyncpa [#allocation29], 0
    %36 = vsyncpa [#allocation32], 0
    %37 = vsyncpa [#allocation15], 0
    %38 = vsyncpa [#allocation36], 0
    // Predicated region
    $region2: #{tpu_custom_call.1} parent=1 // pred_check
      _
    $region3: #{tpu_custom_call.1} parent=1 // pred_check_branch
      %40 = sbr.rel (0) target = $region5
    $region4: #{tpu_custom_call.1} parent=1 // pred_region
      %s42 = ssub.s32 384, 384
      %43 = vsyncadd [#allocation14], %s42
      %s44 = sshll.u32 [#allocation13], 4
      %s45 = int_to_ptr.vmem [resolvable:$true] %s44
      %50 = dma.hbm_to_vmem [thread:$0]  %s0, 384, %s45, [#allocation14], 128, 128, 8
    $region5: #{tpu_custom_call.1} parent=1 // pred_fallthru
      _
    // Predicated region
    $region6: #{tpu_custom_call.1} parent=1 // pred_check
      _
    $region7: #{tpu_custom_call.1} parent=1 // pred_check_branch
      %52 = sbr.rel (0) target = $region9
    $region8: #{tpu_custom_call.1} parent=1 // pred_region
      %s54 = ssub.s32 6144, 6144
      %55 = vsyncadd [#allocation17], %s54
      %s56 = sshll.u32 [#allocation16], 4
      %s57 = int_to_ptr.vmem [resolvable:$true] %s56
      %62 = dma.hbm_to_vmem [thread:$0]  %s1, 6144, %s57, [#allocation17], 768, 768, 48
    $region9: #{tpu_custom_call.1} parent=1 // pred_fallthru
      _
    // Predicated region
    $region10: #{tpu_custom_call.1} parent=1 // pred_check
      _
    $region11: #{tpu_custom_call.1} parent=1 // pred_check_branch
      %64 = sbr.rel (0) target = $region13
    $region12: #{tpu_custom_call.1} parent=1 // pred_region
      %s66 = ssub.s32 192, 192
      %67 = vsyncadd [#allocation17], %s66
      %s69 = sshll.u32 [#allocation18], 4
      %s70 = int_to_ptr.vmem [resolvable:$true] %s69
      %72 = dma.hbm_to_vmem [thread:$0]  %s2, 192, %s70, [#allocation17]
    $region13: #{tpu_custom_call.1} parent=1 // pred_fallthru
      _
    // Predicated region
    $region14: #{tpu_custom_call.1} parent=1 // pred_check
      _
    $region15: #{tpu_custom_call.1} parent=1 // pred_check_branch
      %74 = sbr.rel (0) target = $region17
    $region16: #{tpu_custom_call.1} parent=1 // pred_region
      %s76 = ssub.s32 96, 96
      %77 = vsyncadd [#allocation20], %s76
      %s79 = sshll.u32 [#allocation19], 4
      %s80 = int_to_ptr.vmem [resolvable:$true] %s79
      %82 = dma.hbm_to_vmem [thread:$0]  %s3, 96, %s80, [#allocation20]
    $region17: #{tpu_custom_call.1} parent=1 // pred_fallthru
      _
    // Predicated region
    $region18: #{tpu_custom_call.1} parent=1 // pred_check
      _
    $region19: #{tpu_custom_call.1} parent=1 // pred_check_branch
      %84 = sbr.rel (0) target = $region21
    $region20: #{tpu_custom_call.1} parent=1 // pred_region
      %s86 = ssub.s32 32, 32
      %87 = vsyncadd [#allocation20], %s86
      %s89 = sshll.u32 [#allocation21], 4
      %s90 = int_to_ptr.vmem [resolvable:$true] %s89
      %92 = dma.hbm_to_vmem [thread:$0]  %s4, 32, %s90, [#allocation20]
    $region21: #{tpu_custom_call.1} parent=1 // pred_fallthru
      _
    // Predicated region
    $region22: #{tpu_custom_call.1} parent=1 // pred_check
      _
    $region23: #{tpu_custom_call.1} parent=1 // pred_check_branch
      %94 = sbr.rel (0) target = $region25
    $region24: #{tpu_custom_call.1} parent=1 // pred_region
      %s96 = ssub.s32 64, 64
      %97 = vsyncadd [#allocation23], %s96
      %s99 = sshll.u32 [#allocation22], 4
      %s100 = int_to_ptr.vmem [resolvable:$true] %s99
      %102 = dma.hbm_to_vmem [thread:$0]  %s5, 64, %s100, [#allocation23]
    $region25: #{tpu_custom_call.1} parent=1 // pred_fallthru
      _
    // Predicated region
    $region26: #{tpu_custom_call.1} parent=1 // pred_check
      _
    $region27: #{tpu_custom_call.1} parent=1 // pred_check_branch
      %104 = sbr.rel (0) target = $region29
    $region28: #{tpu_custom_call.1} parent=1 // pred_region
      %s106 = ssub.s32 32, 32
      %107 = vsyncadd [#allocation23], %s106
      %s109 = sshll.u32 [#allocation24], 4
      %s110 = int_to_ptr.vmem [resolvable:$true] %s109
      %112 = dma.hbm_to_vmem [thread:$0]  %s6, 32, %s110, [#allocation23]
    $region29: #{tpu_custom_call.1} parent=1 // pred_fallthru
      _
    // Predicated region
    $region30: #{tpu_custom_call.1} parent=1 // pred_check
      _
    $region31: #{tpu_custom_call.1} parent=1 // pred_check_branch
      %114 = sbr.rel (0) target = $region33
    $region32: #{tpu_custom_call.1} parent=1 // pred_region
      %s116 = ssub.s32 32, 32
      %117 = vsyncadd [#allocation26], %s116
      %s119 = sshll.u32 [#allocation25], 4
      %s120 = int_to_ptr.vmem [resolvable:$true] %s119
      %122 = dma.hbm_to_vmem [thread:$0]  %s7, 32, %s120, [#allocation26]
    $region33: #{tpu_custom_call.1} parent=1 // pred_fallthru
      _
    // Predicated region
    $region34: #{tpu_custom_call.1} parent=1 // pred_check
      _
    $region35: #{tpu_custom_call.1} parent=1 // pred_check_branch
      %124 = sbr.rel (0) target = $region37
    $region36: #{tpu_custom_call.1} parent=1 // pred_region
      %s126 = ssub.s32 64, 64
      %127 = vsyncadd [#allocation26], %s126
      %s129 = sshll.u32 [#allocation27], 4
      %s130 = int_to_ptr.vmem [resolvable:$true] %s129
      %132 = dma.hbm_to_vmem [thread:$0]  %s8, 64, %s130, [#allocation26]
    $region37: #{tpu_custom_call.1} parent=1 // pred_fallthru
      _
    // Predicated region
    $region38: #{tpu_custom_call.1} parent=1 // pred_check
      _
    $region39: #{tpu_custom_call.1} parent=1 // pred_check_branch
      %134 = sbr.rel (0) target = $region41
    $region40: #{tpu_custom_call.1} parent=1 // pred_region
      %s136 = ssub.s32 32, 32
      %137 = vsyncadd [#allocation29], %s136
      %s139 = sshll.u32 [#allocation28], 4
      %s140 = int_to_ptr.vmem [resolvable:$true] %s139
      %142 = dma.hbm_to_vmem [thread:$0]  %s9, 32, %s140, [#allocation29]
    $region41: #{tpu_custom_call.1} parent=1 // pred_fallthru
      _
    // Predicated region
    $region42: #{tpu_custom_call.1} parent=1 // pred_check
      _
    $region43: #{tpu_custom_call.1} parent=1 // pred_check_branch
      %144 = sbr.rel (0) target = $region45
    $region44: #{tpu_custom_call.1} parent=1 // pred_region
      %s146 = ssub.s32 32, 32
      %147 = vsyncadd [#allocation29], %s146
      %s149 = sshll.u32 [#allocation30], 4
      %s150 = int_to_ptr.vmem [resolvable:$true] %s149
      %152 = dma.hbm_to_vmem [thread:$0]  %s10, 32, %s150, [#allocation29]
    $region45: #{tpu_custom_call.1} parent=1 // pred_fallthru
      _
    // Predicated region
    $region46: #{tpu_custom_call.1} parent=1 // pred_check
      _
    $region47: #{tpu_custom_call.1} parent=1 // pred_check_branch
      %154 = sbr.rel (0) target = $region49
    $region48: #{tpu_custom_call.1} parent=1 // pred_region
      %s156 = ssub.s32 64, 64
      %157 = vsyncadd [#allocation32], %s156
      %s159 = sshll.u32 [#allocation31], 4
      %s160 = int_to_ptr.vmem [resolvable:$true] %s159
      %162 = dma.hbm_to_vmem [thread:$0]  %s11, 64, %s160, [#allocation32]
    $region49: #{tpu_custom_call.1} parent=1 // pred_fallthru
      _
    // Predicated region
    $region50: #{tpu_custom_call.1} parent=1 // pred_check
      _
    $region51: #{tpu_custom_call.1} parent=1 // pred_check_branch
      %164 = sbr.rel (0) target = $region53
    $region52: #{tpu_custom_call.1} parent=1 // pred_region
      %s166 = ssub.s32 64, 64
      %167 = vsyncadd [#allocation32], %s166
      %s169 = sshll.u32 [#allocation33], 4
      %s170 = int_to_ptr.vmem [resolvable:$true] %s169
      %172 = dma.hbm_to_vmem [thread:$0]  %s12, 64, %s170, [#allocation32]
    $region53: #{tpu_custom_call.1} parent=1 // pred_fallthru
      _
    // Predicated region
    $region54: #{tpu_custom_call.1} parent=1 // pred_check
      _
    $region55: #{tpu_custom_call.1} parent=1 // pred_check_branch
      %174 = sbr.rel (0) target = $region57
    $region56: #{tpu_custom_call.1} parent=1 // pred_region
      %175 = dma.done [#allocation14], 384
    $region57: #{tpu_custom_call.1} parent=1 // pred_fallthru
      _
    // Predicated region
    $region58: #{tpu_custom_call.1} parent=1 // pred_check
      _
    $region59: #{tpu_custom_call.1} parent=1 // pred_check_branch
      %177 = sbr.rel (0) target = $region61
    $region60: #{tpu_custom_call.1} parent=1 // pred_region
      %178 = dma.done [#allocation17], 6144
    $region61: #{tpu_custom_call.1} parent=1 // pred_fallthru
      _
    // Predicated region
    $region62: #{tpu_custom_call.1} parent=1 // pred_check
      _
    $region63: #{tpu_custom_call.1} parent=1 // pred_check_branch
      %180 = sbr.rel (0) target = $region65
    $region64: #{tpu_custom_call.1} parent=1 // pred_region
      %181 = dma.done [#allocation17], 192
    $region65: #{tpu_custom_call.1} parent=1 // pred_fallthru
      _
    // Predicated region
    $region66: #{tpu_custom_call.1} parent=1 // pred_check
      _
    $region67: #{tpu_custom_call.1} parent=1 // pred_check_branch
      %183 = sbr.rel (0) target = $region69
    $region68: #{tpu_custom_call.1} parent=1 // pred_region
      %184 = dma.done [#allocation20], 96
    $region69: #{tpu_custom_call.1} parent=1 // pred_fallthru
      _
    // Predicated region
    $region70: #{tpu_custom_call.1} parent=1 // pred_check
      _
    $region71: #{tpu_custom_call.1} parent=1 // pred_check_branch
      %186 = sbr.rel (0) target = $region73
    $region72: #{tpu_custom_call.1} parent=1 // pred_region
      %187 = dma.done [#allocation20], 32
    $region73: #{tpu_custom_call.1} parent=1 // pred_fallthru
      _
    // Predicated region
    $region74: #{tpu_custom_call.1} parent=1 // pred_check
      _
    $region75: #{tpu_custom_call.1} parent=1 // pred_check_branch
      %189 = sbr.rel (0) target = $region77
    $region76: #{tpu_custom_call.1} parent=1 // pred_region
      %190 = dma.done [#allocation23], 64
    $region77: #{tpu_custom_call.1} parent=1 // pred_fallthru
      _
    // Predicated region
    $region78: #{tpu_custom_call.1} parent=1 // pred_check
      _
    $region79: #{tpu_custom_call.1} parent=1 // pred_check_branch
      %192 = sbr.rel (0) target = $region81
    $region80: #{tpu_custom_call.1} parent=1 // pred_region
      %193 = dma.done [#allocation23], 32
    $region81: #{tpu_custom_call.1} parent=1 // pred_fallthru
      _
    // Predicated region
    $region82: #{tpu_custom_call.1} parent=1 // pred_check
      _
    $region83: #{tpu_custom_call.1} parent=1 // pred_check_branch
      %195 = sbr.rel (0) target = $region85
    $region84: #{tpu_custom_call.1} parent=1 // pred_region
      %196 = dma.done [#allocation26], 32
    $region85: #{tpu_custom_call.1} parent=1 // pred_fallthru
      _
    // Predicated region
    $region86: #{tpu_custom_call.1} parent=1 // pred_check
      _
    $region87: #{tpu_custom_call.1} parent=1 // pred_check_branch
      %198 = sbr.rel (0) target = $region89
    $region88: #{tpu_custom_call.1} parent=1 // pred_region
      %199 = dma.done [#allocation26], 64
    $region89: #{tpu_custom_call.1} parent=1 // pred_fallthru
      _
    // Predicated region
    $region90: #{tpu_custom_call.1} parent=1 // pred_check
      _
    $region91: #{tpu_custom_call.1} parent=1 // pred_check_branch
      %201 = sbr.rel (0) target = $region93
    $region92: #{tpu_custom_call.1} parent=1 // pred_region
      %202 = dma.done [#allocation29], 32
    $region93: #{tpu_custom_call.1} parent=1 // pred_fallthru
      _
    // Predicated region
    $region94: #{tpu_custom_call.1} parent=1 // pred_check
      _
    $region95: #{tpu_custom_call.1} parent=1 // pred_check_branch
      %204 = sbr.rel (0) target = $region97
    $region96: #{tpu_custom_call.1} parent=1 // pred_region
      %205 = dma.done [#allocation29], 32
    $region97: #{tpu_custom_call.1} parent=1 // pred_fallthru
      _
    // Predicated region
    $region98: #{tpu_custom_call.1} parent=1 // pred_check
      _
    $region99: #{tpu_custom_call.1} parent=1 // pred_check_branch
      %207 = sbr.rel (0) target = $region101
    $region100: #{tpu_custom_call.1} parent=1 // pred_region
      %208 = dma.done [#allocation32], 64
    $region101: #{tpu_custom_call.1} parent=1 // pred_fallthru
      _
    // Predicated region
    $region102: #{tpu_custom_call.1} parent=1 // pred_check
      _
    $region103: #{tpu_custom_call.1} parent=1 // pred_check_branch
      %210 = sbr.rel (0) target = $region105
    $region104: #{tpu_custom_call.1} parent=1 // pred_region
      %211 = dma.done [#allocation32], 64
    $region105: #{tpu_custom_call.1} parent=1 // pred_fallthru
      _
    %s216 = sshll.u32 1, 14
    %s217 = sxor.u32 4294967295, %s216
    %s219 = sld [smem:[#allocation0]]
    %s220 = sadd.s32 2, %s219
    %s222 = sshll.u32 7, 26
    %s223 = sxor.u32 4294967295, %s222
    %s224 = sand.u32 0, %s223
    %s225 = sshll.u32 %s220, 26
    %s226 = sor.u32 %s224, %s225
    %s227 = sshll.u32 [#allocation2], 4
    %s228 = int_to_ptr.vmem [resolvable:$true] %s227
    %231 = sst [smem:[#allocation38]] 768
    %s232 = scalar_lea.smem [#allocation38], 1
    %233 = sst [smem:[%s232]] 768
    %s234 = scalar_lea.smem [#allocation38], 2
    %235 = sst [smem:[%s234]] 6
    %s236 = scalar_lea.smem [#allocation38], 3
    %237 = sst [smem:[%s236]] 64
    %s238 = scalar_lea.smem [#allocation38], 4
    %239 = sst [smem:[%s238]] 128
    %s240 = scalar_lea.smem [#allocation38], 5
    %241 = sst [smem:[%s240]] 2
    %s242 = scalar_lea.smem [#allocation38], 6
    %243 = sst [smem:[%s242]] 384
    %s244 = scalar_lea.smem [#allocation38], 7
    %245 = sst [smem:[%s244]] 64
    %s246 = scalar_lea.smem [#allocation38], 8
    %247 = sst [smem:[%s246]] 4
    %249 = dma.general %s13, 49152, %s228, [#allocation12], [#allocation37], [#allocation38], %s226, 0
    %s250 = scalar_lea.sflag [#allocation12], 1
    %s252 = sshll.u32 1, 14
    %s253 = sxor.u32 4294967295, %s252
    %s255 = sadd.s32 2, %s219
    %s257 = sshll.u32 7, 26
    %s258 = sxor.u32 4294967295, %s257
    %s259 = sand.u32 0, %s258
    %s260 = sshll.u32 %s255, 26
    %s261 = sor.u32 %s259, %s260
    %s262 = sshll.u32 [#allocation3], 4
    %s263 = int_to_ptr.vmem [resolvable:$true] %s262
    %266 = sst [smem:[#allocation40]] 256
    %s267 = scalar_lea.smem [#allocation40], 1
    %268 = sst [smem:[%s267]] 256
    %s269 = scalar_lea.smem [#allocation40], 2
    %270 = sst [smem:[%s269]] 2
    %s271 = scalar_lea.smem [#allocation40], 3
    %272 = sst [smem:[%s271]] 64
    %s273 = scalar_lea.smem [#allocation40], 4
    %274 = sst [smem:[%s273]] 128
    %s275 = scalar_lea.smem [#allocation40], 5
    %276 = sst [smem:[%s275]] 2
    %s277 = scalar_lea.smem [#allocation40], 6
    %278 = sst [smem:[%s277]] 128
    %s279 = scalar_lea.smem [#allocation40], 7
    %280 = sst [smem:[%s279]] 64
    %s281 = scalar_lea.smem [#allocation40], 8
    %282 = sst [smem:[%s281]] 4
    %284 = dma.general %s14, 12288, %s263, %s250, [#allocation39], [#allocation40], %s261, 0
    %s285 = scalar_lea.sflag [#allocation12], 2
    %s287 = sshll.u32 1, 14
    %s288 = sxor.u32 4294967295, %s287
    %s290 = sadd.s32 2, %s219
    %s292 = sshll.u32 7, 26
    %s293 = sxor.u32 4294967295, %s292
    %s294 = sand.u32 0, %s293
    %s295 = sshll.u32 %s290, 26
    %s296 = sor.u32 %s294, %s295
    %s297 = sshll.u32 [#allocation4], 4
    %s298 = int_to_ptr.vmem [resolvable:$true] %s297
    %301 = sst [smem:[#allocation42]] 512
    %s302 = scalar_lea.smem [#allocation42], 1
    %303 = sst [smem:[%s302]] 512
    %s304 = scalar_lea.smem [#allocation42], 2
    %305 = sst [smem:[%s304]] 4
    %s306 = scalar_lea.smem [#allocation42], 3
    %307 = sst [smem:[%s306]] 64
    %s308 = scalar_lea.smem [#allocation42], 4
    %309 = sst [smem:[%s308]] 128
    %s310 = scalar_lea.smem [#allocation42], 5
    %311 = sst [smem:[%s310]] 2
    %s312 = scalar_lea.smem [#allocation42], 6
    %313 = sst [smem:[%s312]] 256
    %s314 = scalar_lea.smem [#allocation42], 7
    %315 = sst [smem:[%s314]] 64
    %s316 = scalar_lea.smem [#allocation42], 8
    %317 = sst [smem:[%s316]] 4
    %319 = dma.general %s15, 8192, %s298, %s285, [#allocation41], [#allocation42], %s296, 0
    %s320 = scalar_lea.sflag [#allocation12], 3
    %s322 = sshll.u32 1, 14
    %s323 = sxor.u32 4294967295, %s322
    %s325 = sadd.s32 2, %s219
    %s327 = sshll.u32 7, 26
    %s328 = sxor.u32 4294967295, %s327
    %s329 = sand.u32 0, %s328
    %s330 = sshll.u32 %s325, 26
    %s331 = sor.u32 %s329, %s330
    %s332 = sshll.u32 [#allocation5], 4
    %s333 = int_to_ptr.vmem [resolvable:$true] %s332
    %336 = sst [smem:[#allocation44]] 256
    %s337 = scalar_lea.smem [#allocation44], 1
    %338 = sst [smem:[%s337]] 256
    %s339 = scalar_lea.smem [#allocation44], 2
    %340 = sst [smem:[%s339]] 2
    %s341 = scalar_lea.smem [#allocation44], 3
    %342 = sst [smem:[%s341]] 64
    %s343 = scalar_lea.smem [#allocation44], 4
    %344 = sst [smem:[%s343]] 128
    %s345 = scalar_lea.smem [#allocation44], 5
    %346 = sst [smem:[%s345]] 2
    %s347 = scalar_lea.smem [#allocation44], 6
    %348 = sst [smem:[%s347]] 128
    %s349 = scalar_lea.smem [#allocation44], 7
    %350 = sst [smem:[%s349]] 64
    %s351 = scalar_lea.smem [#allocation44], 8
    %352 = sst [smem:[%s351]] 4
    %354 = dma.general %s16, 8192, %s333, %s320, [#allocation43], [#allocation44], %s331, 0
    %s355 = scalar_lea.sflag [#allocation12], 4
    %s357 = sshll.u32 1, 14
    %s358 = sxor.u32 4294967295, %s357
    %s360 = sadd.s32 2, %s219
    %s362 = sshll.u32 7, 26
    %s363 = sxor.u32 4294967295, %s362
    %s364 = sand.u32 0, %s363
    %s365 = sshll.u32 %s360, 26
    %s366 = sor.u32 %s364, %s365
    %s367 = sshll.u32 [#allocation6], 4
    %s368 = int_to_ptr.vmem [resolvable:$true] %s367
    %371 = sst [smem:[#allocation46]] 256
    %s372 = scalar_lea.smem [#allocation46], 1
    %373 = sst [smem:[%s372]] 256
    %s374 = scalar_lea.smem [#allocation46], 2
    %375 = sst [smem:[%s374]] 2
    %s376 = scalar_lea.smem [#allocation46], 3
    %377 = sst [smem:[%s376]] 64
    %s378 = scalar_lea.smem [#allocation46], 4
    %379 = sst [smem:[%s378]] 128
    %s380 = scalar_lea.smem [#allocation46], 5
    %381 = sst [smem:[%s380]] 2
    %s382 = scalar_lea.smem [#allocation46], 6
    %383 = sst [smem:[%s382]] 128
    %s384 = scalar_lea.smem [#allocation46], 7
    %385 = sst [smem:[%s384]] 64
    %s386 = scalar_lea.smem [#allocation46], 8
    %387 = sst [smem:[%s386]] 4
    %389 = dma.general %s17, 12288, %s368, %s355, [#allocation45], [#allocation46], %s366, 0
    %s390 = scalar_lea.sflag [#allocation12], 5
    %s392 = sshll.u32 1, 14
    %s393 = sxor.u32 4294967295, %s392
    %s395 = sadd.s32 2, %s219
    %s397 = sshll.u32 7, 26
    %s398 = sxor.u32 4294967295, %s397
    %s399 = sand.u32 0, %s398
    %s400 = sshll.u32 %s395, 26
    %s401 = sor.u32 %s399, %s400
    %s402 = sshll.u32 [#allocation7], 4
    %s403 = int_to_ptr.vmem [resolvable:$true] %s402
    %406 = sst [smem:[#allocation48]] 512
    %s407 = scalar_lea.smem [#allocation48], 1
    %408 = sst [smem:[%s407]] 512
    %s409 = scalar_lea.smem [#allocation48], 2
    %410 = sst [smem:[%s409]] 4
    %s411 = scalar_lea.smem [#allocation48], 3
    %412 = sst [smem:[%s411]] 64
    %s413 = scalar_lea.smem [#allocation48], 4
    %414 = sst [smem:[%s413]] 128
    %s415 = scalar_lea.smem [#allocation48], 5
    %416 = sst [smem:[%s415]] 2
    %s417 = scalar_lea.smem [#allocation48], 6
    %418 = sst [smem:[%s417]] 256
    %s419 = scalar_lea.smem [#allocation48], 7
    %420 = sst [smem:[%s419]] 64
    %s421 = scalar_lea.smem [#allocation48], 8
    %422 = sst [smem:[%s421]] 4
    %424 = dma.general %s18, 8192, %s403, %s390, [#allocation47], [#allocation48], %s401, 0
    %s425 = scalar_lea.sflag [#allocation12], 6
    %s427 = sshll.u32 1, 14
    %s428 = sxor.u32 4294967295, %s427
    %s430 = sadd.s32 2, %s219
    %s432 = sshll.u32 7, 26
    %s433 = sxor.u32 4294967295, %s432
    %s434 = sand.u32 0, %s433
    %s435 = sshll.u32 %s430, 26
    %s436 = sor.u32 %s434, %s435
    %s437 = sshll.u32 [#allocation8], 4
    %s438 = int_to_ptr.vmem [resolvable:$true] %s437
    %441 = sst [smem:[#allocation50]] 256
    %s442 = scalar_lea.smem [#allocation50], 1
    %443 = sst [smem:[%s442]] 256
    %s444 = scalar_lea.smem [#allocation50], 2
    %445 = sst [smem:[%s444]] 2
    %s446 = scalar_lea.smem [#allocation50], 3
    %447 = sst [smem:[%s446]] 64
    %s448 = scalar_lea.smem [#allocation50], 4
    %449 = sst [smem:[%s448]] 128
    %s450 = scalar_lea.smem [#allocation50], 5
    %451 = sst [smem:[%s450]] 2
    %s452 = scalar_lea.smem [#allocation50], 6
    %453 = sst [smem:[%s452]] 128
    %s454 = scalar_lea.smem [#allocation50], 7
    %455 = sst [smem:[%s454]] 64
    %s456 = scalar_lea.smem [#allocation50], 8
    %457 = sst [smem:[%s456]] 4
    %459 = dma.general %s19, 8192, %s438, %s425, [#allocation49], [#allocation50], %s436, 0
    %s460 = scalar_lea.sflag [#allocation12], 7
    %s462 = sshll.u32 1, 14
    %s463 = sxor.u32 4294967295, %s462
    %s465 = sadd.s32 2, %s219
    %s467 = sshll.u32 7, 26
    %s468 = sxor.u32 4294967295, %s467
    %s469 = sand.u32 0, %s468
    %s470 = sshll.u32 %s465, 26
    %s471 = sor.u32 %s469, %s470
    %s472 = sshll.u32 [#allocation9], 4
    %s473 = int_to_ptr.vmem [resolvable:$true] %s472
    %476 = sst [smem:[#allocation52]] 256
    %s477 = scalar_lea.smem [#allocation52], 1
    %478 = sst [smem:[%s477]] 256
    %s479 = scalar_lea.smem [#allocation52], 2
    %480 = sst [smem:[%s479]] 2
    %s481 = scalar_lea.smem [#allocation52], 3
    %482 = sst [smem:[%s481]] 64
    %s483 = scalar_lea.smem [#allocation52], 4
    %484 = sst [smem:[%s483]] 128
    %s485 = scalar_lea.smem [#allocation52], 5
    %486 = sst [smem:[%s485]] 2
    %s487 = scalar_lea.smem [#allocation52], 6
    %488 = sst [smem:[%s487]] 128
    %s489 = scalar_lea.smem [#allocation52], 7
    %490 = sst [smem:[%s489]] 64
    %s491 = scalar_lea.smem [#allocation52], 8
    %492 = sst [smem:[%s491]] 4
    %494 = dma.general %s20, 12288, %s473, %s460, [#allocation51], [#allocation52], %s471, 0
    %s495 = scalar_lea.sflag [#allocation12], 8
    %s497 = sshll.u32 1, 14
    %s498 = sxor.u32 4294967295, %s497
    %s500 = sadd.s32 2, %s219
    %s502 = sshll.u32 7, 26
    %s503 = sxor.u32 4294967295, %s502
    %s504 = sand.u32 0, %s503
    %s505 = sshll.u32 %s500, 26
    %s506 = sor.u32 %s504, %s505
    %s507 = sshll.u32 [#allocation10], 4
    %s508 = int_to_ptr.vmem [resolvable:$true] %s507
    %511 = sst [smem:[#allocation54]] 512
    %s512 = scalar_lea.smem [#allocation54], 1
    %513 = sst [smem:[%s512]] 512
    %s514 = scalar_lea.smem [#allocation54], 2
    %515 = sst [smem:[%s514]] 4
    %s516 = scalar_lea.smem [#allocation54], 3
    %517 = sst [smem:[%s516]] 64
    %s518 = scalar_lea.smem [#allocation54], 4
    %519 = sst [smem:[%s518]] 128
    %s520 = scalar_lea.smem [#allocation54], 5
    %521 = sst [smem:[%s520]] 2
    %s522 = scalar_lea.smem [#allocation54], 6
    %523 = sst [smem:[%s522]] 256
    %s524 = scalar_lea.smem [#allocation54], 7
    %525 = sst [smem:[%s524]] 64
    %s526 = scalar_lea.smem [#allocation54], 8
    %527 = sst [smem:[%s526]] 4
    %529 = dma.general %s21, 8192, %s508, %s495, [#allocation53], [#allocation54], %s506, 0
    %s530 = scalar_lea.sflag [#allocation12], 9
    %s532 = sshll.u32 1, 14
    %s533 = sxor.u32 4294967295, %s532
    %s535 = sadd.s32 2, %s219
    %s537 = sshll.u32 7, 26
    %s538 = sxor.u32 4294967295, %s537
    %s539 = sand.u32 0, %s538
    %s540 = sshll.u32 %s535, 26
    %s541 = sor.u32 %s539, %s540
    %s542 = sshll.u32 [#allocation11], 4
    %s543 = int_to_ptr.vmem [resolvable:$true] %s542
    %546 = sst [smem:[#allocation56]] 512
    %s547 = scalar_lea.smem [#allocation56], 1
    %548 = sst [smem:[%s547]] 512
    %s549 = scalar_lea.smem [#allocation56], 2
    %550 = sst [smem:[%s549]] 4
    %s551 = scalar_lea.smem [#allocation56], 3
    %552 = sst [smem:[%s551]] 64
    %s553 = scalar_lea.smem [#allocation56], 4
    %554 = sst [smem:[%s553]] 128
    %s555 = scalar_lea.smem [#allocation56], 5
    %556 = sst [smem:[%s555]] 2
    %s557 = scalar_lea.smem [#allocation56], 6
    %558 = sst [smem:[%s557]] 256
    %s559 = scalar_lea.smem [#allocation56], 7
    %560 = sst [smem:[%s559]] 64
    %s561 = scalar_lea.smem [#allocation56], 8
    %562 = sst [smem:[%s561]] 4
    %564 = dma.general %s22, 16384, %s543, %s530, [#allocation55], [#allocation56], %s541, 0
    %v565 = vlaneseq
    %v566 = vshrl.u32 %v565, 7
    %v567 = vadd.s32 %v566, 8
    %vm568 = vcmp.lt.s32.totalorder %v566, 0
    %v569 = vsub.s32 0, %v566
    %v570 = vsel %vm568, %v569, %v566
    %v571 = vshrl.u32 %v570, 3
    %v572 = vand.u32 %v570, 7
    %v573 = vsub.s32 0, %v572
    %v574 = vsel %vm568, %v573, %v572
    %vm575 = vcmp.lt.s32.totalorder %v567, 0
    %v576 = vsub.s32 0, %v567
    %v577 = vsel %vm575, %v576, %v567
    %v578 = vshrl.u32 %v577, 3
    %v579 = vand.u32 %v577, 7
    %v580 = vsub.s32 0, %v579
    %v581 = vsel %vm575, %v580, %v579
    %vm582 = vcmp.ne.s32.totalorder %v574, 0
    %vm583 = vcmp.ne.s32.totalorder %v581, 0
    %vm584 = vcmp.lt.s32.totalorder %v574, 0
    %vm585 = vcmp.lt.s32.totalorder %v581, 0
    %vm586 = vmand %vm584, %vm582
    %vm587 = vmand %vm585, %vm583
    %v588 = vadd.s32 %v574, 8
    %v589 = vadd.s32 %v581, 8
    %v590 = vsel %vm586, %v588, %v574
    %v591 = vsel %vm587, %v589, %v581
    %vm592 = vcmp.eq.s32.totalorder %v590, 0
    %vm593 = vcmp.eq.s32.totalorder %v591, 0
    %vm594 = vcmp.eq.s32.totalorder %v590, 7
    %vm595 = vcmp.eq.s32.totalorder %v591, 7
    %v596 = vld [vmem:[#allocation13] sm:$0xff]
    %v597 = vld [vmem:[#allocation13 + $0x8] sm:$0xff]
    %v598 = vld [vmem:[#allocation13 + $0x10] sm:$0x3]
    %v599 = vpack.c.bf16 %v597, %v596
    %v600 = vpack.c.bf16 %v598, %v598
    %v601 = vld [vmem:[#allocation16] sm:$0xff]
    %v602 = vld [vmem:[#allocation16 + $0x8] sm:$0xff]
    %v603 = vld [vmem:[#allocation16 + $0x10] sm:$0xff]
    %v604 = vld [vmem:[#allocation16 + $0x18] sm:$0xff]
    %v605 = vld [vmem:[#allocation16 + $0x20] sm:$0xff]
    %v606 = vld [vmem:[#allocation16 + $0x28] sm:$0xff]
    %v607 = vld [vmem:[#allocation16 + $0x30] sm:$0xff]
    %v608 = vld [vmem:[#allocation16 + $0x38] sm:$0xff]
    %v609 = vld [vmem:[#allocation16 + $0x40] sm:$0xff]
    %v610 = vld [vmem:[#allocation16 + $0x48] sm:$0xff]
    %v611 = vld [vmem:[#allocation16 + $0x50] sm:$0xff]
    %v612 = vld [vmem:[#allocation16 + $0x58] sm:$0xff]
    %v613 = vld [vmem:[#allocation16 + $0x60] sm:$0xff]
    %v614 = vld [vmem:[#allocation16 + $0x68] sm:$0xff]
    %v615 = vld [vmem:[#allocation16 + $0x70] sm:$0xff]
    %v616 = vld [vmem:[#allocation16 + $0x78] sm:$0xff]
    %v617 = vld [vmem:[#allocation16 + $0x80] sm:$0xff]
    %v618 = vld [vmem:[#allocation16 + $0x88] sm:$0xff]
    %v619 = vld [vmem:[#allocation16 + $0x90] sm:$0xff]
    %v620 = vld [vmem:[#allocation16 + $0x98] sm:$0xff]
    %v621 = vld [vmem:[#allocation16 + $0xa0] sm:$0xff]
    %v622 = vld [vmem:[#allocation16 + $0xa8] sm:$0xff]
    %v623 = vld [vmem:[#allocation16 + $0xb0] sm:$0xff]
    %v624 = vld [vmem:[#allocation16 + $0xb8] sm:$0xff]
    %v625 = vld [vmem:[#allocation16 + $0xc0] sm:$0xff]
    %v626 = vld [vmem:[#allocation16 + $0xc8] sm:$0xff]
    %v627 = vld [vmem:[#allocation16 + $0xd0] sm:$0xff]
    %v628 = vld [vmem:[#allocation16 + $0xd8] sm:$0xff]
    %v629 = vld [vmem:[#allocation16 + $0xe0] sm:$0xff]
    %v630 = vld [vmem:[#allocation16 + $0xe8] sm:$0xff]
    %v631 = vld [vmem:[#allocation16 + $0xf0] sm:$0xff]
    %v632 = vld [vmem:[#allocation16 + $0xf8] sm:$0xff]
    %v633 = vld [vmem:[#allocation16 + $0x100] sm:$0xff]
    %v634 = vld [vmem:[#allocation16 + $0x108] sm:$0xff]
    %v635 = vld [vmem:[#allocation16 + $0x110] sm:$0xff]
    %v636 = vld [vmem:[#allocation16 + $0x118] sm:$0xff]
    %v637 = vld [vmem:[#allocation16 + $0x120] sm:$0xff]
    %v638 = vld [vmem:[#allocation16 + $0x128] sm:$0xff]
    %v639 = vld [vmem:[#allocation16 + $0x130] sm:$0xff]
    %v640 = vld [vmem:[#allocation16 + $0x138] sm:$0xff]
    %v641 = vld [vmem:[#allocation16 + $0x140] sm:$0xff]
    %v642 = vld [vmem:[#allocation16 + $0x148] sm:$0xff]
    %v643 = vld [vmem:[#allocation16 + $0x150] sm:$0xff]
    %v644 = vld [vmem:[#allocation16 + $0x158] sm:$0xff]
    %v645 = vld [vmem:[#allocation16 + $0x160] sm:$0xff]
    %v646 = vld [vmem:[#allocation16 + $0x168] sm:$0xff]
    %v647 = vld [vmem:[#allocation16 + $0x170] sm:$0xff]
    %v648 = vld [vmem:[#allocation16 + $0x178] sm:$0xff]
    %v649 = vld [vmem:[#allocation18] sm:$0xff]
    %v650 = vld [vmem:[#allocation18 + $0x8] sm:$0xf]
    %v653 = vlaneseq
    %v654 = vshrl.u32 %v653, 7
    %v655 = vsub.s32 0, %v654
    %v656 = vrot.slane %v649, %v655
    %v657 = vlaneseq
    %v658 = vshrl.u32 %v657, 7
    %v659 = vsub.s32 1, %v658
    %v660 = vrot.slane %v649, %v659
    %v661 = vlaneseq
    %v662 = vshrl.u32 %v661, 7
    %v663 = vsub.s32 2, %v662
    %v664 = vrot.slane %v649, %v663
    %v665 = vlaneseq
    %v666 = vshrl.u32 %v665, 7
    %v667 = vsub.s32 3, %v666
    %v668 = vrot.slane %v649, %v667
    %v669 = vlaneseq
    %v670 = vshrl.u32 %v669, 7
    %v671 = vsub.s32 4, %v670
    %v672 = vrot.slane %v649, %v671
    %v673 = vlaneseq
    %v674 = vshrl.u32 %v673, 7
    %v675 = vsub.s32 5, %v674
    %v676 = vrot.slane %v649, %v675
    %v677 = vlaneseq
    %v678 = vshrl.u32 %v677, 7
    %v679 = vsub.s32 6, %v678
    %v680 = vrot.slane %v649, %v679
    %v681 = vlaneseq
    %v682 = vshrl.u32 %v681, 7
    %v683 = vsub.s32 7, %v682
    %v684 = vrot.slane %v649, %v683
    %v685 = vlaneseq
    %v686 = vshrl.u32 %v685, 7
    %v687 = vsub.s32 0, %v686
    %v688 = vrot.slane %v650, %v687
    %v689 = vlaneseq
    %v690 = vshrl.u32 %v689, 7
    %v691 = vsub.s32 1, %v690
    %v692 = vrot.slane %v650, %v691
    %v693 = vlaneseq
    %v694 = vshrl.u32 %v693, 7
    %v695 = vsub.s32 2, %v694
    %v696 = vrot.slane %v650, %v695
    %v697 = vlaneseq
    %v698 = vshrl.u32 %v697, 7
    %v699 = vsub.s32 3, %v698
    %v700 = vrot.slane %v650, %v699
    %v761 = vunpack.c.l.b16 %v601
    %v762 = vunpack.c.h.b16 %v601
    %v763 = vunpack.c.l.b16 %v602
    %v764 = vunpack.c.h.b16 %v602
    %v765 = vunpack.c.l.b16 %v603
    %v766 = vunpack.c.h.b16 %v603
    %v767 = vunpack.c.l.b16 %v604
    %v768 = vunpack.c.h.b16 %v604
    %v769 = vunpack.c.l.b16 %v605
    %v770 = vunpack.c.h.b16 %v605
    %v771 = vunpack.c.l.b16 %v606
    %v772 = vunpack.c.h.b16 %v606
    %v773 = vunpack.c.l.b16 %v607
    %v774 = vunpack.c.h.b16 %v607
    %v775 = vunpack.c.l.b16 %v608
    %v776 = vunpack.c.h.b16 %v608
    %v777 = vunpack.c.l.b16 %v609
    %v778 = vunpack.c.h.b16 %v609
    %v779 = vunpack.c.l.b16 %v610
    %v780 = vunpack.c.h.b16 %v610
    %v781 = vunpack.c.l.b16 %v611
    %v782 = vunpack.c.h.b16 %v611
    %v783 = vunpack.c.l.b16 %v612
    %v784 = vunpack.c.h.b16 %v612
    %v785 = vunpack.c.l.b16 %v613
    %v786 = vunpack.c.h.b16 %v613
    %v787 = vunpack.c.l.b16 %v614
    %v788 = vunpack.c.h.b16 %v614
    %v789 = vunpack.c.l.b16 %v615
    %v790 = vunpack.c.h.b16 %v615
    %v791 = vunpack.c.l.b16 %v616
    %v792 = vunpack.c.h.b16 %v616
    %v793 = vunpack.c.l.b16 %v617
    %v794 = vunpack.c.h.b16 %v617
    %v795 = vunpack.c.l.b16 %v618
    %v796 = vunpack.c.h.b16 %v618
    %v797 = vunpack.c.l.b16 %v619
    %v798 = vunpack.c.h.b16 %v619
    %v799 = vunpack.c.l.b16 %v620
    %v800 = vunpack.c.h.b16 %v620
    %v801 = vunpack.c.l.b16 %v621
    %v802 = vunpack.c.h.b16 %v621
    %v803 = vunpack.c.l.b16 %v622
    %v804 = vunpack.c.h.b16 %v622
    %v805 = vunpack.c.l.b16 %v623
    %v806 = vunpack.c.h.b16 %v623
    %v807 = vunpack.c.l.b16 %v624
    %v808 = vunpack.c.h.b16 %v624
    %v809 = vunpack.c.l.b16 %v625
    %v810 = vunpack.c.h.b16 %v625
    %v811 = vunpack.c.l.b16 %v626
    %v812 = vunpack.c.h.b16 %v626
    %v813 = vunpack.c.l.b16 %v627
    %v814 = vunpack.c.h.b16 %v627
    %v815 = vunpack.c.l.b16 %v628
    %v816 = vunpack.c.h.b16 %v628
    %v817 = vunpack.c.l.b16 %v629
    %v818 = vunpack.c.h.b16 %v629
    %v819 = vunpack.c.l.b16 %v630
    %v820 = vunpack.c.h.b16 %v630
    %v821 = vunpack.c.l.b16 %v631
    %v822 = vunpack.c.h.b16 %v631
    %v823 = vunpack.c.l.b16 %v632
    %v824 = vunpack.c.h.b16 %v632
    %v825 = vunpack.c.l.b16 %v633
    %v826 = vunpack.c.h.b16 %v633
    %v827 = vunpack.c.l.b16 %v634
    %v828 = vunpack.c.h.b16 %v634
    %v829 = vunpack.c.l.b16 %v635
    %v830 = vunpack.c.h.b16 %v635
    %v831 = vunpack.c.l.b16 %v636
    %v832 = vunpack.c.h.b16 %v636
    %v833 = vunpack.c.l.b16 %v637
    %v834 = vunpack.c.h.b16 %v637
    %v835 = vunpack.c.l.b16 %v638
    %v836 = vunpack.c.h.b16 %v638
    %v837 = vunpack.c.l.b16 %v639
    %v838 = vunpack.c.h.b16 %v639
    %v839 = vunpack.c.l.b16 %v640
    %v840 = vunpack.c.h.b16 %v640
    %v841 = vunpack.c.l.b16 %v641
    %v842 = vunpack.c.h.b16 %v641
    %v843 = vunpack.c.l.b16 %v642
    %v844 = vunpack.c.h.b16 %v642
    %v845 = vunpack.c.l.b16 %v643
    %v846 = vunpack.c.h.b16 %v643
    %v847 = vunpack.c.l.b16 %v644
    %v848 = vunpack.c.h.b16 %v644
    %v849 = vunpack.c.l.b16 %v645
    %v850 = vunpack.c.h.b16 %v645
    %v851 = vunpack.c.l.b16 %v646
    %v852 = vunpack.c.h.b16 %v646
    %v853 = vunpack.c.l.b16 %v647
    %v854 = vunpack.c.h.b16 %v647
    %v855 = vunpack.c.l.b16 %v648
    %v856 = vunpack.c.h.b16 %v648
    %v857 = vpack.c.b16 %v773, %v761
    %v858 = vpack.c.b16 %v774, %v762
    %v859 = vpack.c.b16 %v775, %v763
    %v860 = vpack.c.b16 %v776, %v764
    %v861 = vpack.c.b16 %v777, %v765
    %v862 = vpack.c.b16 %v778, %v766
    %v863 = vpack.c.b16 %v779, %v767
    %v864 = vpack.c.b16 %v780, %v768
    %v865 = vpack.c.b16 %v781, %v769
    %v866 = vpack.c.b16 %v782, %v770
    %v867 = vpack.c.b16 %v783, %v771
    %v868 = vpack.c.b16 %v784, %v772
    %v869 = vpack.c.b16 %v797, %v785
    %v870 = vpack.c.b16 %v798, %v786
    %v871 = vpack.c.b16 %v799, %v787
    %v872 = vpack.c.b16 %v800, %v788
    %v873 = vpack.c.b16 %v801, %v789
    %v874 = vpack.c.b16 %v802, %v790
    %v875 = vpack.c.b16 %v803, %v791
    %v876 = vpack.c.b16 %v804, %v792
    %v877 = vpack.c.b16 %v805, %v793
    %v878 = vpack.c.b16 %v806, %v794
    %v879 = vpack.c.b16 %v807, %v795
    %v880 = vpack.c.b16 %v808, %v796
    %v881 = vpack.c.b16 %v821, %v809
    %v882 = vpack.c.b16 %v822, %v810
    %v883 = vpack.c.b16 %v823, %v811
    %v884 = vpack.c.b16 %v824, %v812
    %v885 = vpack.c.b16 %v825, %v813
    %v886 = vpack.c.b16 %v826, %v814
    %v887 = vpack.c.b16 %v827, %v815
    %v888 = vpack.c.b16 %v828, %v816
    %v889 = vpack.c.b16 %v829, %v817
    %v890 = vpack.c.b16 %v830, %v818
    %v891 = vpack.c.b16 %v831, %v819
    %v892 = vpack.c.b16 %v832, %v820
    %v893 = vpack.c.b16 %v845, %v833
    %v894 = vpack.c.b16 %v846, %v834
    %v895 = vpack.c.b16 %v847, %v835
    %v896 = vpack.c.b16 %v848, %v836
    %v897 = vpack.c.b16 %v849, %v837
    %v898 = vpack.c.b16 %v850, %v838
    %v899 = vpack.c.b16 %v851, %v839
    %v900 = vpack.c.b16 %v852, %v840
    %v901 = vpack.c.b16 %v853, %v841
    %v902 = vpack.c.b16 %v854, %v842
    %v903 = vpack.c.b16 %v855, %v843
    %v904 = vpack.c.b16 %v856, %v844
    %vm953 = vcmask 523264
    %v955 = vsel %vm953, %v599, 0
    %v958 = vsel %vm953, %v600, 0
    %960 = vmatprep.subr.bf16.mxu0 %v858
    %961 = vmatpush1.bf16.msra.mxu0 %v857
    %962 = vmatprep.subr.bf16.mxu0 %v870
    %963 = vmatpush1.bf16.msra.mxu0 %v869
    %964 = vmatprep.subr.bf16.mxu0 %v882
    %965 = vmatpush1.bf16.msra.mxu0 %v881
    %966 = vmatprep.subr.bf16.mxu0 %v894
    %967 = vmatpush1.bf16.msra.mxu0 %v893
    %968 = vmatprep.subr.bf16.mxu0 0
    %969 = vmatpush1.bf16.msra.mxu0 0
    %970 = vmatprep.subr.bf16.mxu0 0
    %971 = vmatpush1.bf16.msra.mxu0 0
    %972 = vmatprep.subr.bf16.mxu0 0
    %973 = vmatpush1.bf16.msra.mxu0 0
    %974 = vmatprep.subr.bf16.mxu0 0
    %975 = vmatpush1.bf16.msra.mxu0 0
    %976 = vmatprep.subr.bf16.mxu0 0
    %977 = vmatpush1.bf16.msra.mxu0 0
    %978 = vmatprep.subr.bf16.mxu0 0
    %979 = vmatpush1.bf16.msra.mxu0 0
    %980 = vmatprep.subr.bf16.mxu0 0
    %981 = vmatpush1.bf16.msra.mxu0 0
    %982 = vmatprep.subr.bf16.mxu0 0
    %983 = vmatpush1.bf16.msra.mxu0 0
    %984 = vmatprep.subr.bf16.mxu0 0
    %985 = vmatpush1.bf16.msra.mxu0 0
    %986 = vmatprep.subr.bf16.mxu0 0
    %987 = vmatpush1.bf16.msra.mxu0 0
    %988 = vmatprep.subr.bf16.mxu0 0
    %989 = vmatpush1.bf16.msra.mxu0 0
    %990 = vmatprep.subr.bf16.mxu0 0
    %991 = vmatpush1.bf16.msra.mxu0 0
    %992 = vmatprep.mubr.bf16.mxu0 0
    %993 = vmatmul.mubr.bf16.gmra.mrb[0].mxu0 %v955
    %v994 = vpop.f32.mrb[0].mxu0
    %v995 = vadd.f32 %v656, %v994
    %v996 = vpop.f32.mrb[0].mxu0
    %v997 = vadd.f32 %v660, %v996
    %v998 = vpop.f32.mrb[0].mxu0
    %v999 = vadd.f32 %v656, %v998
    %v1000 = vpop.f32.mrb[0].mxu0
    %v1001 = vadd.f32 %v660, %v1000
    %1002 = vmatprep.mubr.bf16.mxu0 0
    %1003 = vmatmul.mubr.bf16.gmra.mrb[0].mxu0 %v958
    %v1004 = vpop.f32.mrb[0].mxu0
    %v1005 = vpop.f32.mrb[0].mxu0
    %v1006 = vpop.f32.mrb[0].mxu0
    %v1007 = vpop.f32.mrb[0].mxu0
    %1008 = vdwg.mxu0
    %1009 = vmatprep.subr.bf16.mxu0 %v860
    %1010 = vmatpush1.bf16.msra.mxu0 %v859
    %1011 = vmatprep.subr.bf16.mxu0 %v872
    %1012 = vmatpush1.bf16.msra.mxu0 %v871
    %1013 = vmatprep.subr.bf16.mxu0 %v884
    %1014 = vmatpush1.bf16.msra.mxu0 %v883
    %1015 = vmatprep.subr.bf16.mxu0 %v896
    %1016 = vmatpush1.bf16.msra.mxu0 %v895
    %1017 = vmatprep.subr.bf16.mxu0 0
    %1018 = vmatpush1.bf16.msra.mxu0 0
    %1019 = vmatprep.subr.bf16.mxu0 0
    %1020 = vmatpush1.bf16.msra.mxu0 0
    %1021 = vmatprep.subr.bf16.mxu0 0
    %1022 = vmatpush1.bf16.msra.mxu0 0
    %1023 = vmatprep.subr.bf16.mxu0 0
    %1024 = vmatpush1.bf16.msra.mxu0 0
    %1025 = vmatprep.subr.bf16.mxu0 0
    %1026 = vmatpush1.bf16.msra.mxu0 0
    %1027 = vmatprep.subr.bf16.mxu0 0
    %1028 = vmatpush1.bf16.msra.mxu0 0
    %1029 = vmatprep.subr.bf16.mxu0 0
    %1030 = vmatpush1.bf16.msra.mxu0 0
    %1031 = vmatprep.subr.bf16.mxu0 0
    %1032 = vmatpush1.bf16.msra.mxu0 0
    %1033 = vmatprep.subr.bf16.mxu0 0
    %1034 = vmatpush1.bf16.msra.mxu0 0
    %1035 = vmatprep.subr.bf16.mxu0 0
    %1036 = vmatpush1.bf16.msra.mxu0 0
    %1037 = vmatprep.subr.bf16.mxu0 0
    %1038 = vmatpush1.bf16.msra.mxu0 0
    %1039 = vmatprep.subr.bf16.mxu0 0
    %1040 = vmatpush1.bf16.msra.mxu0 0
    %1041 = vmatprep.mubr.bf16.mxu0 0
    %1042 = vmatmul.mubr.bf16.gmra.mrb[0].mxu0 %v955
    %v1043 = vpop.f32.mrb[0].mxu0
    %v1044 = vadd.f32 %v664, %v1043
    %v1045 = vpop.f32.mrb[0].mxu0
    %v1046 = vadd.f32 %v668, %v1045
    %v1047 = vpop.f32.mrb[0].mxu0
    %v1048 = vadd.f32 %v664, %v1047
    %v1049 = vpop.f32.mrb[0].mxu0
    %v1050 = vadd.f32 %v668, %v1049
    %1051 = vmatprep.mubr.bf16.mxu0 0
    %1052 = vmatmul.mubr.bf16.gmra.mrb[0].mxu0 %v958
    %v1053 = vpop.f32.mrb[0].mxu0
    %v1054 = vpop.f32.mrb[0].mxu0
    %v1055 = vpop.f32.mrb[0].mxu0
    %v1056 = vpop.f32.mrb[0].mxu0
    %1057 = vdwg.mxu0
    %1058 = vmatprep.subr.bf16.mxu0 %v862
    %1059 = vmatpush1.bf16.msra.mxu0 %v861
    %1060 = vmatprep.subr.bf16.mxu0 %v874
    %1061 = vmatpush1.bf16.msra.mxu0 %v873
    %1062 = vmatprep.subr.bf16.mxu0 %v886
    %1063 = vmatpush1.bf16.msra.mxu0 %v885
    %1064 = vmatprep.subr.bf16.mxu0 %v898
    %1065 = vmatpush1.bf16.msra.mxu0 %v897
    %1066 = vmatprep.subr.bf16.mxu0 0
    %1067 = vmatpush1.bf16.msra.mxu0 0
    %1068 = vmatprep.subr.bf16.mxu0 0
    %1069 = vmatpush1.bf16.msra.mxu0 0
    %1070 = vmatprep.subr.bf16.mxu0 0
    %1071 = vmatpush1.bf16.msra.mxu0 0
    %1072 = vmatprep.subr.bf16.mxu0 0
    %1073 = vmatpush1.bf16.msra.mxu0 0
    %1074 = vmatprep.subr.bf16.mxu0 0
    %1075 = vmatpush1.bf16.msra.mxu0 0
    %1076 = vmatprep.subr.bf16.mxu0 0
    %1077 = vmatpush1.bf16.msra.mxu0 0
    %1078 = vmatprep.subr.bf16.mxu0 0
    %1079 = vmatpush1.bf16.msra.mxu0 0
    %1080 = vmatprep.subr.bf16.mxu0 0
    %1081 = vmatpush1.bf16.msra.mxu0 0
    %1082 = vmatprep.subr.bf16.mxu0 0
    %1083 = vmatpush1.bf16.msra.mxu0 0
    %1084 = vmatprep.subr.bf16.mxu0 0
    %1085 = vmatpush1.bf16.msra.mxu0 0
    %1086 = vmatprep.subr.bf16.mxu0 0
    %1087 = vmatpush1.bf16.msra.mxu0 0
    %1088 = vmatprep.subr.bf16.mxu0 0
    %1089 = vmatpush1.bf16.msra.mxu0 0
    %1090 = vmatprep.mubr.bf16.mxu0 0
    %1091 = vmatmul.mubr.bf16.gmra.mrb[0].mxu0 %v955
    %v1092 = vpop.f32.mrb[0].mxu0
    %v1093 = vadd.f32 %v672, %v1092
    %v1094 = vpop.f32.mrb[0].mxu0
    %v1095 = vadd.f32 %v676, %v1094
    %v1096 = vpop.f32.mrb[0].mxu0
    %v1097 = vadd.f32 %v672, %v1096
    %v1098 = vpop.f32.mrb[0].mxu0
    %v1099 = vadd.f32 %v676, %v1098
    %1100 = vmatprep.mubr.bf16.mxu0 0
    %1101 = vmatmul.mubr.bf16.gmra.mrb[0].mxu0 %v958
    %v1102 = vpop.f32.mrb[0].mxu0
    %v1103 = vpop.f32.mrb[0].mxu0
    %v1104 = vpop.f32.mrb[0].mxu0
    %v1105 = vpop.f32.mrb[0].mxu0
    %1106 = vdwg.mxu0
    %1107 = vmatprep.subr.bf16.mxu0 %v864
    %1108 = vmatpush1.bf16.msra.mxu0 %v863
    %1109 = vmatprep.subr.bf16.mxu0 %v876
    %1110 = vmatpush1.bf16.msra.mxu0 %v875
    %1111 = vmatprep.subr.bf16.mxu0 %v888
    %1112 = vmatpush1.bf16.msra.mxu0 %v887
    %1113 = vmatprep.subr.bf16.mxu0 %v900
    %1114 = vmatpush1.bf16.msra.mxu0 %v899
    %1115 = vmatprep.subr.bf16.mxu0 0
    %1116 = vmatpush1.bf16.msra.mxu0 0
    %1117 = vmatprep.subr.bf16.mxu0 0
    %1118 = vmatpush1.bf16.msra.mxu0 0
    %1119 = vmatprep.subr.bf16.mxu0 0
    %1120 = vmatpush1.bf16.msra.mxu0 0
    %1121 = vmatprep.subr.bf16.mxu0 0
    %1122 = vmatpush1.bf16.msra.mxu0 0
    %1123 = vmatprep.subr.bf16.mxu0 0
    %1124 = vmatpush1.bf16.msra.mxu0 0
    %1125 = vmatprep.subr.bf16.mxu0 0
    %1126 = vmatpush1.bf16.msra.mxu0 0
    %1127 = vmatprep.subr.bf16.mxu0 0
    %1128 = vmatpush1.bf16.msra.mxu0 0
    %1129 = vmatprep.subr.bf16.mxu0 0
    %1130 = vmatpush1.bf16.msra.mxu0 0
    %1131 = vmatprep.subr.bf16.mxu0 0
    %1132 = vmatpush1.bf16.msra.mxu0 0
    %1133 = vmatprep.subr.bf16.mxu0 0
    %1134 = vmatpush1.bf16.msra.mxu0 0
    %1135 = vmatprep.subr.bf16.mxu0 0
    %1136 = vmatpush1.bf16.msra.mxu0 0
    %1137 = vmatprep.subr.bf16.mxu0 0
    %1138 = vmatpush1.bf16.msra.mxu0 0
    %1139 = vmatprep.mubr.bf16.mxu0 0
    %1140 = vmatmul.mubr.bf16.gmra.mrb[0].mxu0 %v955
    %v1141 = vpop.f32.mrb[0].mxu0
    %v1142 = vadd.f32 %v680, %v1141
    %v1143 = vpop.f32.mrb[0].mxu0
    %v1144 = vadd.f32 %v684, %v1143
    %v1145 = vpop.f32.mrb[0].mxu0
    %v1146 = vadd.f32 %v680, %v1145
    %v1147 = vpop.f32.mrb[0].mxu0
    %v1148 = vadd.f32 %v684, %v1147
    %1149 = vmatprep.mubr.bf16.mxu0 0
    %1150 = vmatmul.mubr.bf16.gmra.mrb[0].mxu0 %v958
    %v1151 = vpop.f32.mrb[0].mxu0
    %v1152 = vpop.f32.mrb[0].mxu0
    %v1153 = vpop.f32.mrb[0].mxu0
    %v1154 = vpop.f32.mrb[0].mxu0
    %1155 = vdwg.mxu0
    %1156 = vmatprep.subr.bf16.mxu0 %v866
    %1157 = vmatpush1.bf16.msra.mxu0 %v865
    %1158 = vmatprep.subr.bf16.mxu0 %v878
    %1159 = vmatpush1.bf16.msra.mxu0 %v877
    %1160 = vmatprep.subr.bf16.mxu0 %v890
    %1161 = vmatpush1.bf16.msra.mxu0 %v889
    %1162 = vmatprep.subr.bf16.mxu0 %v902
    %1163 = vmatpush1.bf16.msra.mxu0 %v901
    %1164 = vmatprep.subr.bf16.mxu0 0
    %1165 = vmatpush1.bf16.msra.mxu0 0
    %1166 = vmatprep.subr.bf16.mxu0 0
    %1167 = vmatpush1.bf16.msra.mxu0 0
    %1168 = vmatprep.subr.bf16.mxu0 0
    %1169 = vmatpush1.bf16.msra.mxu0 0
    %1170 = vmatprep.subr.bf16.mxu0 0
    %1171 = vmatpush1.bf16.msra.mxu0 0
    %1172 = vmatprep.subr.bf16.mxu0 0
    %1173 = vmatpush1.bf16.msra.mxu0 0
    %1174 = vmatprep.subr.bf16.mxu0 0
    %1175 = vmatpush1.bf16.msra.mxu0 0
    %1176 = vmatprep.subr.bf16.mxu0 0
    %1177 = vmatpush1.bf16.msra.mxu0 0
    %1178 = vmatprep.subr.bf16.mxu0 0
    %1179 = vmatpush1.bf16.msra.mxu0 0
    %1180 = vmatprep.subr.bf16.mxu0 0
    %1181 = vmatpush1.bf16.msra.mxu0 0
    %1182 = vmatprep.subr.bf16.mxu0 0
    %1183 = vmatpush1.bf16.msra.mxu0 0
    %1184 = vmatprep.subr.bf16.mxu0 0
    %1185 = vmatpush1.bf16.msra.mxu0 0
    %1186 = vmatprep.subr.bf16.mxu0 0
    %1187 = vmatpush1.bf16.msra.mxu0 0
    %1188 = vmatprep.mubr.bf16.mxu0 0
    %1189 = vmatmul.mubr.bf16.gmra.mrb[0].mxu0 %v955
    %v1190 = vpop.f32.mrb[0].mxu0
    %v1191 = vpop.f32.mrb[0].mxu0
    %v1192 = vpop.f32.mrb[0].mxu0
    %v1193 = vpop.f32.mrb[0].mxu0
    %1194 = vmatprep.mubr.bf16.mxu0 0
    %1195 = vmatmul.mubr.bf16.gmra.mrb[0].mxu0 %v958
    %v1196 = vpop.f32.mrb[0].mxu0
    %v1197 = vadd.f32 %v688, %v1196
    %v1198 = vpop.f32.mrb[0].mxu0
    %v1199 = vadd.f32 %v692, %v1198
    %v1200 = vpop.f32.mrb[0].mxu0
    %v1201 = vpop.f32.mrb[0].mxu0
    %1202 = vdwg.mxu0
    %1203 = vmatprep.subr.bf16.mxu0 %v868
    %1204 = vmatpush1.bf16.msra.mxu0 %v867
    %1205 = vmatprep.subr.bf16.mxu0 %v880
    %1206 = vmatpush1.bf16.msra.mxu0 %v879
    %1207 = vmatprep.subr.bf16.mxu0 %v892
    %1208 = vmatpush1.bf16.msra.mxu0 %v891
    %1209 = vmatprep.subr.bf16.mxu0 %v904
    %1210 = vmatpush1.bf16.msra.mxu0 %v903
    %1211 = vmatprep.subr.bf16.mxu0 0
    %1212 = vmatpush1.bf16.msra.mxu0 0
    %1213 = vmatprep.subr.bf16.mxu0 0
    %1214 = vmatpush1.bf16.msra.mxu0 0
    %1215 = vmatprep.subr.bf16.mxu0 0
    %1216 = vmatpush1.bf16.msra.mxu0 0
    %1217 = vmatprep.subr.bf16.mxu0 0
    %1218 = vmatpush1.bf16.msra.mxu0 0
    %1219 = vmatprep.subr.bf16.mxu0 0
    %1220 = vmatpush1.bf16.msra.mxu0 0
    %1221 = vmatprep.subr.bf16.mxu0 0
    %1222 = vmatpush1.bf16.msra.mxu0 0
    %1223 = vmatprep.subr.bf16.mxu0 0
    %1224 = vmatpush1.bf16.msra.mxu0 0
    %1225 = vmatprep.subr.bf16.mxu0 0
    %1226 = vmatpush1.bf16.msra.mxu0 0
    %1227 = vmatprep.subr.bf16.mxu0 0
    %1228 = vmatpush1.bf16.msra.mxu0 0
    %1229 = vmatprep.subr.bf16.mxu0 0
    %1230 = vmatpush1.bf16.msra.mxu0 0
    %1231 = vmatprep.subr.bf16.mxu0 0
    %1232 = vmatpush1.bf16.msra.mxu0 0
    %1233 = vmatprep.subr.bf16.mxu0 0
    %1234 = vmatpush1.bf16.msra.mxu0 0
    %1235 = vmatprep.mubr.bf16.mxu0 0
    %1236 = vmatmul.mubr.bf16.gmra.mrb[0].mxu0 %v955
    %v1237 = vpop.f32.mrb[0].mxu0
    %v1238 = vpop.f32.mrb[0].mxu0
    %v1239 = vpop.f32.mrb[0].mxu0
    %v1240 = vpop.f32.mrb[0].mxu0
    %1241 = vmatprep.mubr.bf16.mxu0 0
    %1242 = vmatmul.mubr.bf16.gmra.mrb[0].mxu0 %v958
    %v1243 = vpop.f32.mrb[0].mxu0
    %v1244 = vadd.f32 %v696, %v1243
    %v1245 = vpop.f32.mrb[0].mxu0
    %v1246 = vadd.f32 %v700, %v1245
    %v1247 = vpop.f32.mrb[0].mxu0
    %v1248 = vpop.f32.mrb[0].mxu0
    %1249 = vdwg.mxu0
    %v1254 = vcombine.low %v1197, %v1199
    %v1255 = vcombine.low %v1244, %v1246
    %v1257 = vunpack.c.l.s4 1983009808
    %v1258 = vunpack.c.0.s8 %v1257
    %v1259 = vlaneseq
    %v1260 = vshrl.u32 %v1259, 7
    %v1261 = vsub.s32 %v1258, %v1260
    %v1262 = vrot.slane %v1254, %v1261
    %v1264 = vunpack.c.l.s4 1983009808
    %v1265 = vunpack.c.0.s8 %v1264
    %v1266 = vlaneseq
    %v1267 = vshrl.u32 %v1266, 7
    %v1268 = vsub.s32 %v1265, %v1267
    %v1269 = vrot.slane %v1255, %v1268
    %v1270 = vcombine.low %v1262, %v1269
    %1272 = vst [vmem:[#allocation34] sm:$0xff] %v1270
    %v1273 = vmax.f32 %v995, 0.0
    %v1274 = vmax.f32 %v997, 0.0
    %v1275 = vmax.f32 %v1044, 0.0
    %v1276 = vmax.f32 %v1046, 0.0
    %v1277 = vmax.f32 %v1093, 0.0
    %v1278 = vmax.f32 %v1095, 0.0
    %v1279 = vmax.f32 %v1142, 0.0
    %v1280 = vmax.f32 %v1144, 0.0
    %v1281 = vmax.f32 %v999, 0.0
    %v1282 = vmax.f32 %v1001, 0.0
    %v1283 = vmax.f32 %v1048, 0.0
    %v1284 = vmax.f32 %v1050, 0.0
    %v1285 = vmax.f32 %v1097, 0.0
    %v1286 = vmax.f32 %v1099, 0.0
    %v1287 = vmax.f32 %v1146, 0.0
    %v1288 = vmax.f32 %v1148, 0.0
    %s1289 = smul.u32 4, 128
    %s1290 = smul.u32 %s1289, 6
    %s1291 = sshll.u32 %s1290, 4
    %1292 = dma.done [#allocation12], %s1291
    %v1293 = vpack.c.bf16 %v1281, %v1273
    %v1294 = vpack.c.bf16 %v1282, %v1274
    %v1295 = vpack.c.bf16 %v1283, %v1275
    %v1296 = vpack.c.bf16 %v1284, %v1276
    %v1297 = vpack.c.bf16 %v1285, %v1277
    %v1298 = vpack.c.bf16 %v1286, %v1278
    %v1299 = vpack.c.bf16 %v1287, %v1279
    %v1300 = vpack.c.bf16 %v1288, %v1280
    %v1301 = vld [vmem:[#allocation2] sm:$0xff]
    %v1302 = vld [vmem:[#allocation2 + $0x8] sm:$0xff]
    %v1303 = vld [vmem:[#allocation2 + $0x10] sm:$0xff]
    %v1304 = vld [vmem:[#allocation2 + $0x18] sm:$0xff]
    %v1305 = vld [vmem:[#allocation2 + $0x20] sm:$0xff]
    %v1306 = vld [vmem:[#allocation2 + $0x28] sm:$0xff]
    %v1307 = vld [vmem:[#allocation2 + $0x30] sm:$0xff]
    %v1308 = vld [vmem:[#allocation2 + $0x38] sm:$0xff]
    %v1309 = vld [vmem:[#allocation2 + $0x40] sm:$0xff]
    %v1310 = vld [vmem:[#allocation2 + $0x48] sm:$0xff]
    %v1311 = vld [vmem:[#allocation2 + $0x50] sm:$0xff]
    %v1312 = vld [vmem:[#allocation2 + $0x58] sm:$0xff]
    %v1313 = vld [vmem:[#allocation2 + $0x60] sm:$0xff]
    %v1314 = vld [vmem:[#allocation2 + $0x68] sm:$0xff]
    %v1315 = vld [vmem:[#allocation2 + $0x70] sm:$0xff]
    %v1316 = vld [vmem:[#allocation2 + $0x78] sm:$0xff]
    %v1317 = vld [vmem:[#allocation2 + $0x80] sm:$0xff]
    %v1318 = vld [vmem:[#allocation2 + $0x88] sm:$0xff]
    %v1319 = vld [vmem:[#allocation2 + $0x90] sm:$0xff]
    %v1320 = vld [vmem:[#allocation2 + $0x98] sm:$0xff]
    %v1321 = vld [vmem:[#allocation2 + $0xa0] sm:$0xff]
    %v1322 = vld [vmem:[#allocation2 + $0xa8] sm:$0xff]
    %v1323 = vld [vmem:[#allocation2 + $0xb0] sm:$0xff]
    %v1324 = vld [vmem:[#allocation2 + $0xb8] sm:$0xff]
    %v1325 = vld [vmem:[#allocation2 + $0xc0] sm:$0xff]
    %v1326 = vld [vmem:[#allocation2 + $0xc8] sm:$0xff]
    %v1327 = vld [vmem:[#allocation2 + $0xd0] sm:$0xff]
    %v1328 = vld [vmem:[#allocation2 + $0xd8] sm:$0xff]
    %v1329 = vld [vmem:[#allocation2 + $0xe0] sm:$0xff]
    %v1330 = vld [vmem:[#allocation2 + $0xe8] sm:$0xff]
    %v1331 = vld [vmem:[#allocation2 + $0xf0] sm:$0xff]
    %v1332 = vld [vmem:[#allocation2 + $0xf8] sm:$0xff]
    %v1333 = vld [vmem:[#allocation2 + $0x100] sm:$0xff]
    %v1334 = vld [vmem:[#allocation2 + $0x108] sm:$0xff]
    %v1335 = vld [vmem:[#allocation2 + $0x110] sm:$0xff]
    %v1336 = vld [vmem:[#allocation2 + $0x118] sm:$0xff]
    %v1337 = vld [vmem:[#allocation2 + $0x120] sm:$0xff]
    %v1338 = vld [vmem:[#allocation2 + $0x128] sm:$0xff]
    %v1339 = vld [vmem:[#allocation2 + $0x130] sm:$0xff]
    %v1340 = vld [vmem:[#allocation2 + $0x138] sm:$0xff]
    %v1341 = vld [vmem:[#allocation2 + $0x140] sm:$0xff]
    %v1342 = vld [vmem:[#allocation2 + $0x148] sm:$0xff]
    %v1343 = vld [vmem:[#allocation2 + $0x150] sm:$0xff]
    %v1344 = vld [vmem:[#allocation2 + $0x158] sm:$0xff]
    %v1345 = vld [vmem:[#allocation2 + $0x160] sm:$0xff]
    %v1346 = vld [vmem:[#allocation2 + $0x168] sm:$0xff]
    %v1347 = vld [vmem:[#allocation2 + $0x170] sm:$0xff]
    %v1348 = vld [vmem:[#allocation2 + $0x178] sm:$0xff]
    %v1349 = vld [vmem:[#allocation2 + $0x180] sm:$0xff]
    %v1350 = vld [vmem:[#allocation2 + $0x188] sm:$0xff]
    %v1351 = vld [vmem:[#allocation2 + $0x190] sm:$0xff]
    %v1352 = vld [vmem:[#allocation2 + $0x198] sm:$0xff]
    %v1353 = vld [vmem:[#allocation2 + $0x1a0] sm:$0xff]
    %v1354 = vld [vmem:[#allocation2 + $0x1a8] sm:$0xff]
    %v1355 = vld [vmem:[#allocation2 + $0x1b0] sm:$0xff]
    %v1356 = vld [vmem:[#allocation2 + $0x1b8] sm:$0xff]
    %v1357 = vld [vmem:[#allocation2 + $0x1c0] sm:$0xff]
    %v1358 = vld [vmem:[#allocation2 + $0x1c8] sm:$0xff]
    %v1359 = vld [vmem:[#allocation2 + $0x1d0] sm:$0xff]
    %v1360 = vld [vmem:[#allocation2 + $0x1d8] sm:$0xff]
    %v1361 = vld [vmem:[#allocation2 + $0x1e0] sm:$0xff]
    %v1362 = vld [vmem:[#allocation2 + $0x1e8] sm:$0xff]
    %v1363 = vld [vmem:[#allocation2 + $0x1f0] sm:$0xff]
    %v1364 = vld [vmem:[#allocation2 + $0x1f8] sm:$0xff]
    %v1365 = vld [vmem:[#allocation2 + $0x200] sm:$0xff]
    %v1366 = vld [vmem:[#allocation2 + $0x208] sm:$0xff]
    %v1367 = vld [vmem:[#allocation2 + $0x210] sm:$0xff]
    %v1368 = vld [vmem:[#allocation2 + $0x218] sm:$0xff]
    %v1369 = vld [vmem:[#allocation2 + $0x220] sm:$0xff]
    %v1370 = vld [vmem:[#allocation2 + $0x228] sm:$0xff]
    %v1371 = vld [vmem:[#allocation2 + $0x230] sm:$0xff]
    %v1372 = vld [vmem:[#allocation2 + $0x238] sm:$0xff]
    %v1373 = vld [vmem:[#allocation2 + $0x240] sm:$0xff]
    %v1374 = vld [vmem:[#allocation2 + $0x248] sm:$0xff]
    %v1375 = vld [vmem:[#allocation2 + $0x250] sm:$0xff]
    %v1376 = vld [vmem:[#allocation2 + $0x258] sm:$0xff]
    %v1377 = vld [vmem:[#allocation2 + $0x260] sm:$0xff]
    %v1378 = vld [vmem:[#allocation2 + $0x268] sm:$0xff]
    %v1379 = vld [vmem:[#allocation2 + $0x270] sm:$0xff]
    %v1380 = vld [vmem:[#allocation2 + $0x278] sm:$0xff]
    %v1381 = vld [vmem:[#allocation2 + $0x280] sm:$0xff]
    %v1382 = vld [vmem:[#allocation2 + $0x288] sm:$0xff]
    %v1383 = vld [vmem:[#allocation2 + $0x290] sm:$0xff]
    %v1384 = vld [vmem:[#allocation2 + $0x298] sm:$0xff]
    %v1385 = vld [vmem:[#allocation2 + $0x2a0] sm:$0xff]
    %v1386 = vld [vmem:[#allocation2 + $0x2a8] sm:$0xff]
    %v1387 = vld [vmem:[#allocation2 + $0x2b0] sm:$0xff]
    %v1388 = vld [vmem:[#allocation2 + $0x2b8] sm:$0xff]
    %v1389 = vld [vmem:[#allocation2 + $0x2c0] sm:$0xff]
    %v1390 = vld [vmem:[#allocation2 + $0x2c8] sm:$0xff]
    %v1391 = vld [vmem:[#allocation2 + $0x2d0] sm:$0xff]
    %v1392 = vld [vmem:[#allocation2 + $0x2d8] sm:$0xff]
    %v1393 = vld [vmem:[#allocation2 + $0x2e0] sm:$0xff]
    %v1394 = vld [vmem:[#allocation2 + $0x2e8] sm:$0xff]
    %v1395 = vld [vmem:[#allocation2 + $0x2f0] sm:$0xff]
    %v1396 = vld [vmem:[#allocation2 + $0x2f8] sm:$0xff]
    %v1397 = vld [vmem:[#allocation2 + $0x300] sm:$0xff]
    %v1398 = vld [vmem:[#allocation2 + $0x308] sm:$0xff]
    %v1399 = vld [vmem:[#allocation2 + $0x310] sm:$0xff]
    %v1400 = vld [vmem:[#allocation2 + $0x318] sm:$0xff]
    %v1401 = vld [vmem:[#allocation2 + $0x320] sm:$0xff]
    %v1402 = vld [vmem:[#allocation2 + $0x328] sm:$0xff]
    %v1403 = vld [vmem:[#allocation2 + $0x330] sm:$0xff]
    %v1404 = vld [vmem:[#allocation2 + $0x338] sm:$0xff]
    %v1405 = vld [vmem:[#allocation2 + $0x340] sm:$0xff]
    %v1406 = vld [vmem:[#allocation2 + $0x348] sm:$0xff]
    %v1407 = vld [vmem:[#allocation2 + $0x350] sm:$0xff]
    %v1408 = vld [vmem:[#allocation2 + $0x358] sm:$0xff]
    %v1409 = vld [vmem:[#allocation2 + $0x360] sm:$0xff]
    %v1410 = vld [vmem:[#allocation2 + $0x368] sm:$0xff]
    %v1411 = vld [vmem:[#allocation2 + $0x370] sm:$0xff]
    %v1412 = vld [vmem:[#allocation2 + $0x378] sm:$0xff]
    %v1413 = vld [vmem:[#allocation2 + $0x380] sm:$0xff]
    %v1414 = vld [vmem:[#allocation2 + $0x388] sm:$0xff]
    %v1415 = vld [vmem:[#allocation2 + $0x390] sm:$0xff]
    %v1416 = vld [vmem:[#allocation2 + $0x398] sm:$0xff]
    %v1417 = vld [vmem:[#allocation2 + $0x3a0] sm:$0xff]
    %v1418 = vld [vmem:[#allocation2 + $0x3a8] sm:$0xff]
    %v1419 = vld [vmem:[#allocation2 + $0x3b0] sm:$0xff]
    %v1420 = vld [vmem:[#allocation2 + $0x3b8] sm:$0xff]
    %v1421 = vld [vmem:[#allocation2 + $0x3c0] sm:$0xff]
    %v1422 = vld [vmem:[#allocation2 + $0x3c8] sm:$0xff]
    %v1423 = vld [vmem:[#allocation2 + $0x3d0] sm:$0xff]
    %v1424 = vld [vmem:[#allocation2 + $0x3d8] sm:$0xff]
    %v1425 = vld [vmem:[#allocation2 + $0x3e0] sm:$0xff]
    %v1426 = vld [vmem:[#allocation2 + $0x3e8] sm:$0xff]
    %v1427 = vld [vmem:[#allocation2 + $0x3f0] sm:$0xff]
    %v1428 = vld [vmem:[#allocation2 + $0x3f8] sm:$0xff]
    %v1429 = vld [vmem:[#allocation2 + $0x400] sm:$0xff]
    %v1430 = vld [vmem:[#allocation2 + $0x408] sm:$0xff]
    %v1431 = vld [vmem:[#allocation2 + $0x410] sm:$0xff]
    %v1432 = vld [vmem:[#allocation2 + $0x418] sm:$0xff]
    %v1433 = vld [vmem:[#allocation2 + $0x420] sm:$0xff]
    %v1434 = vld [vmem:[#allocation2 + $0x428] sm:$0xff]
    %v1435 = vld [vmem:[#allocation2 + $0x430] sm:$0xff]
    %v1436 = vld [vmem:[#allocation2 + $0x438] sm:$0xff]
    %v1437 = vld [vmem:[#allocation2 + $0x440] sm:$0xff]
    %v1438 = vld [vmem:[#allocation2 + $0x448] sm:$0xff]
    %v1439 = vld [vmem:[#allocation2 + $0x450] sm:$0xff]
    %v1440 = vld [vmem:[#allocation2 + $0x458] sm:$0xff]
    %v1441 = vld [vmem:[#allocation2 + $0x460] sm:$0xff]
    %v1442 = vld [vmem:[#allocation2 + $0x468] sm:$0xff]
    %v1443 = vld [vmem:[#allocation2 + $0x470] sm:$0xff]
    %v1444 = vld [vmem:[#allocation2 + $0x478] sm:$0xff]
    %v1445 = vld [vmem:[#allocation2 + $0x480] sm:$0xff]
    %v1446 = vld [vmem:[#allocation2 + $0x488] sm:$0xff]
    %v1447 = vld [vmem:[#allocation2 + $0x490] sm:$0xff]
    %v1448 = vld [vmem:[#allocation2 + $0x498] sm:$0xff]
    %v1449 = vld [vmem:[#allocation2 + $0x4a0] sm:$0xff]
    %v1450 = vld [vmem:[#allocation2 + $0x4a8] sm:$0xff]
    %v1451 = vld [vmem:[#allocation2 + $0x4b0] sm:$0xff]
    %v1452 = vld [vmem:[#allocation2 + $0x4b8] sm:$0xff]
    %v1453 = vld [vmem:[#allocation2 + $0x4c0] sm:$0xff]
    %v1454 = vld [vmem:[#allocation2 + $0x4c8] sm:$0xff]
    %v1455 = vld [vmem:[#allocation2 + $0x4d0] sm:$0xff]
    %v1456 = vld [vmem:[#allocation2 + $0x4d8] sm:$0xff]
    %v1457 = vld [vmem:[#allocation2 + $0x4e0] sm:$0xff]
    %v1458 = vld [vmem:[#allocation2 + $0x4e8] sm:$0xff]
    %v1459 = vld [vmem:[#allocation2 + $0x4f0] sm:$0xff]
    %v1460 = vld [vmem:[#allocation2 + $0x4f8] sm:$0xff]
    %v1461 = vld [vmem:[#allocation2 + $0x500] sm:$0xff]
    %v1462 = vld [vmem:[#allocation2 + $0x508] sm:$0xff]
    %v1463 = vld [vmem:[#allocation2 + $0x510] sm:$0xff]
    %v1464 = vld [vmem:[#allocation2 + $0x518] sm:$0xff]
    %v1465 = vld [vmem:[#allocation2 + $0x520] sm:$0xff]
    %v1466 = vld [vmem:[#allocation2 + $0x528] sm:$0xff]
    %v1467 = vld [vmem:[#allocation2 + $0x530] sm:$0xff]
    %v1468 = vld [vmem:[#allocation2 + $0x538] sm:$0xff]
    %v1469 = vld [vmem:[#allocation2 + $0x540] sm:$0xff]
    %v1470 = vld [vmem:[#allocation2 + $0x548] sm:$0xff]
    %v1471 = vld [vmem:[#allocation2 + $0x550] sm:$0xff]
    %v1472 = vld [vmem:[#allocation2 + $0x558] sm:$0xff]
    %v1473 = vld [vmem:[#allocation2 + $0x560] sm:$0xff]
    %v1474 = vld [vmem:[#allocation2 + $0x568] sm:$0xff]
    %v1475 = vld [vmem:[#allocation2 + $0x570] sm:$0xff]
    %v1476 = vld [vmem:[#allocation2 + $0x578] sm:$0xff]
    %v1477 = vld [vmem:[#allocation2 + $0x580] sm:$0xff]
    %v1478 = vld [vmem:[#allocation2 + $0x588] sm:$0xff]
    %v1479 = vld [vmem:[#allocation2 + $0x590] sm:$0xff]
    %v1480 = vld [vmem:[#allocation2 + $0x598] sm:$0xff]
    %v1481 = vld [vmem:[#allocation2 + $0x5a0] sm:$0xff]
    %v1482 = vld [vmem:[#allocation2 + $0x5a8] sm:$0xff]
    %v1483 = vld [vmem:[#allocation2 + $0x5b0] sm:$0xff]
    %v1484 = vld [vmem:[#allocation2 + $0x5b8] sm:$0xff]
    %v1485 = vld [vmem:[#allocation2 + $0x5c0] sm:$0xff]
    %v1486 = vld [vmem:[#allocation2 + $0x5c8] sm:$0xff]
    %v1487 = vld [vmem:[#allocation2 + $0x5d0] sm:$0xff]
    %v1488 = vld [vmem:[#allocation2 + $0x5d8] sm:$0xff]
    %v1489 = vld [vmem:[#allocation2 + $0x5e0] sm:$0xff]
    %v1490 = vld [vmem:[#allocation2 + $0x5e8] sm:$0xff]
    %v1491 = vld [vmem:[#allocation2 + $0x5f0] sm:$0xff]
    %v1492 = vld [vmem:[#allocation2 + $0x5f8] sm:$0xff]
    %v1493 = vld [vmem:[#allocation2 + $0x600] sm:$0xff]
    %v1494 = vld [vmem:[#allocation2 + $0x608] sm:$0xff]
    %v1495 = vld [vmem:[#allocation2 + $0x610] sm:$0xff]
    %v1496 = vld [vmem:[#allocation2 + $0x618] sm:$0xff]
    %v1497 = vld [vmem:[#allocation2 + $0x620] sm:$0xff]
    %v1498 = vld [vmem:[#allocation2 + $0x628] sm:$0xff]
    %v1499 = vld [vmem:[#allocation2 + $0x630] sm:$0xff]
    %v1500 = vld [vmem:[#allocation2 + $0x638] sm:$0xff]
    %v1501 = vld [vmem:[#allocation2 + $0x640] sm:$0xff]
    %v1502 = vld [vmem:[#allocation2 + $0x648] sm:$0xff]
    %v1503 = vld [vmem:[#allocation2 + $0x650] sm:$0xff]
    %v1504 = vld [vmem:[#allocation2 + $0x658] sm:$0xff]
    %v1505 = vld [vmem:[#allocation2 + $0x660] sm:$0xff]
    %v1506 = vld [vmem:[#allocation2 + $0x668] sm:$0xff]
    %v1507 = vld [vmem:[#allocation2 + $0x670] sm:$0xff]
    %v1508 = vld [vmem:[#allocation2 + $0x678] sm:$0xff]
    %v1509 = vld [vmem:[#allocation2 + $0x680] sm:$0xff]
    %v1510 = vld [vmem:[#allocation2 + $0x688] sm:$0xff]
    %v1511 = vld [vmem:[#allocation2 + $0x690] sm:$0xff]
    %v1512 = vld [vmem:[#allocation2 + $0x698] sm:$0xff]
    %v1513 = vld [vmem:[#allocation2 + $0x6a0] sm:$0xff]
    %v1514 = vld [vmem:[#allocation2 + $0x6a8] sm:$0xff]
    %v1515 = vld [vmem:[#allocation2 + $0x6b0] sm:$0xff]
    %v1516 = vld [vmem:[#allocation2 + $0x6b8] sm:$0xff]
    %v1517 = vld [vmem:[#allocation2 + $0x6c0] sm:$0xff]
    %v1518 = vld [vmem:[#allocation2 + $0x6c8] sm:$0xff]
    %v1519 = vld [vmem:[#allocation2 + $0x6d0] sm:$0xff]
    %v1520 = vld [vmem:[#allocation2 + $0x6d8] sm:$0xff]
    %v1521 = vld [vmem:[#allocation2 + $0x6e0] sm:$0xff]
    %v1522 = vld [vmem:[#allocation2 + $0x6e8] sm:$0xff]
    %v1523 = vld [vmem:[#allocation2 + $0x6f0] sm:$0xff]
    %v1524 = vld [vmem:[#allocation2 + $0x6f8] sm:$0xff]
    %v1525 = vld [vmem:[#allocation2 + $0x700] sm:$0xff]
    %v1526 = vld [vmem:[#allocation2 + $0x708] sm:$0xff]
    %v1527 = vld [vmem:[#allocation2 + $0x710] sm:$0xff]
    %v1528 = vld [vmem:[#allocation2 + $0x718] sm:$0xff]
    %v1529 = vld [vmem:[#allocation2 + $0x720] sm:$0xff]
    %v1530 = vld [vmem:[#allocation2 + $0x728] sm:$0xff]
    %v1531 = vld [vmem:[#allocation2 + $0x730] sm:$0xff]
    %v1532 = vld [vmem:[#allocation2 + $0x738] sm:$0xff]
    %v1533 = vld [vmem:[#allocation2 + $0x740] sm:$0xff]
    %v1534 = vld [vmem:[#allocation2 + $0x748] sm:$0xff]
    %v1535 = vld [vmem:[#allocation2 + $0x750] sm:$0xff]
    %v1536 = vld [vmem:[#allocation2 + $0x758] sm:$0xff]
    %v1537 = vld [vmem:[#allocation2 + $0x760] sm:$0xff]
    %v1538 = vld [vmem:[#allocation2 + $0x768] sm:$0xff]
    %v1539 = vld [vmem:[#allocation2 + $0x770] sm:$0xff]
    %v1540 = vld [vmem:[#allocation2 + $0x778] sm:$0xff]
    %v1541 = vld [vmem:[#allocation2 + $0x780] sm:$0xff]
    %v1542 = vld [vmem:[#allocation2 + $0x788] sm:$0xff]
    %v1543 = vld [vmem:[#allocation2 + $0x790] sm:$0xff]
    %v1544 = vld [vmem:[#allocation2 + $0x798] sm:$0xff]
    %v1545 = vld [vmem:[#allocation2 + $0x7a0] sm:$0xff]
    %v1546 = vld [vmem:[#allocation2 + $0x7a8] sm:$0xff]
    %v1547 = vld [vmem:[#allocation2 + $0x7b0] sm:$0xff]
    %v1548 = vld [vmem:[#allocation2 + $0x7b8] sm:$0xff]
    %v1549 = vld [vmem:[#allocation2 + $0x7c0] sm:$0xff]
    %v1550 = vld [vmem:[#allocation2 + $0x7c8] sm:$0xff]
    %v1551 = vld [vmem:[#allocation2 + $0x7d0] sm:$0xff]
    %v1552 = vld [vmem:[#allocation2 + $0x7d8] sm:$0xff]
    %v1553 = vld [vmem:[#allocation2 + $0x7e0] sm:$0xff]
    %v1554 = vld [vmem:[#allocation2 + $0x7e8] sm:$0xff]
    %v1555 = vld [vmem:[#allocation2 + $0x7f0] sm:$0xff]
    %v1556 = vld [vmem:[#allocation2 + $0x7f8] sm:$0xff]
    %v1557 = vld [vmem:[#allocation2 + $0x800] sm:$0xff]
    %v1558 = vld [vmem:[#allocation2 + $0x808] sm:$0xff]
    %v1559 = vld [vmem:[#allocation2 + $0x810] sm:$0xff]
    %v1560 = vld [vmem:[#allocation2 + $0x818] sm:$0xff]
    %v1561 = vld [vmem:[#allocation2 + $0x820] sm:$0xff]
    %v1562 = vld [vmem:[#allocation2 + $0x828] sm:$0xff]
    %v1563 = vld [vmem:[#allocation2 + $0x830] sm:$0xff]
    %v1564 = vld [vmem:[#allocation2 + $0x838] sm:$0xff]
    %v1565 = vld [vmem:[#allocation2 + $0x840] sm:$0xff]
    %v1566 = vld [vmem:[#allocation2 + $0x848] sm:$0xff]
    %v1567 = vld [vmem:[#allocation2 + $0x850] sm:$0xff]
    %v1568 = vld [vmem:[#allocation2 + $0x858] sm:$0xff]
    %v1569 = vld [vmem:[#allocation2 + $0x860] sm:$0xff]
    %v1570 = vld [vmem:[#allocation2 + $0x868] sm:$0xff]
    %v1571 = vld [vmem:[#allocation2 + $0x870] sm:$0xff]
    %v1572 = vld [vmem:[#allocation2 + $0x878] sm:$0xff]
    %v1573 = vld [vmem:[#allocation2 + $0x880] sm:$0xff]
    %v1574 = vld [vmem:[#allocation2 + $0x888] sm:$0xff]
    %v1575 = vld [vmem:[#allocation2 + $0x890] sm:$0xff]
    %v1576 = vld [vmem:[#allocation2 + $0x898] sm:$0xff]
    %v1577 = vld [vmem:[#allocation2 + $0x8a0] sm:$0xff]
    %v1578 = vld [vmem:[#allocation2 + $0x8a8] sm:$0xff]
    %v1579 = vld [vmem:[#allocation2 + $0x8b0] sm:$0xff]
    %v1580 = vld [vmem:[#allocation2 + $0x8b8] sm:$0xff]
    %v1581 = vld [vmem:[#allocation2 + $0x8c0] sm:$0xff]
    %v1582 = vld [vmem:[#allocation2 + $0x8c8] sm:$0xff]
    %v1583 = vld [vmem:[#allocation2 + $0x8d0] sm:$0xff]
    %v1584 = vld [vmem:[#allocation2 + $0x8d8] sm:$0xff]
    %v1585 = vld [vmem:[#allocation2 + $0x8e0] sm:$0xff]
    %v1586 = vld [vmem:[#allocation2 + $0x8e8] sm:$0xff]
    %v1587 = vld [vmem:[#allocation2 + $0x8f0] sm:$0xff]
    %v1588 = vld [vmem:[#allocation2 + $0x8f8] sm:$0xff]
    %v1589 = vld [vmem:[#allocation2 + $0x900] sm:$0xff]
    %v1590 = vld [vmem:[#allocation2 + $0x908] sm:$0xff]
    %v1591 = vld [vmem:[#allocation2 + $0x910] sm:$0xff]
    %v1592 = vld [vmem:[#allocation2 + $0x918] sm:$0xff]
    %v1593 = vld [vmem:[#allocation2 + $0x920] sm:$0xff]
    %v1594 = vld [vmem:[#allocation2 + $0x928] sm:$0xff]
    %v1595 = vld [vmem:[#allocation2 + $0x930] sm:$0xff]
    %v1596 = vld [vmem:[#allocation2 + $0x938] sm:$0xff]
    %v1597 = vld [vmem:[#allocation2 + $0x940] sm:$0xff]
    %v1598 = vld [vmem:[#allocation2 + $0x948] sm:$0xff]
    %v1599 = vld [vmem:[#allocation2 + $0x950] sm:$0xff]
    %v1600 = vld [vmem:[#allocation2 + $0x958] sm:$0xff]
    %v1601 = vld [vmem:[#allocation2 + $0x960] sm:$0xff]
    %v1602 = vld [vmem:[#allocation2 + $0x968] sm:$0xff]
    %v1603 = vld [vmem:[#allocation2 + $0x970] sm:$0xff]
    %v1604 = vld [vmem:[#allocation2 + $0x978] sm:$0xff]
    %v1605 = vld [vmem:[#allocation2 + $0x980] sm:$0xff]
    %v1606 = vld [vmem:[#allocation2 + $0x988] sm:$0xff]
    %v1607 = vld [vmem:[#allocation2 + $0x990] sm:$0xff]
    %v1608 = vld [vmem:[#allocation2 + $0x998] sm:$0xff]
    %v1609 = vld [vmem:[#allocation2 + $0x9a0] sm:$0xff]
    %v1610 = vld [vmem:[#allocation2 + $0x9a8] sm:$0xff]
    %v1611 = vld [vmem:[#allocation2 + $0x9b0] sm:$0xff]
    %v1612 = vld [vmem:[#allocation2 + $0x9b8] sm:$0xff]
    %v1613 = vld [vmem:[#allocation2 + $0x9c0] sm:$0xff]
    %v1614 = vld [vmem:[#allocation2 + $0x9c8] sm:$0xff]
    %v1615 = vld [vmem:[#allocation2 + $0x9d0] sm:$0xff]
    %v1616 = vld [vmem:[#allocation2 + $0x9d8] sm:$0xff]
    %v1617 = vld [vmem:[#allocation2 + $0x9e0] sm:$0xff]
    %v1618 = vld [vmem:[#allocation2 + $0x9e8] sm:$0xff]
    %v1619 = vld [vmem:[#allocation2 + $0x9f0] sm:$0xff]
    %v1620 = vld [vmem:[#allocation2 + $0x9f8] sm:$0xff]
    %v1621 = vld [vmem:[#allocation2 + $0xa00] sm:$0xff]
    %v1622 = vld [vmem:[#allocation2 + $0xa08] sm:$0xff]
    %v1623 = vld [vmem:[#allocation2 + $0xa10] sm:$0xff]
    %v1624 = vld [vmem:[#allocation2 + $0xa18] sm:$0xff]
    %v1625 = vld [vmem:[#allocation2 + $0xa20] sm:$0xff]
    %v1626 = vld [vmem:[#allocation2 + $0xa28] sm:$0xff]
    %v1627 = vld [vmem:[#allocation2 + $0xa30] sm:$0xff]
    %v1628 = vld [vmem:[#allocation2 + $0xa38] sm:$0xff]
    %v1629 = vld [vmem:[#allocation2 + $0xa40] sm:$0xff]
    %v1630 = vld [vmem:[#allocation2 + $0xa48] sm:$0xff]
    %v1631 = vld [vmem:[#allocation2 + $0xa50] sm:$0xff]
    %v1632 = vld [vmem:[#allocation2 + $0xa58] sm:$0xff]
    %v1633 = vld [vmem:[#allocation2 + $0xa60] sm:$0xff]
    %v1634 = vld [vmem:[#allocation2 + $0xa68] sm:$0xff]
    %v1635 = vld [vmem:[#allocation2 + $0xa70] sm:$0xff]
    %v1636 = vld [vmem:[#allocation2 + $0xa78] sm:$0xff]
    %v1637 = vld [vmem:[#allocation2 + $0xa80] sm:$0xff]
    %v1638 = vld [vmem:[#allocation2 + $0xa88] sm:$0xff]
    %v1639 = vld [vmem:[#allocation2 + $0xa90] sm:$0xff]
    %v1640 = vld [vmem:[#allocation2 + $0xa98] sm:$0xff]
    %v1641 = vld [vmem:[#allocation2 + $0xaa0] sm:$0xff]
    %v1642 = vld [vmem:[#allocation2 + $0xaa8] sm:$0xff]
    %v1643 = vld [vmem:[#allocation2 + $0xab0] sm:$0xff]
    %v1644 = vld [vmem:[#allocation2 + $0xab8] sm:$0xff]
    %v1645 = vld [vmem:[#allocation2 + $0xac0] sm:$0xff]
    %v1646 = vld [vmem:[#allocation2 + $0xac8] sm:$0xff]
    %v1647 = vld [vmem:[#allocation2 + $0xad0] sm:$0xff]
    %v1648 = vld [vmem:[#allocation2 + $0xad8] sm:$0xff]
    %v1649 = vld [vmem:[#allocation2 + $0xae0] sm:$0xff]
    %v1650 = vld [vmem:[#allocation2 + $0xae8] sm:$0xff]
    %v1651 = vld [vmem:[#allocation2 + $0xaf0] sm:$0xff]
    %v1652 = vld [vmem:[#allocation2 + $0xaf8] sm:$0xff]
    %v1653 = vld [vmem:[#allocation2 + $0xb00] sm:$0xff]
    %v1654 = vld [vmem:[#allocation2 + $0xb08] sm:$0xff]
    %v1655 = vld [vmem:[#allocation2 + $0xb10] sm:$0xff]
    %v1656 = vld [vmem:[#allocation2 + $0xb18] sm:$0xff]
    %v1657 = vld [vmem:[#allocation2 + $0xb20] sm:$0xff]
    %v1658 = vld [vmem:[#allocation2 + $0xb28] sm:$0xff]
    %v1659 = vld [vmem:[#allocation2 + $0xb30] sm:$0xff]
    %v1660 = vld [vmem:[#allocation2 + $0xb38] sm:$0xff]
    %v1661 = vld [vmem:[#allocation2 + $0xb40] sm:$0xff]
    %v1662 = vld [vmem:[#allocation2 + $0xb48] sm:$0xff]
    %v1663 = vld [vmem:[#allocation2 + $0xb50] sm:$0xff]
    %v1664 = vld [vmem:[#allocation2 + $0xb58] sm:$0xff]
    %v1665 = vld [vmem:[#allocation2 + $0xb60] sm:$0xff]
    %v1666 = vld [vmem:[#allocation2 + $0xb68] sm:$0xff]
    %v1667 = vld [vmem:[#allocation2 + $0xb70] sm:$0xff]
    %v1668 = vld [vmem:[#allocation2 + $0xb78] sm:$0xff]
    %v1669 = vld [vmem:[#allocation2 + $0xb80] sm:$0xff]
    %v1670 = vld [vmem:[#allocation2 + $0xb88] sm:$0xff]
    %v1671 = vld [vmem:[#allocation2 + $0xb90] sm:$0xff]
    %v1672 = vld [vmem:[#allocation2 + $0xb98] sm:$0xff]
    %v1673 = vld [vmem:[#allocation2 + $0xba0] sm:$0xff]
    %v1674 = vld [vmem:[#allocation2 + $0xba8] sm:$0xff]
    %v1675 = vld [vmem:[#allocation2 + $0xbb0] sm:$0xff]
    %v1676 = vld [vmem:[#allocation2 + $0xbb8] sm:$0xff]
    %v1677 = vld [vmem:[#allocation2 + $0xbc0] sm:$0xff]
    %v1678 = vld [vmem:[#allocation2 + $0xbc8] sm:$0xff]
    %v1679 = vld [vmem:[#allocation2 + $0xbd0] sm:$0xff]
    %v1680 = vld [vmem:[#allocation2 + $0xbd8] sm:$0xff]
    %v1681 = vld [vmem:[#allocation2 + $0xbe0] sm:$0xff]
    %v1682 = vld [vmem:[#allocation2 + $0xbe8] sm:$0xff]
    %v1683 = vld [vmem:[#allocation2 + $0xbf0] sm:$0xff]
    %v1684 = vld [vmem:[#allocation2 + $0xbf8] sm:$0xff]
    %v1685 = vld [vmem:[#allocation19] sm:$0x3f]
    %v1687 = vlaneseq
    %v1688 = vshrl.u32 %v1687, 7
    %v1689 = vsub.s32 0, %v1688
    %v1690 = vrot.slane %v1685, %v1689
    %v1691 = vlaneseq
    %v1692 = vshrl.u32 %v1691, 7
    %v1693 = vsub.s32 1, %v1692
    %v1694 = vrot.slane %v1685, %v1693
    %v1695 = vlaneseq
    %v1696 = vshrl.u32 %v1695, 7
    %v1697 = vsub.s32 2, %v1696
    %v1698 = vrot.slane %v1685, %v1697
    %v1699 = vlaneseq
    %v1700 = vshrl.u32 %v1699, 7
    %v1701 = vsub.s32 3, %v1700
    %v1702 = vrot.slane %v1685, %v1701
    %v1703 = vlaneseq
    %v1704 = vshrl.u32 %v1703, 7
    %v1705 = vsub.s32 4, %v1704
    %v1706 = vrot.slane %v1685, %v1705
    %v1707 = vlaneseq
    %v1708 = vshrl.u32 %v1707, 7
    %v1709 = vsub.s32 5, %v1708
    %v1710 = vrot.slane %v1685, %v1709
    %1717 = vmatprep.subr.bf16.mxu0 %v1302
    %1718 = vmatpush1.bf16.msra.mxu0 %v1301
    %1719 = vmatprep.subr.bf16.mxu0 %v1308
    %1720 = vmatpush1.bf16.msra.mxu0 %v1307
    %1721 = vmatprep.subr.bf16.mxu0 %v1314
    %1722 = vmatpush1.bf16.msra.mxu0 %v1313
    %1723 = vmatprep.subr.bf16.mxu0 %v1320
    %1724 = vmatpush1.bf16.msra.mxu0 %v1319
    %1725 = vmatprep.subr.bf16.mxu0 %v1326
    %1726 = vmatpush1.bf16.msra.mxu0 %v1325
    %1727 = vmatprep.subr.bf16.mxu0 %v1332
    %1728 = vmatpush1.bf16.msra.mxu0 %v1331
    %1729 = vmatprep.subr.bf16.mxu0 %v1338
    %1730 = vmatpush1.bf16.msra.mxu0 %v1337
    %1731 = vmatprep.subr.bf16.mxu0 %v1344
    %1732 = vmatpush1.bf16.msra.mxu0 %v1343
    %1733 = vmatprep.subr.bf16.mxu0 %v1350
    %1734 = vmatpush1.bf16.msra.mxu0 %v1349
    %1735 = vmatprep.subr.bf16.mxu0 %v1356
    %1736 = vmatpush1.bf16.msra.mxu0 %v1355
    %1737 = vmatprep.subr.bf16.mxu0 %v1362
    %1738 = vmatpush1.bf16.msra.mxu0 %v1361
    %1739 = vmatprep.subr.bf16.mxu0 %v1368
    %1740 = vmatpush1.bf16.msra.mxu0 %v1367
    %1741 = vmatprep.subr.bf16.mxu0 %v1374
    %1742 = vmatpush1.bf16.msra.mxu0 %v1373
    %1743 = vmatprep.subr.bf16.mxu0 %v1380
    %1744 = vmatpush1.bf16.msra.mxu0 %v1379
    %1745 = vmatprep.subr.bf16.mxu0 %v1386
    %1746 = vmatpush1.bf16.msra.mxu0 %v1385
    %1747 = vmatprep.subr.bf16.mxu0 %v1392
    %1748 = vmatpush1.bf16.msra.mxu0 %v1391
    %1749 = vmatprep.mubr.bf16.mxu0 %v1294
    %1750 = vmatmul.mubr.bf16.gmra.mrb[0].mxu0 %v1293
    %v1751 = vpop.f32.mrb[0].mxu0
    %v1752 = vadd.f32 %v1690, %v1751
    %v1753 = vpop.f32.mrb[0].mxu0
    %v1754 = vadd.f32 %v1694, %v1753
    %v1755 = vpop.f32.mrb[0].mxu0
    %v1756 = vadd.f32 %v1690, %v1755
    %v1757 = vpop.f32.mrb[0].mxu0
    %v1758 = vadd.f32 %v1694, %v1757
    %1759 = vdwg.mxu0
    %1760 = vmatprep.subr.bf16.mxu0 %v1398
    %1761 = vmatpush1.bf16.msra.mxu0 %v1397
    %1762 = vmatprep.subr.bf16.mxu0 %v1404
    %1763 = vmatpush1.bf16.msra.mxu0 %v1403
    %1764 = vmatprep.subr.bf16.mxu0 %v1410
    %1765 = vmatpush1.bf16.msra.mxu0 %v1409
    %1766 = vmatprep.subr.bf16.mxu0 %v1416
    %1767 = vmatpush1.bf16.msra.mxu0 %v1415
    %1768 = vmatprep.subr.bf16.mxu0 %v1422
    %1769 = vmatpush1.bf16.msra.mxu0 %v1421
    %1770 = vmatprep.subr.bf16.mxu0 %v1428
    %1771 = vmatpush1.bf16.msra.mxu0 %v1427
    %1772 = vmatprep.subr.bf16.mxu0 %v1434
    %1773 = vmatpush1.bf16.msra.mxu0 %v1433
    %1774 = vmatprep.subr.bf16.mxu0 %v1440
    %1775 = vmatpush1.bf16.msra.mxu0 %v1439
    %1776 = vmatprep.subr.bf16.mxu0 %v1446
    %1777 = vmatpush1.bf16.msra.mxu0 %v1445
    %1778 = vmatprep.subr.bf16.mxu0 %v1452
    %1779 = vmatpush1.bf16.msra.mxu0 %v1451
    %1780 = vmatprep.subr.bf16.mxu0 %v1458
    %1781 = vmatpush1.bf16.msra.mxu0 %v1457
    %1782 = vmatprep.subr.bf16.mxu0 %v1464
    %1783 = vmatpush1.bf16.msra.mxu0 %v1463
    %1784 = vmatprep.subr.bf16.mxu0 %v1470
    %1785 = vmatpush1.bf16.msra.mxu0 %v1469
    %1786 = vmatprep.subr.bf16.mxu0 %v1476
    %1787 = vmatpush1.bf16.msra.mxu0 %v1475
    %1788 = vmatprep.subr.bf16.mxu0 %v1482
    %1789 = vmatpush1.bf16.msra.mxu0 %v1481
    %1790 = vmatprep.subr.bf16.mxu0 %v1488
    %1791 = vmatpush1.bf16.msra.mxu0 %v1487
    %1792 = vmatprep.mubr.bf16.mxu0 %v1296
    %1793 = vmatmul.mubr.bf16.gmra.mrb[0].mxu0 %v1295
    %v1794 = vpop.f32.mrb[0].mxu0
    %v1795 = vadd.f32 %v1752, %v1794
    %v1796 = vpop.f32.mrb[0].mxu0
    %v1797 = vadd.f32 %v1754, %v1796
    %v1798 = vpop.f32.mrb[0].mxu0
    %v1799 = vadd.f32 %v1756, %v1798
    %v1800 = vpop.f32.mrb[0].mxu0
    %v1801 = vadd.f32 %v1758, %v1800
    %1802 = vdwg.mxu0
    %1803 = vmatprep.subr.bf16.mxu0 %v1494
    %1804 = vmatpush1.bf16.msra.mxu0 %v1493
    %1805 = vmatprep.subr.bf16.mxu0 %v1500
    %1806 = vmatpush1.bf16.msra.mxu0 %v1499
    %1807 = vmatprep.subr.bf16.mxu0 %v1506
    %1808 = vmatpush1.bf16.msra.mxu0 %v1505
    %1809 = vmatprep.subr.bf16.mxu0 %v1512
    %1810 = vmatpush1.bf16.msra.mxu0 %v1511
    %1811 = vmatprep.subr.bf16.mxu0 %v1518
    %1812 = vmatpush1.bf16.msra.mxu0 %v1517
    %1813 = vmatprep.subr.bf16.mxu0 %v1524
    %1814 = vmatpush1.bf16.msra.mxu0 %v1523
    %1815 = vmatprep.subr.bf16.mxu0 %v1530
    %1816 = vmatpush1.bf16.msra.mxu0 %v1529
    %1817 = vmatprep.subr.bf16.mxu0 %v1536
    %1818 = vmatpush1.bf16.msra.mxu0 %v1535
    %1819 = vmatprep.subr.bf16.mxu0 %v1542
    %1820 = vmatpush1.bf16.msra.mxu0 %v1541
    %1821 = vmatprep.subr.bf16.mxu0 %v1548
    %1822 = vmatpush1.bf16.msra.mxu0 %v1547
    %1823 = vmatprep.subr.bf16.mxu0 %v1554
    %1824 = vmatpush1.bf16.msra.mxu0 %v1553
    %1825 = vmatprep.subr.bf16.mxu0 %v1560
    %1826 = vmatpush1.bf16.msra.mxu0 %v1559
    %1827 = vmatprep.subr.bf16.mxu0 %v1566
    %1828 = vmatpush1.bf16.msra.mxu0 %v1565
    %1829 = vmatprep.subr.bf16.mxu0 %v1572
    %1830 = vmatpush1.bf16.msra.mxu0 %v1571
    %1831 = vmatprep.subr.bf16.mxu0 %v1578
    %1832 = vmatpush1.bf16.msra.mxu0 %v1577
    %1833 = vmatprep.subr.bf16.mxu0 %v1584
    %1834 = vmatpush1.bf16.msra.mxu0 %v1583
    %1835 = vmatprep.mubr.bf16.mxu0 %v1298
    %1836 = vmatmul.mubr.bf16.gmra.mrb[0].mxu0 %v1297
    %v1837 = vpop.f32.mrb[0].mxu0
    %v1838 = vadd.f32 %v1795, %v1837
    %v1839 = vpop.f32.mrb[0].mxu0
    %v1840 = vadd.f32 %v1797, %v1839
    %v1841 = vpop.f32.mrb[0].mxu0
    %v1842 = vadd.f32 %v1799, %v1841
    %v1843 = vpop.f32.mrb[0].mxu0
    %v1844 = vadd.f32 %v1801, %v1843
    %1845 = vdwg.mxu0
    %1846 = vmatprep.subr.bf16.mxu0 %v1590
    %1847 = vmatpush1.bf16.msra.mxu0 %v1589
    %1848 = vmatprep.subr.bf16.mxu0 %v1596
    %1849 = vmatpush1.bf16.msra.mxu0 %v1595
    %1850 = vmatprep.subr.bf16.mxu0 %v1602
    %1851 = vmatpush1.bf16.msra.mxu0 %v1601
    %1852 = vmatprep.subr.bf16.mxu0 %v1608
    %1853 = vmatpush1.bf16.msra.mxu0 %v1607
    %1854 = vmatprep.subr.bf16.mxu0 %v1614
    %1855 = vmatpush1.bf16.msra.mxu0 %v1613
    %1856 = vmatprep.subr.bf16.mxu0 %v1620
    %1857 = vmatpush1.bf16.msra.mxu0 %v1619
    %1858 = vmatprep.subr.bf16.mxu0 %v1626
    %1859 = vmatpush1.bf16.msra.mxu0 %v1625
    %1860 = vmatprep.subr.bf16.mxu0 %v1632
    %1861 = vmatpush1.bf16.msra.mxu0 %v1631
    %1862 = vmatprep.subr.bf16.mxu0 %v1638
    %1863 = vmatpush1.bf16.msra.mxu0 %v1637
    %1864 = vmatprep.subr.bf16.mxu0 %v1644
    %1865 = vmatpush1.bf16.msra.mxu0 %v1643
    %1866 = vmatprep.subr.bf16.mxu0 %v1650
    %1867 = vmatpush1.bf16.msra.mxu0 %v1649
    %1868 = vmatprep.subr.bf16.mxu0 %v1656
    %1869 = vmatpush1.bf16.msra.mxu0 %v1655
    %1870 = vmatprep.subr.bf16.mxu0 %v1662
    %1871 = vmatpush1.bf16.msra.mxu0 %v1661
    %1872 = vmatprep.subr.bf16.mxu0 %v1668
    %1873 = vmatpush1.bf16.msra.mxu0 %v1667
    %1874 = vmatprep.subr.bf16.mxu0 %v1674
    %1875 = vmatpush1.bf16.msra.mxu0 %v1673
    %1876 = vmatprep.subr.bf16.mxu0 %v1680
    %1877 = vmatpush1.bf16.msra.mxu0 %v1679
    %1878 = vmatprep.mubr.bf16.mxu0 %v1300
    %1879 = vmatmul.mubr.bf16.gmra.mrb[0].mxu0 %v1299
    %v1880 = vpop.f32.mrb[0].mxu0
    %v1881 = vadd.f32 %v1838, %v1880
    %v1882 = vpop.f32.mrb[0].mxu0
    %v1883 = vadd.f32 %v1840, %v1882
    %v1884 = vpop.f32.mrb[0].mxu0
    %v1885 = vadd.f32 %v1842, %v1884
    %v1886 = vpop.f32.mrb[0].mxu0
    %v1887 = vadd.f32 %v1844, %v1886
    %1888 = vdwg.mxu0
    %1889 = vmatprep.subr.bf16.mxu0 %v1304
    %1890 = vmatpush1.bf16.msra.mxu0 %v1303
    %1891 = vmatprep.subr.bf16.mxu0 %v1310
    %1892 = vmatpush1.bf16.msra.mxu0 %v1309
    %1893 = vmatprep.subr.bf16.mxu0 %v1316
    %1894 = vmatpush1.bf16.msra.mxu0 %v1315
    %1895 = vmatprep.subr.bf16.mxu0 %v1322
    %1896 = vmatpush1.bf16.msra.mxu0 %v1321
    %1897 = vmatprep.subr.bf16.mxu0 %v1328
    %1898 = vmatpush1.bf16.msra.mxu0 %v1327
    %1899 = vmatprep.subr.bf16.mxu0 %v1334
    %1900 = vmatpush1.bf16.msra.mxu0 %v1333
    %1901 = vmatprep.subr.bf16.mxu0 %v1340
    %1902 = vmatpush1.bf16.msra.mxu0 %v1339
    %1903 = vmatprep.subr.bf16.mxu0 %v1346
    %1904 = vmatpush1.bf16.msra.mxu0 %v1345
    %1905 = vmatprep.subr.bf16.mxu0 %v1352
    %1906 = vmatpush1.bf16.msra.mxu0 %v1351
    %1907 = vmatprep.subr.bf16.mxu0 %v1358
    %1908 = vmatpush1.bf16.msra.mxu0 %v1357
    %1909 = vmatprep.subr.bf16.mxu0 %v1364
    %1910 = vmatpush1.bf16.msra.mxu0 %v1363
    %1911 = vmatprep.subr.bf16.mxu0 %v1370
    %1912 = vmatpush1.bf16.msra.mxu0 %v1369
    %1913 = vmatprep.subr.bf16.mxu0 %v1376
    %1914 = vmatpush1.bf16.msra.mxu0 %v1375
    %1915 = vmatprep.subr.bf16.mxu0 %v1382
    %1916 = vmatpush1.bf16.msra.mxu0 %v1381
    %1917 = vmatprep.subr.bf16.mxu0 %v1388
    %1918 = vmatpush1.bf16.msra.mxu0 %v1387
    %1919 = vmatprep.subr.bf16.mxu0 %v1394
    %1920 = vmatpush1.bf16.msra.mxu0 %v1393
    %1921 = vmatprep.mubr.bf16.mxu0 %v1294
    %1922 = vmatmul.mubr.bf16.gmra.mrb[0].mxu0 %v1293
    %v1923 = vpop.f32.mrb[0].mxu0
    %v1924 = vadd.f32 %v1698, %v1923
    %v1925 = vpop.f32.mrb[0].mxu0
    %v1926 = vadd.f32 %v1702, %v1925
    %v1927 = vpop.f32.mrb[0].mxu0
    %v1928 = vadd.f32 %v1698, %v1927
    %v1929 = vpop.f32.mrb[0].mxu0
    %v1930 = vadd.f32 %v1702, %v1929
    %1931 = vdwg.mxu0
    %1932 = vmatprep.subr.bf16.mxu0 %v1400
    %1933 = vmatpush1.bf16.msra.mxu0 %v1399
    %1934 = vmatprep.subr.bf16.mxu0 %v1406
    %1935 = vmatpush1.bf16.msra.mxu0 %v1405
    %1936 = vmatprep.subr.bf16.mxu0 %v1412
    %1937 = vmatpush1.bf16.msra.mxu0 %v1411
    %1938 = vmatprep.subr.bf16.mxu0 %v1418
    %1939 = vmatpush1.bf16.msra.mxu0 %v1417
    %1940 = vmatprep.subr.bf16.mxu0 %v1424
    %1941 = vmatpush1.bf16.msra.mxu0 %v1423
    %1942 = vmatprep.subr.bf16.mxu0 %v1430
    %1943 = vmatpush1.bf16.msra.mxu0 %v1429
    %1944 = vmatprep.subr.bf16.mxu0 %v1436
    %1945 = vmatpush1.bf16.msra.mxu0 %v1435
    %1946 = vmatprep.subr.bf16.mxu0 %v1442
    %1947 = vmatpush1.bf16.msra.mxu0 %v1441
    %1948 = vmatprep.subr.bf16.mxu0 %v1448
    %1949 = vmatpush1.bf16.msra.mxu0 %v1447
    %1950 = vmatprep.subr.bf16.mxu0 %v1454
    %1951 = vmatpush1.bf16.msra.mxu0 %v1453
    %1952 = vmatprep.subr.bf16.mxu0 %v1460
    %1953 = vmatpush1.bf16.msra.mxu0 %v1459
    %1954 = vmatprep.subr.bf16.mxu0 %v1466
    %1955 = vmatpush1.bf16.msra.mxu0 %v1465
    %1956 = vmatprep.subr.bf16.mxu0 %v1472
    %1957 = vmatpush1.bf16.msra.mxu0 %v1471
    %1958 = vmatprep.subr.bf16.mxu0 %v1478
    %1959 = vmatpush1.bf16.msra.mxu0 %v1477
    %1960 = vmatprep.subr.bf16.mxu0 %v1484
    %1961 = vmatpush1.bf16.msra.mxu0 %v1483
    %1962 = vmatprep.subr.bf16.mxu0 %v1490
    %1963 = vmatpush1.bf16.msra.mxu0 %v1489
    %1964 = vmatprep.mubr.bf16.mxu0 %v1296
    %1965 = vmatmul.mubr.bf16.gmra.mrb[0].mxu0 %v1295
    %v1966 = vpop.f32.mrb[0].mxu0
    %v1967 = vadd.f32 %v1924, %v1966
    %v1968 = vpop.f32.mrb[0].mxu0
    %v1969 = vadd.f32 %v1926, %v1968
    %v1970 = vpop.f32.mrb[0].mxu0
    %v1971 = vadd.f32 %v1928, %v1970
    %v1972 = vpop.f32.mrb[0].mxu0
    %v1973 = vadd.f32 %v1930, %v1972
    %1974 = vdwg.mxu0
    %1975 = vmatprep.subr.bf16.mxu0 %v1496
    %1976 = vmatpush1.bf16.msra.mxu0 %v1495
    %1977 = vmatprep.subr.bf16.mxu0 %v1502
    %1978 = vmatpush1.bf16.msra.mxu0 %v1501
    %1979 = vmatprep.subr.bf16.mxu0 %v1508
    %1980 = vmatpush1.bf16.msra.mxu0 %v1507
    %1981 = vmatprep.subr.bf16.mxu0 %v1514
    %1982 = vmatpush1.bf16.msra.mxu0 %v1513
    %1983 = vmatprep.subr.bf16.mxu0 %v1520
    %1984 = vmatpush1.bf16.msra.mxu0 %v1519
    %1985 = vmatprep.subr.bf16.mxu0 %v1526
    %1986 = vmatpush1.bf16.msra.mxu0 %v1525
    %1987 = vmatprep.subr.bf16.mxu0 %v1532
    %1988 = vmatpush1.bf16.msra.mxu0 %v1531
    %1989 = vmatprep.subr.bf16.mxu0 %v1538
    %1990 = vmatpush1.bf16.msra.mxu0 %v1537
    %1991 = vmatprep.subr.bf16.mxu0 %v1544
    %1992 = vmatpush1.bf16.msra.mxu0 %v1543
    %1993 = vmatprep.subr.bf16.mxu0 %v1550
    %1994 = vmatpush1.bf16.msra.mxu0 %v1549
    %1995 = vmatprep.subr.bf16.mxu0 %v1556
    %1996 = vmatpush1.bf16.msra.mxu0 %v1555
    %1997 = vmatprep.subr.bf16.mxu0 %v1562
    %1998 = vmatpush1.bf16.msra.mxu0 %v1561
    %1999 = vmatprep.subr.bf16.mxu0 %v1568
    %2000 = vmatpush1.bf16.msra.mxu0 %v1567
    %2001 = vmatprep.subr.bf16.mxu0 %v1574
    %2002 = vmatpush1.bf16.msra.mxu0 %v1573
    %2003 = vmatprep.subr.bf16.mxu0 %v1580
    %2004 = vmatpush1.bf16.msra.mxu0 %v1579
    %2005 = vmatprep.subr.bf16.mxu0 %v1586
    %2006 = vmatpush1.bf16.msra.mxu0 %v1585
    %2007 = vmatprep.mubr.bf16.mxu0 %v1298
    %2008 = vmatmul.mubr.bf16.gmra.mrb[0].mxu0 %v1297
    %v2009 = vpop.f32.mrb[0].mxu0
    %v2010 = vadd.f32 %v1967, %v2009
    %v2011 = vpop.f32.mrb[0].mxu0
    %v2012 = vadd.f32 %v1969, %v2011
    %v2013 = vpop.f32.mrb[0].mxu0
    %v2014 = vadd.f32 %v1971, %v2013
    %v2015 = vpop.f32.mrb[0].mxu0
    %v2016 = vadd.f32 %v1973, %v2015
    %2017 = vdwg.mxu0
    %2018 = vmatprep.subr.bf16.mxu0 %v1592
    %2019 = vmatpush1.bf16.msra.mxu0 %v1591
    %2020 = vmatprep.subr.bf16.mxu0 %v1598
    %2021 = vmatpush1.bf16.msra.mxu0 %v1597
    %2022 = vmatprep.subr.bf16.mxu0 %v1604
    %2023 = vmatpush1.bf16.msra.mxu0 %v1603
    %2024 = vmatprep.subr.bf16.mxu0 %v1610
    %2025 = vmatpush1.bf16.msra.mxu0 %v1609
    %2026 = vmatprep.subr.bf16.mxu0 %v1616
    %2027 = vmatpush1.bf16.msra.mxu0 %v1615
    %2028 = vmatprep.subr.bf16.mxu0 %v1622
    %2029 = vmatpush1.bf16.msra.mxu0 %v1621
    %2030 = vmatprep.subr.bf16.mxu0 %v1628
    %2031 = vmatpush1.bf16.msra.mxu0 %v1627
    %2032 = vmatprep.subr.bf16.mxu0 %v1634
    %2033 = vmatpush1.bf16.msra.mxu0 %v1633
    %2034 = vmatprep.subr.bf16.mxu0 %v1640
    %2035 = vmatpush1.bf16.msra.mxu0 %v1639
    %2036 = vmatprep.subr.bf16.mxu0 %v1646
    %2037 = vmatpush1.bf16.msra.mxu0 %v1645
    %2038 = vmatprep.subr.bf16.mxu0 %v1652
    %2039 = vmatpush1.bf16.msra.mxu0 %v1651
    %2040 = vmatprep.subr.bf16.mxu0 %v1658
    %2041 = vmatpush1.bf16.msra.mxu0 %v1657
    %2042 = vmatprep.subr.bf16.mxu0 %v1664
    %2043 = vmatpush1.bf16.msra.mxu0 %v1663
    %2044 = vmatprep.subr.bf16.mxu0 %v1670
    %2045 = vmatpush1.bf16.msra.mxu0 %v1669
    %2046 = vmatprep.subr.bf16.mxu0 %v1676
    %2047 = vmatpush1.bf16.msra.mxu0 %v1675
    %2048 = vmatprep.subr.bf16.mxu0 %v1682
    %2049 = vmatpush1.bf16.msra.mxu0 %v1681
    %2050 = vmatprep.mubr.bf16.mxu0 %v1300
    %2051 = vmatmul.mubr.bf16.gmra.mrb[0].mxu0 %v1299
    %v2052 = vpop.f32.mrb[0].mxu0
    %v2053 = vadd.f32 %v2010, %v2052
    %v2054 = vpop.f32.mrb[0].mxu0
    %v2055 = vadd.f32 %v2012, %v2054
    %v2056 = vpop.f32.mrb[0].mxu0
    %v2057 = vadd.f32 %v2014, %v2056
    %v2058 = vpop.f32.mrb[0].mxu0
    %v2059 = vadd.f32 %v2016, %v2058
    %2060 = vdwg.mxu0
    %2061 = vmatprep.subr.bf16.mxu0 %v1306
    %2062 = vmatpush1.bf16.msra.mxu0 %v1305
    %2063 = vmatprep.subr.bf16.mxu0 %v1312
    %2064 = vmatpush1.bf16.msra.mxu0 %v1311
    %2065 = vmatprep.subr.bf16.mxu0 %v1318
    %2066 = vmatpush1.bf16.msra.mxu0 %v1317
    %2067 = vmatprep.subr.bf16.mxu0 %v1324
    %2068 = vmatpush1.bf16.msra.mxu0 %v1323
    %2069 = vmatprep.subr.bf16.mxu0 %v1330
    %2070 = vmatpush1.bf16.msra.mxu0 %v1329
    %2071 = vmatprep.subr.bf16.mxu0 %v1336
    %2072 = vmatpush1.bf16.msra.mxu0 %v1335
    %2073 = vmatprep.subr.bf16.mxu0 %v1342
    %2074 = vmatpush1.bf16.msra.mxu0 %v1341
    %2075 = vmatprep.subr.bf16.mxu0 %v1348
    %2076 = vmatpush1.bf16.msra.mxu0 %v1347
    %2077 = vmatprep.subr.bf16.mxu0 %v1354
    %2078 = vmatpush1.bf16.msra.mxu0 %v1353
    %2079 = vmatprep.subr.bf16.mxu0 %v1360
    %2080 = vmatpush1.bf16.msra.mxu0 %v1359
    %2081 = vmatprep.subr.bf16.mxu0 %v1366
    %2082 = vmatpush1.bf16.msra.mxu0 %v1365
    %2083 = vmatprep.subr.bf16.mxu0 %v1372
    %2084 = vmatpush1.bf16.msra.mxu0 %v1371
    %2085 = vmatprep.subr.bf16.mxu0 %v1378
    %2086 = vmatpush1.bf16.msra.mxu0 %v1377
    %2087 = vmatprep.subr.bf16.mxu0 %v1384
    %2088 = vmatpush1.bf16.msra.mxu0 %v1383
    %2089 = vmatprep.subr.bf16.mxu0 %v1390
    %2090 = vmatpush1.bf16.msra.mxu0 %v1389
    %2091 = vmatprep.subr.bf16.mxu0 %v1396
    %2092 = vmatpush1.bf16.msra.mxu0 %v1395
    %2093 = vmatprep.mubr.bf16.mxu0 %v1294
    %2094 = vmatmul.mubr.bf16.gmra.mrb[0].mxu0 %v1293
    %v2095 = vpop.f32.mrb[0].mxu0
    %v2096 = vadd.f32 %v1706, %v2095
    %v2097 = vpop.f32.mrb[0].mxu0
    %v2098 = vadd.f32 %v1710, %v2097
    %v2099 = vpop.f32.mrb[0].mxu0
    %v2100 = vadd.f32 %v1706, %v2099
    %v2101 = vpop.f32.mrb[0].mxu0
    %v2102 = vadd.f32 %v1710, %v2101
    %2103 = vdwg.mxu0
    %2104 = vmatprep.subr.bf16.mxu0 %v1402
    %2105 = vmatpush1.bf16.msra.mxu0 %v1401
    %2106 = vmatprep.subr.bf16.mxu0 %v1408
    %2107 = vmatpush1.bf16.msra.mxu0 %v1407
    %2108 = vmatprep.subr.bf16.mxu0 %v1414
    %2109 = vmatpush1.bf16.msra.mxu0 %v1413
    %2110 = vmatprep.subr.bf16.mxu0 %v1420
    %2111 = vmatpush1.bf16.msra.mxu0 %v1419
    %2112 = vmatprep.subr.bf16.mxu0 %v1426
    %2113 = vmatpush1.bf16.msra.mxu0 %v1425
    %2114 = vmatprep.subr.bf16.mxu0 %v1432
    %2115 = vmatpush1.bf16.msra.mxu0 %v1431
    %2116 = vmatprep.subr.bf16.mxu0 %v1438
    %2117 = vmatpush1.bf16.msra.mxu0 %v1437
    %2118 = vmatprep.subr.bf16.mxu0 %v1444
    %2119 = vmatpush1.bf16.msra.mxu0 %v1443
    %2120 = vmatprep.subr.bf16.mxu0 %v1450
    %2121 = vmatpush1.bf16.msra.mxu0 %v1449
    %2122 = vmatprep.subr.bf16.mxu0 %v1456
    %2123 = vmatpush1.bf16.msra.mxu0 %v1455
    %2124 = vmatprep.subr.bf16.mxu0 %v1462
    %2125 = vmatpush1.bf16.msra.mxu0 %v1461
    %2126 = vmatprep.subr.bf16.mxu0 %v1468
    %2127 = vmatpush1.bf16.msra.mxu0 %v1467
    %2128 = vmatprep.subr.bf16.mxu0 %v1474
    %2129 = vmatpush1.bf16.msra.mxu0 %v1473
    %2130 = vmatprep.subr.bf16.mxu0 %v1480
    %2131 = vmatpush1.bf16.msra.mxu0 %v1479
    %2132 = vmatprep.subr.bf16.mxu0 %v1486
    %2133 = vmatpush1.bf16.msra.mxu0 %v1485
    %2134 = vmatprep.subr.bf16.mxu0 %v1492
    %2135 = vmatpush1.bf16.msra.mxu0 %v1491
    %2136 = vmatprep.mubr.bf16.mxu0 %v1296
    %2137 = vmatmul.mubr.bf16.gmra.mrb[0].mxu0 %v1295
    %v2138 = vpop.f32.mrb[0].mxu0
    %v2139 = vadd.f32 %v2096, %v2138
    %v2140 = vpop.f32.mrb[0].mxu0
    %v2141 = vadd.f32 %v2098, %v2140
    %v2142 = vpop.f32.mrb[0].mxu0
    %v2143 = vadd.f32 %v2100, %v2142
    %v2144 = vpop.f32.mrb[0].mxu0
    %v2145 = vadd.f32 %v2102, %v2144
    %2146 = vdwg.mxu0
    %2147 = vmatprep.subr.bf16.mxu0 %v1498
    %2148 = vmatpush1.bf16.msra.mxu0 %v1497
    %2149 = vmatprep.subr.bf16.mxu0 %v1504
    %2150 = vmatpush1.bf16.msra.mxu0 %v1503
    %2151 = vmatprep.subr.bf16.mxu0 %v1510
    %2152 = vmatpush1.bf16.msra.mxu0 %v1509
    %2153 = vmatprep.subr.bf16.mxu0 %v1516
    %2154 = vmatpush1.bf16.msra.mxu0 %v1515
    %2155 = vmatprep.subr.bf16.mxu0 %v1522
    %2156 = vmatpush1.bf16.msra.mxu0 %v1521
    %2157 = vmatprep.subr.bf16.mxu0 %v1528
    %2158 = vmatpush1.bf16.msra.mxu0 %v1527
    %2159 = vmatprep.subr.bf16.mxu0 %v1534
    %2160 = vmatpush1.bf16.msra.mxu0 %v1533
    %2161 = vmatprep.subr.bf16.mxu0 %v1540
    %2162 = vmatpush1.bf16.msra.mxu0 %v1539
    %2163 = vmatprep.subr.bf16.mxu0 %v1546
    %2164 = vmatpush1.bf16.msra.mxu0 %v1545
    %2165 = vmatprep.subr.bf16.mxu0 %v1552
    %2166 = vmatpush1.bf16.msra.mxu0 %v1551
    %2167 = vmatprep.subr.bf16.mxu0 %v1558
    %2168 = vmatpush1.bf16.msra.mxu0 %v1557
    %2169 = vmatprep.subr.bf16.mxu0 %v1564
    %2170 = vmatpush1.bf16.msra.mxu0 %v1563
    %2171 = vmatprep.subr.bf16.mxu0 %v1570
    %2172 = vmatpush1.bf16.msra.mxu0 %v1569
    %2173 = vmatprep.subr.bf16.mxu0 %v1576
    %2174 = vmatpush1.bf16.msra.mxu0 %v1575
    %2175 = vmatprep.subr.bf16.mxu0 %v1582
    %2176 = vmatpush1.bf16.msra.mxu0 %v1581
    %2177 = vmatprep.subr.bf16.mxu0 %v1588
    %2178 = vmatpush1.bf16.msra.mxu0 %v1587
    %2179 = vmatprep.mubr.bf16.mxu0 %v1298
    %2180 = vmatmul.mubr.bf16.gmra.mrb[0].mxu0 %v1297
    %v2181 = vpop.f32.mrb[0].mxu0
    %v2182 = vadd.f32 %v2139, %v2181
    %v2183 = vpop.f32.mrb[0].mxu0
    %v2184 = vadd.f32 %v2141, %v2183
    %v2185 = vpop.f32.mrb[0].mxu0
    %v2186 = vadd.f32 %v2143, %v2185
    %v2187 = vpop.f32.mrb[0].mxu0
    %v2188 = vadd.f32 %v2145, %v2187
    %2189 = vdwg.mxu0
    %2190 = vmatprep.subr.bf16.mxu0 %v1594
    %2191 = vmatpush1.bf16.msra.mxu0 %v1593
    %2192 = vmatprep.subr.bf16.mxu0 %v1600
    %2193 = vmatpush1.bf16.msra.mxu0 %v1599
    %2194 = vmatprep.subr.bf16.mxu0 %v1606
    %2195 = vmatpush1.bf16.msra.mxu0 %v1605
    %2196 = vmatprep.subr.bf16.mxu0 %v1612
    %2197 = vmatpush1.bf16.msra.mxu0 %v1611
    %2198 = vmatprep.subr.bf16.mxu0 %v1618
    %2199 = vmatpush1.bf16.msra.mxu0 %v1617
    %2200 = vmatprep.subr.bf16.mxu0 %v1624
    %2201 = vmatpush1.bf16.msra.mxu0 %v1623
    %2202 = vmatprep.subr.bf16.mxu0 %v1630
    %2203 = vmatpush1.bf16.msra.mxu0 %v1629
    %2204 = vmatprep.subr.bf16.mxu0 %v1636
    %2205 = vmatpush1.bf16.msra.mxu0 %v1635
    %2206 = vmatprep.subr.bf16.mxu0 %v1642
    %2207 = vmatpush1.bf16.msra.mxu0 %v1641
    %2208 = vmatprep.subr.bf16.mxu0 %v1648
    %2209 = vmatpush1.bf16.msra.mxu0 %v1647
    %2210 = vmatprep.subr.bf16.mxu0 %v1654
    %2211 = vmatpush1.bf16.msra.mxu0 %v1653
    %2212 = vmatprep.subr.bf16.mxu0 %v1660
    %2213 = vmatpush1.bf16.msra.mxu0 %v1659
    %2214 = vmatprep.subr.bf16.mxu0 %v1666
    %2215 = vmatpush1.bf16.msra.mxu0 %v1665
    %2216 = vmatprep.subr.bf16.mxu0 %v1672
    %2217 = vmatpush1.bf16.msra.mxu0 %v1671
    %2218 = vmatprep.subr.bf16.mxu0 %v1678
    %2219 = vmatpush1.bf16.msra.mxu0 %v1677
    %2220 = vmatprep.subr.bf16.mxu0 %v1684
    %2221 = vmatpush1.bf16.msra.mxu0 %v1683
    %2222 = vmatprep.mubr.bf16.mxu0 %v1300
    %2223 = vmatmul.mubr.bf16.gmra.mrb[0].mxu0 %v1299
    %v2224 = vpop.f32.mrb[0].mxu0
    %v2225 = vadd.f32 %v2182, %v2224
    %v2226 = vpop.f32.mrb[0].mxu0
    %v2227 = vadd.f32 %v2184, %v2226
    %v2228 = vpop.f32.mrb[0].mxu0
    %v2229 = vadd.f32 %v2186, %v2228
    %v2230 = vpop.f32.mrb[0].mxu0
    %v2231 = vadd.f32 %v2188, %v2230
    %2232 = vdwg.mxu0
    %v2233 = vmax.f32 %v1881, 0.0
    %v2234 = vmax.f32 %v1883, 0.0
    %v2235 = vmax.f32 %v1885, 0.0
    %v2236 = vmax.f32 %v1887, 0.0
    %s2237 = smul.u32 4, 96
    %s2238 = smul.u32 %s2237, 2
    %s2239 = sshll.u32 %s2238, 4
    %2240 = dma.done %s250, %s2239
    %v2241 = vpack.c.bf16 %v2235, %v2233
    %v2242 = vpack.c.bf16 %v2236, %v2234
    %v2244 = vshrl.u32 %v2241, 16
    %v2246 = vrot.slane %v2244, 7
    %v2247 = vshll.u32 %v2241, 16
    %v2249 = vor.u32 %v2246, %v2247
    %v2251 = vshrl.u32 %v2242, 16
    %v2253 = vrot.slane %v2251, 7
    %v2254 = vshll.u32 %v2242, 16
    %v2256 = vor.u32 %v2253, %v2254
    %vm2259 = vcmask 1040384
    %vm2260 = vsmask.f32 256
    %vm2261 = vmand %vm2259, %vm2260
    %v2262 = vsel %vm2261, 0, %v2249
    %v2263 = vsel %vm2261, 0, %v2256
    %vm2264 = vmpackc.low %vm592, %vm592
    %vm2265 = vmpackc.low %vm593, %vm593
    %v2266 = vsel %vm2264, 65537, 0
    %v2267 = vsel %vm2265, 65537, 0
    %v2268 = vunpack.c.l.b16 %v2266
    %v2269 = vunpack.c.l.b16 %v2267
    %v2270 = vpack.c.b16 %v2269, %v2268
    %vm2271 = vcmp.ne.s16.totalorder %v2270, 0
    %v2272 = vsel %vm2271, 0, %v2262
    %v2273 = vsel %vm2271, 0, %v2263
    %v2274 = vrot.slane %v2247, 1
    %v2275 = vor.u32 %v2244, %v2274
    %v2276 = vrot.slane %v2254, 1
    %v2277 = vor.u32 %v2251, %v2276
    %vm2280 = vcmask 1047552
    %vm2281 = vsmask.f32 7424
    %vm2282 = vmand %vm2280, %vm2281
    %v2283 = vsel %vm2282, %v2275, 0
    %v2284 = vsel %vm2282, %v2277, 0
    %vm2285 = vmpackc.low %vm594, %vm594
    %vm2286 = vmpackc.low %vm595, %vm595
    %v2287 = vsel %vm2285, 65537, 0
    %v2288 = vsel %vm2286, 65537, 0
    %v2289 = vunpack.c.l.b16 %v2287
    %v2290 = vunpack.c.l.b16 %v2288
    %v2291 = vpack.c.b16 %v2290, %v2289
    %vm2292 = vcmp.ne.s16.totalorder %v2291, 0
    %v2293 = vsel %vm2292, 0, %v2283
    %v2294 = vsel %vm2292, 0, %v2284
    %v2295 = vld [vmem:[#allocation3] sm:$0xff]
    %v2296 = vld [vmem:[#allocation3 + $0x8] sm:$0xff]
    %v2297 = vld [vmem:[#allocation3 + $0x10] sm:$0xff]
    %v2298 = vld [vmem:[#allocation3 + $0x18] sm:$0xff]
    %v2299 = vld [vmem:[#allocation3 + $0x20] sm:$0xff]
    %v2300 = vld [vmem:[#allocation3 + $0x28] sm:$0xff]
    %v2301 = vld [vmem:[#allocation3 + $0x30] sm:$0xff]
    %v2302 = vld [vmem:[#allocation3 + $0x38] sm:$0xff]
    %v2303 = vld [vmem:[#allocation3 + $0x40] sm:$0xff]
    %v2304 = vld [vmem:[#allocation3 + $0x48] sm:$0xff]
    %v2305 = vld [vmem:[#allocation3 + $0x50] sm:$0xff]
    %v2306 = vld [vmem:[#allocation3 + $0x58] sm:$0xff]
    %v2307 = vld [vmem:[#allocation3 + $0x60] sm:$0xff]
    %v2308 = vld [vmem:[#allocation3 + $0x68] sm:$0xff]
    %v2309 = vld [vmem:[#allocation3 + $0x70] sm:$0xff]
    %v2310 = vld [vmem:[#allocation3 + $0x78] sm:$0xff]
    %v2311 = vld [vmem:[#allocation3 + $0x80] sm:$0xff]
    %v2312 = vld [vmem:[#allocation3 + $0x88] sm:$0xff]
    %v2313 = vld [vmem:[#allocation3 + $0x90] sm:$0xff]
    %v2314 = vld [vmem:[#allocation3 + $0x98] sm:$0xff]
    %v2315 = vld [vmem:[#allocation3 + $0xa0] sm:$0xff]
    %v2316 = vld [vmem:[#allocation3 + $0xa8] sm:$0xff]
    %v2317 = vld [vmem:[#allocation3 + $0xb0] sm:$0xff]
    %v2318 = vld [vmem:[#allocation3 + $0xb8] sm:$0xff]
    %v2319 = vld [vmem:[#allocation3 + $0xc0] sm:$0xff]
    %v2320 = vld [vmem:[#allocation3 + $0xc8] sm:$0xff]
    %v2321 = vld [vmem:[#allocation3 + $0xd0] sm:$0xff]
    %v2322 = vld [vmem:[#allocation3 + $0xd8] sm:$0xff]
    %v2323 = vld [vmem:[#allocation3 + $0xe0] sm:$0xff]
    %v2324 = vld [vmem:[#allocation3 + $0xe8] sm:$0xff]
    %v2325 = vld [vmem:[#allocation3 + $0xf0] sm:$0xff]
    %v2326 = vld [vmem:[#allocation3 + $0xf8] sm:$0xff]
    %v2327 = vld [vmem:[#allocation3 + $0x100] sm:$0xff]
    %v2328 = vld [vmem:[#allocation3 + $0x108] sm:$0xff]
    %v2329 = vld [vmem:[#allocation3 + $0x110] sm:$0xff]
    %v2330 = vld [vmem:[#allocation3 + $0x118] sm:$0xff]
    %v2331 = vld [vmem:[#allocation3 + $0x120] sm:$0xff]
    %v2332 = vld [vmem:[#allocation3 + $0x128] sm:$0xff]
    %v2333 = vld [vmem:[#allocation3 + $0x130] sm:$0xff]
    %v2334 = vld [vmem:[#allocation3 + $0x138] sm:$0xff]
    %v2335 = vld [vmem:[#allocation3 + $0x140] sm:$0xff]
    %v2336 = vld [vmem:[#allocation3 + $0x148] sm:$0xff]
    %v2337 = vld [vmem:[#allocation3 + $0x150] sm:$0xff]
    %v2338 = vld [vmem:[#allocation3 + $0x158] sm:$0xff]
    %v2339 = vld [vmem:[#allocation3 + $0x160] sm:$0xff]
    %v2340 = vld [vmem:[#allocation3 + $0x168] sm:$0xff]
    %v2341 = vld [vmem:[#allocation3 + $0x170] sm:$0xff]
    %v2342 = vld [vmem:[#allocation3 + $0x178] sm:$0xff]
    %v2343 = vld [vmem:[#allocation3 + $0x180] sm:$0xff]
    %v2344 = vld [vmem:[#allocation3 + $0x188] sm:$0xff]
    %v2345 = vld [vmem:[#allocation3 + $0x190] sm:$0xff]
    %v2346 = vld [vmem:[#allocation3 + $0x198] sm:$0xff]
    %v2347 = vld [vmem:[#allocation3 + $0x1a0] sm:$0xff]
    %v2348 = vld [vmem:[#allocation3 + $0x1a8] sm:$0xff]
    %v2349 = vld [vmem:[#allocation3 + $0x1b0] sm:$0xff]
    %v2350 = vld [vmem:[#allocation3 + $0x1b8] sm:$0xff]
    %v2351 = vld [vmem:[#allocation3 + $0x1c0] sm:$0xff]
    %v2352 = vld [vmem:[#allocation3 + $0x1c8] sm:$0xff]
    %v2353 = vld [vmem:[#allocation3 + $0x1d0] sm:$0xff]
    %v2354 = vld [vmem:[#allocation3 + $0x1d8] sm:$0xff]
    %v2355 = vld [vmem:[#allocation3 + $0x1e0] sm:$0xff]
    %v2356 = vld [vmem:[#allocation3 + $0x1e8] sm:$0xff]
    %v2357 = vld [vmem:[#allocation3 + $0x1f0] sm:$0xff]
    %v2358 = vld [vmem:[#allocation3 + $0x1f8] sm:$0xff]
    %v2359 = vld [vmem:[#allocation3 + $0x200] sm:$0xff]
    %v2360 = vld [vmem:[#allocation3 + $0x208] sm:$0xff]
    %v2361 = vld [vmem:[#allocation3 + $0x210] sm:$0xff]
    %v2362 = vld [vmem:[#allocation3 + $0x218] sm:$0xff]
    %v2363 = vld [vmem:[#allocation3 + $0x220] sm:$0xff]
    %v2364 = vld [vmem:[#allocation3 + $0x228] sm:$0xff]
    %v2365 = vld [vmem:[#allocation3 + $0x230] sm:$0xff]
    %v2366 = vld [vmem:[#allocation3 + $0x238] sm:$0xff]
    %v2367 = vld [vmem:[#allocation3 + $0x240] sm:$0xff]
    %v2368 = vld [vmem:[#allocation3 + $0x248] sm:$0xff]
    %v2369 = vld [vmem:[#allocation3 + $0x250] sm:$0xff]
    %v2370 = vld [vmem:[#allocation3 + $0x258] sm:$0xff]
    %v2371 = vld [vmem:[#allocation3 + $0x260] sm:$0xff]
    %v2372 = vld [vmem:[#allocation3 + $0x268] sm:$0xff]
    %v2373 = vld [vmem:[#allocation3 + $0x270] sm:$0xff]
    %v2374 = vld [vmem:[#allocation3 + $0x278] sm:$0xff]
    %v2375 = vld [vmem:[#allocation3 + $0x280] sm:$0xff]
    %v2376 = vld [vmem:[#allocation3 + $0x288] sm:$0xff]
    %v2377 = vld [vmem:[#allocation3 + $0x290] sm:$0xff]
    %v2378 = vld [vmem:[#allocation3 + $0x298] sm:$0xff]
    %v2379 = vld [vmem:[#allocation3 + $0x2a0] sm:$0xff]
    %v2380 = vld [vmem:[#allocation3 + $0x2a8] sm:$0xff]
    %v2381 = vld [vmem:[#allocation3 + $0x2b0] sm:$0xff]
    %v2382 = vld [vmem:[#allocation3 + $0x2b8] sm:$0xff]
    %v2383 = vld [vmem:[#allocation3 + $0x2c0] sm:$0xff]
    %v2384 = vld [vmem:[#allocation3 + $0x2c8] sm:$0xff]
    %v2385 = vld [vmem:[#allocation3 + $0x2d0] sm:$0xff]
    %v2386 = vld [vmem:[#allocation3 + $0x2d8] sm:$0xff]
    %v2387 = vld [vmem:[#allocation3 + $0x2e0] sm:$0xff]
    %v2388 = vld [vmem:[#allocation3 + $0x2e8] sm:$0xff]
    %v2389 = vld [vmem:[#allocation3 + $0x2f0] sm:$0xff]
    %v2390 = vld [vmem:[#allocation3 + $0x2f8] sm:$0xff]
    %v2391 = vld [vmem:[#allocation21] sm:$0x3]
    %v2393 = vlaneseq
    %v2394 = vshrl.u32 %v2393, 7
    %v2395 = vsub.s32 0, %v2394
    %v2396 = vrot.slane %v2391, %v2395
    %v2397 = vlaneseq
    %v2398 = vshrl.u32 %v2397, 7
    %v2399 = vsub.s32 1, %v2398
    %v2400 = vrot.slane %v2391, %v2399
    %2403 = vmatprep.subr.bf16.mxu0 %v2296
    %2404 = vmatpush1.bf16.msra.mxu0 %v2295
    %2405 = vmatprep.subr.bf16.mxu0 %v2298
    %2406 = vmatpush1.bf16.msra.mxu0 %v2297
    %2407 = vmatprep.subr.bf16.mxu0 %v2300
    %2408 = vmatpush1.bf16.msra.mxu0 %v2299
    %2409 = vmatprep.subr.bf16.mxu0 %v2302
    %2410 = vmatpush1.bf16.msra.mxu0 %v2301
    %2411 = vmatprep.subr.bf16.mxu0 %v2304
    %2412 = vmatpush1.bf16.msra.mxu0 %v2303
    %2413 = vmatprep.subr.bf16.mxu0 %v2306
    %2414 = vmatpush1.bf16.msra.mxu0 %v2305
    %2415 = vmatprep.subr.bf16.mxu0 %v2308
    %2416 = vmatpush1.bf16.msra.mxu0 %v2307
    %2417 = vmatprep.subr.bf16.mxu0 %v2310
    %2418 = vmatpush1.bf16.msra.mxu0 %v2309
    %2419 = vmatprep.subr.bf16.mxu0 %v2312
    %2420 = vmatpush1.bf16.msra.mxu0 %v2311
    %2421 = vmatprep.subr.bf16.mxu0 %v2314
    %2422 = vmatpush1.bf16.msra.mxu0 %v2313
    %2423 = vmatprep.subr.bf16.mxu0 %v2316
    %2424 = vmatpush1.bf16.msra.mxu0 %v2315
    %2425 = vmatprep.subr.bf16.mxu0 %v2318
    %2426 = vmatpush1.bf16.msra.mxu0 %v2317
    %2427 = vmatprep.subr.bf16.mxu0 %v2320
    %2428 = vmatpush1.bf16.msra.mxu0 %v2319
    %2429 = vmatprep.subr.bf16.mxu0 %v2322
    %2430 = vmatpush1.bf16.msra.mxu0 %v2321
    %2431 = vmatprep.subr.bf16.mxu0 %v2324
    %2432 = vmatpush1.bf16.msra.mxu0 %v2323
    %2433 = vmatprep.subr.bf16.mxu0 %v2326
    %2434 = vmatpush1.bf16.msra.mxu0 %v2325
    %2435 = vmatprep.mubr.bf16.mxu0 %v2273
    %2436 = vmatmul.mubr.bf16.gmra.mrb[0].mxu0 %v2272
    %v2437 = vpop.f32.mrb[0].mxu0
    %v2438 = vadd.f32 %v2396, %v2437
    %v2439 = vpop.f32.mrb[0].mxu0
    %v2440 = vadd.f32 %v2400, %v2439
    %v2441 = vpop.f32.mrb[0].mxu0
    %v2442 = vadd.f32 %v2396, %v2441
    %v2443 = vpop.f32.mrb[0].mxu0
    %v2444 = vadd.f32 %v2400, %v2443
    %2445 = vdwg.mxu0
    %2446 = vmatprep.subr.bf16.mxu0 %v2328
    %2447 = vmatpush1.bf16.msra.mxu0 %v2327
    %2448 = vmatprep.subr.bf16.mxu0 %v2330
    %2449 = vmatpush1.bf16.msra.mxu0 %v2329
    %2450 = vmatprep.subr.bf16.mxu0 %v2332
    %2451 = vmatpush1.bf16.msra.mxu0 %v2331
    %2452 = vmatprep.subr.bf16.mxu0 %v2334
    %2453 = vmatpush1.bf16.msra.mxu0 %v2333
    %2454 = vmatprep.subr.bf16.mxu0 %v2336
    %2455 = vmatpush1.bf16.msra.mxu0 %v2335
    %2456 = vmatprep.subr.bf16.mxu0 %v2338
    %2457 = vmatpush1.bf16.msra.mxu0 %v2337
    %2458 = vmatprep.subr.bf16.mxu0 %v2340
    %2459 = vmatpush1.bf16.msra.mxu0 %v2339
    %2460 = vmatprep.subr.bf16.mxu0 %v2342
    %2461 = vmatpush1.bf16.msra.mxu0 %v2341
    %2462 = vmatprep.subr.bf16.mxu0 %v2344
    %2463 = vmatpush1.bf16.msra.mxu0 %v2343
    %2464 = vmatprep.subr.bf16.mxu0 %v2346
    %2465 = vmatpush1.bf16.msra.mxu0 %v2345
    %2466 = vmatprep.subr.bf16.mxu0 %v2348
    %2467 = vmatpush1.bf16.msra.mxu0 %v2347
    %2468 = vmatprep.subr.bf16.mxu0 %v2350
    %2469 = vmatpush1.bf16.msra.mxu0 %v2349
    %2470 = vmatprep.subr.bf16.mxu0 %v2352
    %2471 = vmatpush1.bf16.msra.mxu0 %v2351
    %2472 = vmatprep.subr.bf16.mxu0 %v2354
    %2473 = vmatpush1.bf16.msra.mxu0 %v2353
    %2474 = vmatprep.subr.bf16.mxu0 %v2356
    %2475 = vmatpush1.bf16.msra.mxu0 %v2355
    %2476 = vmatprep.subr.bf16.mxu0 %v2358
    %2477 = vmatpush1.bf16.msra.mxu0 %v2357
    %2478 = vmatprep.mubr.bf16.mxu0 %v2242
    %2479 = vmatmul.mubr.bf16.gmra.mrb[0].mxu0 %v2241
    %v2480 = vpop.f32.mrb[0].mxu0
    %v2481 = vadd.f32 %v2438, %v2480
    %v2482 = vpop.f32.mrb[0].mxu0
    %v2483 = vadd.f32 %v2440, %v2482
    %v2484 = vpop.f32.mrb[0].mxu0
    %v2485 = vadd.f32 %v2442, %v2484
    %v2486 = vpop.f32.mrb[0].mxu0
    %v2487 = vadd.f32 %v2444, %v2486
    %2488 = vdwg.mxu0
    %2489 = vmatprep.subr.bf16.mxu0 %v2360
    %2490 = vmatpush1.bf16.msra.mxu0 %v2359
    %2491 = vmatprep.subr.bf16.mxu0 %v2362
    %2492 = vmatpush1.bf16.msra.mxu0 %v2361
    %2493 = vmatprep.subr.bf16.mxu0 %v2364
    %2494 = vmatpush1.bf16.msra.mxu0 %v2363
    %2495 = vmatprep.subr.bf16.mxu0 %v2366
    %2496 = vmatpush1.bf16.msra.mxu0 %v2365
    %2497 = vmatprep.subr.bf16.mxu0 %v2368
    %2498 = vmatpush1.bf16.msra.mxu0 %v2367
    %2499 = vmatprep.subr.bf16.mxu0 %v2370
    %2500 = vmatpush1.bf16.msra.mxu0 %v2369
    %2501 = vmatprep.subr.bf16.mxu0 %v2372
    %2502 = vmatpush1.bf16.msra.mxu0 %v2371
    %2503 = vmatprep.subr.bf16.mxu0 %v2374
    %2504 = vmatpush1.bf16.msra.mxu0 %v2373
    %2505 = vmatprep.subr.bf16.mxu0 %v2376
    %2506 = vmatpush1.bf16.msra.mxu0 %v2375
    %2507 = vmatprep.subr.bf16.mxu0 %v2378
    %2508 = vmatpush1.bf16.msra.mxu0 %v2377
    %2509 = vmatprep.subr.bf16.mxu0 %v2380
    %2510 = vmatpush1.bf16.msra.mxu0 %v2379
    %2511 = vmatprep.subr.bf16.mxu0 %v2382
    %2512 = vmatpush1.bf16.msra.mxu0 %v2381
    %2513 = vmatprep.subr.bf16.mxu0 %v2384
    %2514 = vmatpush1.bf16.msra.mxu0 %v2383
    %2515 = vmatprep.subr.bf16.mxu0 %v2386
    %2516 = vmatpush1.bf16.msra.mxu0 %v2385
    %2517 = vmatprep.subr.bf16.mxu0 %v2388
    %2518 = vmatpush1.bf16.msra.mxu0 %v2387
    %2519 = vmatprep.subr.bf16.mxu0 %v2390
    %2520 = vmatpush1.bf16.msra.mxu0 %v2389
    %2521 = vmatprep.mubr.bf16.mxu0 %v2294
    %2522 = vmatmul.mubr.bf16.gmra.mrb[0].mxu0 %v2293
    %v2523 = vpop.f32.mrb[0].mxu0
    %v2524 = vadd.f32 %v2481, %v2523
    %v2525 = vpop.f32.mrb[0].mxu0
    %v2526 = vadd.f32 %v2483, %v2525
    %v2527 = vpop.f32.mrb[0].mxu0
    %v2528 = vadd.f32 %v2485, %v2527
    %v2529 = vpop.f32.mrb[0].mxu0
    %v2530 = vadd.f32 %v2487, %v2529
    %2531 = vdwg.mxu0
    %v2532 = vmax.f32 %v2524, 0.0
    %v2533 = vmax.f32 %v2526, 0.0
    %v2534 = vmax.f32 %v2528, 0.0
    %v2535 = vmax.f32 %v2530, 0.0
    %s2536 = smul.u32 4, 32
    %s2537 = smul.u32 %s2536, 4
    %s2538 = sshll.u32 %s2537, 4
    %2539 = dma.done %s285, %s2538
    %v2540 = vpack.c.bf16 %v2534, %v2532
    %v2541 = vpack.c.bf16 %v2535, %v2533
    %v2542 = vld [vmem:[#allocation4] sm:$0xff]
    %v2543 = vld [vmem:[#allocation4 + $0x8] sm:$0xff]
    %v2544 = vld [vmem:[#allocation4 + $0x10] sm:$0xff]
    %v2545 = vld [vmem:[#allocation4 + $0x18] sm:$0xff]
    %v2546 = vld [vmem:[#allocation4 + $0x20] sm:$0xff]
    %v2547 = vld [vmem:[#allocation4 + $0x28] sm:$0xff]
    %v2548 = vld [vmem:[#allocation4 + $0x30] sm:$0xff]
    %v2549 = vld [vmem:[#allocation4 + $0x38] sm:$0xff]
    %v2550 = vld [vmem:[#allocation4 + $0x40] sm:$0xff]
    %v2551 = vld [vmem:[#allocation4 + $0x48] sm:$0xff]
    %v2552 = vld [vmem:[#allocation4 + $0x50] sm:$0xff]
    %v2553 = vld [vmem:[#allocation4 + $0x58] sm:$0xff]
    %v2554 = vld [vmem:[#allocation4 + $0x60] sm:$0xff]
    %v2555 = vld [vmem:[#allocation4 + $0x68] sm:$0xff]
    %v2556 = vld [vmem:[#allocation4 + $0x70] sm:$0xff]
    %v2557 = vld [vmem:[#allocation4 + $0x78] sm:$0xff]
    %v2558 = vld [vmem:[#allocation4 + $0x80] sm:$0xff]
    %v2559 = vld [vmem:[#allocation4 + $0x88] sm:$0xff]
    %v2560 = vld [vmem:[#allocation4 + $0x90] sm:$0xff]
    %v2561 = vld [vmem:[#allocation4 + $0x98] sm:$0xff]
    %v2562 = vld [vmem:[#allocation4 + $0xa0] sm:$0xff]
    %v2563 = vld [vmem:[#allocation4 + $0xa8] sm:$0xff]
    %v2564 = vld [vmem:[#allocation4 + $0xb0] sm:$0xff]
    %v2565 = vld [vmem:[#allocation4 + $0xb8] sm:$0xff]
    %v2566 = vld [vmem:[#allocation4 + $0xc0] sm:$0xff]
    %v2567 = vld [vmem:[#allocation4 + $0xc8] sm:$0xff]
    %v2568 = vld [vmem:[#allocation4 + $0xd0] sm:$0xff]
    %v2569 = vld [vmem:[#allocation4 + $0xd8] sm:$0xff]
    %v2570 = vld [vmem:[#allocation4 + $0xe0] sm:$0xff]
    %v2571 = vld [vmem:[#allocation4 + $0xe8] sm:$0xff]
    %v2572 = vld [vmem:[#allocation4 + $0xf0] sm:$0xff]
    %v2573 = vld [vmem:[#allocation4 + $0xf8] sm:$0xff]
    %v2574 = vld [vmem:[#allocation4 + $0x100] sm:$0xff]
    %v2575 = vld [vmem:[#allocation4 + $0x108] sm:$0xff]
    %v2576 = vld [vmem:[#allocation4 + $0x110] sm:$0xff]
    %v2577 = vld [vmem:[#allocation4 + $0x118] sm:$0xff]
    %v2578 = vld [vmem:[#allocation4 + $0x120] sm:$0xff]
    %v2579 = vld [vmem:[#allocation4 + $0x128] sm:$0xff]
    %v2580 = vld [vmem:[#allocation4 + $0x130] sm:$0xff]
    %v2581 = vld [vmem:[#allocation4 + $0x138] sm:$0xff]
    %v2582 = vld [vmem:[#allocation4 + $0x140] sm:$0xff]
    %v2583 = vld [vmem:[#allocation4 + $0x148] sm:$0xff]
    %v2584 = vld [vmem:[#allocation4 + $0x150] sm:$0xff]
    %v2585 = vld [vmem:[#allocation4 + $0x158] sm:$0xff]
    %v2586 = vld [vmem:[#allocation4 + $0x160] sm:$0xff]
    %v2587 = vld [vmem:[#allocation4 + $0x168] sm:$0xff]
    %v2588 = vld [vmem:[#allocation4 + $0x170] sm:$0xff]
    %v2589 = vld [vmem:[#allocation4 + $0x178] sm:$0xff]
    %v2590 = vld [vmem:[#allocation4 + $0x180] sm:$0xff]
    %v2591 = vld [vmem:[#allocation4 + $0x188] sm:$0xff]
    %v2592 = vld [vmem:[#allocation4 + $0x190] sm:$0xff]
    %v2593 = vld [vmem:[#allocation4 + $0x198] sm:$0xff]
    %v2594 = vld [vmem:[#allocation4 + $0x1a0] sm:$0xff]
    %v2595 = vld [vmem:[#allocation4 + $0x1a8] sm:$0xff]
    %v2596 = vld [vmem:[#allocation4 + $0x1b0] sm:$0xff]
    %v2597 = vld [vmem:[#allocation4 + $0x1b8] sm:$0xff]
    %v2598 = vld [vmem:[#allocation4 + $0x1c0] sm:$0xff]
    %v2599 = vld [vmem:[#allocation4 + $0x1c8] sm:$0xff]
    %v2600 = vld [vmem:[#allocation4 + $0x1d0] sm:$0xff]
    %v2601 = vld [vmem:[#allocation4 + $0x1d8] sm:$0xff]
    %v2602 = vld [vmem:[#allocation4 + $0x1e0] sm:$0xff]
    %v2603 = vld [vmem:[#allocation4 + $0x1e8] sm:$0xff]
    %v2604 = vld [vmem:[#allocation4 + $0x1f0] sm:$0xff]
    %v2605 = vld [vmem:[#allocation4 + $0x1f8] sm:$0xff]
    %v2606 = vld [vmem:[#allocation22] sm:$0xf]
    %v2608 = vlaneseq
    %v2609 = vshrl.u32 %v2608, 7
    %v2610 = vsub.s32 0, %v2609
    %v2611 = vrot.slane %v2606, %v2610
    %v2612 = vlaneseq
    %v2613 = vshrl.u32 %v2612, 7
    %v2614 = vsub.s32 1, %v2613
    %v2615 = vrot.slane %v2606, %v2614
    %v2616 = vlaneseq
    %v2617 = vshrl.u32 %v2616, 7
    %v2618 = vsub.s32 2, %v2617
    %v2619 = vrot.slane %v2606, %v2618
    %v2620 = vlaneseq
    %v2621 = vshrl.u32 %v2620, 7
    %v2622 = vsub.s32 3, %v2621
    %v2623 = vrot.slane %v2606, %v2622
    %2628 = vmatprep.subr.bf16.mxu0 %v2543
    %2629 = vmatpush1.bf16.msra.mxu0 %v2542
    %2630 = vmatprep.subr.bf16.mxu0 %v2547
    %2631 = vmatpush1.bf16.msra.mxu0 %v2546
    %2632 = vmatprep.subr.bf16.mxu0 %v2551
    %2633 = vmatpush1.bf16.msra.mxu0 %v2550
    %2634 = vmatprep.subr.bf16.mxu0 %v2555
    %2635 = vmatpush1.bf16.msra.mxu0 %v2554
    %2636 = vmatprep.subr.bf16.mxu0 %v2559
    %2637 = vmatpush1.bf16.msra.mxu0 %v2558
    %2638 = vmatprep.subr.bf16.mxu0 %v2563
    %2639 = vmatpush1.bf16.msra.mxu0 %v2562
    %2640 = vmatprep.subr.bf16.mxu0 %v2567
    %2641 = vmatpush1.bf16.msra.mxu0 %v2566
    %2642 = vmatprep.subr.bf16.mxu0 %v2571
    %2643 = vmatpush1.bf16.msra.mxu0 %v2570
    %2644 = vmatprep.subr.bf16.mxu0 %v2575
    %2645 = vmatpush1.bf16.msra.mxu0 %v2574
    %2646 = vmatprep.subr.bf16.mxu0 %v2579
    %2647 = vmatpush1.bf16.msra.mxu0 %v2578
    %2648 = vmatprep.subr.bf16.mxu0 %v2583
    %2649 = vmatpush1.bf16.msra.mxu0 %v2582
    %2650 = vmatprep.subr.bf16.mxu0 %v2587
    %2651 = vmatpush1.bf16.msra.mxu0 %v2586
    %2652 = vmatprep.subr.bf16.mxu0 %v2591
    %2653 = vmatpush1.bf16.msra.mxu0 %v2590
    %2654 = vmatprep.subr.bf16.mxu0 %v2595
    %2655 = vmatpush1.bf16.msra.mxu0 %v2594
    %2656 = vmatprep.subr.bf16.mxu0 %v2599
    %2657 = vmatpush1.bf16.msra.mxu0 %v2598
    %2658 = vmatprep.subr.bf16.mxu0 %v2603
    %2659 = vmatpush1.bf16.msra.mxu0 %v2602
    %2660 = vmatprep.mubr.bf16.mxu0 %v2541
    %2661 = vmatmul.mubr.bf16.gmra.mrb[0].mxu0 %v2540
    %v2662 = vpop.f32.mrb[0].mxu0
    %v2663 = vadd.f32 %v2611, %v2662
    %v2664 = vpop.f32.mrb[0].mxu0
    %v2665 = vadd.f32 %v2615, %v2664
    %v2666 = vpop.f32.mrb[0].mxu0
    %v2667 = vadd.f32 %v2611, %v2666
    %v2668 = vpop.f32.mrb[0].mxu0
    %v2669 = vadd.f32 %v2615, %v2668
    %2670 = vdwg.mxu0
    %2671 = vmatprep.subr.bf16.mxu0 %v2545
    %2672 = vmatpush1.bf16.msra.mxu0 %v2544
    %2673 = vmatprep.subr.bf16.mxu0 %v2549
    %2674 = vmatpush1.bf16.msra.mxu0 %v2548
    %2675 = vmatprep.subr.bf16.mxu0 %v2553
    %2676 = vmatpush1.bf16.msra.mxu0 %v2552
    %2677 = vmatprep.subr.bf16.mxu0 %v2557
    %2678 = vmatpush1.bf16.msra.mxu0 %v2556
    %2679 = vmatprep.subr.bf16.mxu0 %v2561
    %2680 = vmatpush1.bf16.msra.mxu0 %v2560
    %2681 = vmatprep.subr.bf16.mxu0 %v2565
    %2682 = vmatpush1.bf16.msra.mxu0 %v2564
    %2683 = vmatprep.subr.bf16.mxu0 %v2569
    %2684 = vmatpush1.bf16.msra.mxu0 %v2568
    %2685 = vmatprep.subr.bf16.mxu0 %v2573
    %2686 = vmatpush1.bf16.msra.mxu0 %v2572
    %2687 = vmatprep.subr.bf16.mxu0 %v2577
    %2688 = vmatpush1.bf16.msra.mxu0 %v2576
    %2689 = vmatprep.subr.bf16.mxu0 %v2581
    %2690 = vmatpush1.bf16.msra.mxu0 %v2580
    %2691 = vmatprep.subr.bf16.mxu0 %v2585
    %2692 = vmatpush1.bf16.msra.mxu0 %v2584
    %2693 = vmatprep.subr.bf16.mxu0 %v2589
    %2694 = vmatpush1.bf16.msra.mxu0 %v2588
    %2695 = vmatprep.subr.bf16.mxu0 %v2593
    %2696 = vmatpush1.bf16.msra.mxu0 %v2592
    %2697 = vmatprep.subr.bf16.mxu0 %v2597
    %2698 = vmatpush1.bf16.msra.mxu0 %v2596
    %2699 = vmatprep.subr.bf16.mxu0 %v2601
    %2700 = vmatpush1.bf16.msra.mxu0 %v2600
    %2701 = vmatprep.subr.bf16.mxu0 %v2605
    %2702 = vmatpush1.bf16.msra.mxu0 %v2604
    %2703 = vmatprep.mubr.bf16.mxu0 %v2541
    %2704 = vmatmul.mubr.bf16.gmra.mrb[0].mxu0 %v2540
    %v2705 = vpop.f32.mrb[0].mxu0
    %v2706 = vadd.f32 %v2619, %v2705
    %v2707 = vpop.f32.mrb[0].mxu0
    %v2708 = vadd.f32 %v2623, %v2707
    %v2709 = vpop.f32.mrb[0].mxu0
    %v2710 = vadd.f32 %v2619, %v2709
    %v2711 = vpop.f32.mrb[0].mxu0
    %v2712 = vadd.f32 %v2623, %v2711
    %2713 = vdwg.mxu0
    %v2714 = vadd.f32 %v2663, %v2053
    %v2715 = vadd.f32 %v2665, %v2055
    %v2716 = vadd.f32 %v2706, %v2225
    %v2717 = vadd.f32 %v2708, %v2227
    %v2718 = vadd.f32 %v2667, %v2057
    %v2719 = vadd.f32 %v2669, %v2059
    %v2720 = vadd.f32 %v2710, %v2229
    %v2721 = vadd.f32 %v2712, %v2231
    %v2722 = vmax.f32 %v2714, 0.0
    %v2723 = vmax.f32 %v2715, 0.0
    %v2724 = vmax.f32 %v2716, 0.0
    %v2725 = vmax.f32 %v2717, 0.0
    %v2726 = vmax.f32 %v2718, 0.0
    %v2727 = vmax.f32 %v2719, 0.0
    %v2728 = vmax.f32 %v2720, 0.0
    %v2729 = vmax.f32 %v2721, 0.0
    %s2730 = smul.u32 4, 64
    %s2731 = smul.u32 %s2730, 2
    %s2732 = sshll.u32 %s2731, 4
    %2733 = dma.done %s320, %s2732
    %v2734 = vpack.c.bf16 %v2726, %v2722
    %v2735 = vpack.c.bf16 %v2727, %v2723
    %v2736 = vpack.c.bf16 %v2728, %v2724
    %v2737 = vpack.c.bf16 %v2729, %v2725
    %v2738 = vld [vmem:[#allocation5] sm:$0xff]
    %v2739 = vld [vmem:[#allocation5 + $0x8] sm:$0xff]
    %v2740 = vld [vmem:[#allocation5 + $0x10] sm:$0xff]
    %v2741 = vld [vmem:[#allocation5 + $0x18] sm:$0xff]
    %v2742 = vld [vmem:[#allocation5 + $0x20] sm:$0xff]
    %v2743 = vld [vmem:[#allocation5 + $0x28] sm:$0xff]
    %v2744 = vld [vmem:[#allocation5 + $0x30] sm:$0xff]
    %v2745 = vld [vmem:[#allocation5 + $0x38] sm:$0xff]
    %v2746 = vld [vmem:[#allocation5 + $0x40] sm:$0xff]
    %v2747 = vld [vmem:[#allocation5 + $0x48] sm:$0xff]
    %v2748 = vld [vmem:[#allocation5 + $0x50] sm:$0xff]
    %v2749 = vld [vmem:[#allocation5 + $0x58] sm:$0xff]
    %v2750 = vld [vmem:[#allocation5 + $0x60] sm:$0xff]
    %v2751 = vld [vmem:[#allocation5 + $0x68] sm:$0xff]
    %v2752 = vld [vmem:[#allocation5 + $0x70] sm:$0xff]
    %v2753 = vld [vmem:[#allocation5 + $0x78] sm:$0xff]
    %v2754 = vld [vmem:[#allocation5 + $0x80] sm:$0xff]
    %v2755 = vld [vmem:[#allocation5 + $0x88] sm:$0xff]
    %v2756 = vld [vmem:[#allocation5 + $0x90] sm:$0xff]
    %v2757 = vld [vmem:[#allocation5 + $0x98] sm:$0xff]
    %v2758 = vld [vmem:[#allocation5 + $0xa0] sm:$0xff]
    %v2759 = vld [vmem:[#allocation5 + $0xa8] sm:$0xff]
    %v2760 = vld [vmem:[#allocation5 + $0xb0] sm:$0xff]
    %v2761 = vld [vmem:[#allocation5 + $0xb8] sm:$0xff]
    %v2762 = vld [vmem:[#allocation5 + $0xc0] sm:$0xff]
    %v2763 = vld [vmem:[#allocation5 + $0xc8] sm:$0xff]
    %v2764 = vld [vmem:[#allocation5 + $0xd0] sm:$0xff]
    %v2765 = vld [vmem:[#allocation5 + $0xd8] sm:$0xff]
    %v2766 = vld [vmem:[#allocation5 + $0xe0] sm:$0xff]
    %v2767 = vld [vmem:[#allocation5 + $0xe8] sm:$0xff]
    %v2768 = vld [vmem:[#allocation5 + $0xf0] sm:$0xff]
    %v2769 = vld [vmem:[#allocation5 + $0xf8] sm:$0xff]
    %v2770 = vld [vmem:[#allocation5 + $0x100] sm:$0xff]
    %v2771 = vld [vmem:[#allocation5 + $0x108] sm:$0xff]
    %v2772 = vld [vmem:[#allocation5 + $0x110] sm:$0xff]
    %v2773 = vld [vmem:[#allocation5 + $0x118] sm:$0xff]
    %v2774 = vld [vmem:[#allocation5 + $0x120] sm:$0xff]
    %v2775 = vld [vmem:[#allocation5 + $0x128] sm:$0xff]
    %v2776 = vld [vmem:[#allocation5 + $0x130] sm:$0xff]
    %v2777 = vld [vmem:[#allocation5 + $0x138] sm:$0xff]
    %v2778 = vld [vmem:[#allocation5 + $0x140] sm:$0xff]
    %v2779 = vld [vmem:[#allocation5 + $0x148] sm:$0xff]
    %v2780 = vld [vmem:[#allocation5 + $0x150] sm:$0xff]
    %v2781 = vld [vmem:[#allocation5 + $0x158] sm:$0xff]
    %v2782 = vld [vmem:[#allocation5 + $0x160] sm:$0xff]
    %v2783 = vld [vmem:[#allocation5 + $0x168] sm:$0xff]
    %v2784 = vld [vmem:[#allocation5 + $0x170] sm:$0xff]
    %v2785 = vld [vmem:[#allocation5 + $0x178] sm:$0xff]
    %v2786 = vld [vmem:[#allocation5 + $0x180] sm:$0xff]
    %v2787 = vld [vmem:[#allocation5 + $0x188] sm:$0xff]
    %v2788 = vld [vmem:[#allocation5 + $0x190] sm:$0xff]
    %v2789 = vld [vmem:[#allocation5 + $0x198] sm:$0xff]
    %v2790 = vld [vmem:[#allocation5 + $0x1a0] sm:$0xff]
    %v2791 = vld [vmem:[#allocation5 + $0x1a8] sm:$0xff]
    %v2792 = vld [vmem:[#allocation5 + $0x1b0] sm:$0xff]
    %v2793 = vld [vmem:[#allocation5 + $0x1b8] sm:$0xff]
    %v2794 = vld [vmem:[#allocation5 + $0x1c0] sm:$0xff]
    %v2795 = vld [vmem:[#allocation5 + $0x1c8] sm:$0xff]
    %v2796 = vld [vmem:[#allocation5 + $0x1d0] sm:$0xff]
    %v2797 = vld [vmem:[#allocation5 + $0x1d8] sm:$0xff]
    %v2798 = vld [vmem:[#allocation5 + $0x1e0] sm:$0xff]
    %v2799 = vld [vmem:[#allocation5 + $0x1e8] sm:$0xff]
    %v2800 = vld [vmem:[#allocation5 + $0x1f0] sm:$0xff]
    %v2801 = vld [vmem:[#allocation5 + $0x1f8] sm:$0xff]
    %v2802 = vld [vmem:[#allocation24] sm:$0x3]
    %v2804 = vlaneseq
    %v2805 = vshrl.u32 %v2804, 7
    %v2806 = vsub.s32 0, %v2805
    %v2807 = vrot.slane %v2802, %v2806
    %v2808 = vlaneseq
    %v2809 = vshrl.u32 %v2808, 7
    %v2810 = vsub.s32 1, %v2809
    %v2811 = vrot.slane %v2802, %v2810
    %2814 = vmatprep.subr.bf16.mxu0 %v2739
    %2815 = vmatpush1.bf16.msra.mxu0 %v2738
    %2816 = vmatprep.subr.bf16.mxu0 %v2741
    %2817 = vmatpush1.bf16.msra.mxu0 %v2740
    %2818 = vmatprep.subr.bf16.mxu0 %v2743
    %2819 = vmatpush1.bf16.msra.mxu0 %v2742
    %2820 = vmatprep.subr.bf16.mxu0 %v2745
    %2821 = vmatpush1.bf16.msra.mxu0 %v2744
    %2822 = vmatprep.subr.bf16.mxu0 %v2747
    %2823 = vmatpush1.bf16.msra.mxu0 %v2746
    %2824 = vmatprep.subr.bf16.mxu0 %v2749
    %2825 = vmatpush1.bf16.msra.mxu0 %v2748
    %2826 = vmatprep.subr.bf16.mxu0 %v2751
    %2827 = vmatpush1.bf16.msra.mxu0 %v2750
    %2828 = vmatprep.subr.bf16.mxu0 %v2753
    %2829 = vmatpush1.bf16.msra.mxu0 %v2752
    %2830 = vmatprep.subr.bf16.mxu0 %v2755
    %2831 = vmatpush1.bf16.msra.mxu0 %v2754
    %2832 = vmatprep.subr.bf16.mxu0 %v2757
    %2833 = vmatpush1.bf16.msra.mxu0 %v2756
    %2834 = vmatprep.subr.bf16.mxu0 %v2759
    %2835 = vmatpush1.bf16.msra.mxu0 %v2758
    %2836 = vmatprep.subr.bf16.mxu0 %v2761
    %2837 = vmatpush1.bf16.msra.mxu0 %v2760
    %2838 = vmatprep.subr.bf16.mxu0 %v2763
    %2839 = vmatpush1.bf16.msra.mxu0 %v2762
    %2840 = vmatprep.subr.bf16.mxu0 %v2765
    %2841 = vmatpush1.bf16.msra.mxu0 %v2764
    %2842 = vmatprep.subr.bf16.mxu0 %v2767
    %2843 = vmatpush1.bf16.msra.mxu0 %v2766
    %2844 = vmatprep.subr.bf16.mxu0 %v2769
    %2845 = vmatpush1.bf16.msra.mxu0 %v2768
    %2846 = vmatprep.mubr.bf16.mxu0 %v2735
    %2847 = vmatmul.mubr.bf16.gmra.mrb[0].mxu0 %v2734
    %v2848 = vpop.f32.mrb[0].mxu0
    %v2849 = vadd.f32 %v2807, %v2848
    %v2850 = vpop.f32.mrb[0].mxu0
    %v2851 = vadd.f32 %v2811, %v2850
    %v2852 = vpop.f32.mrb[0].mxu0
    %v2853 = vadd.f32 %v2807, %v2852
    %v2854 = vpop.f32.mrb[0].mxu0
    %v2855 = vadd.f32 %v2811, %v2854
    %2856 = vdwg.mxu0
    %2857 = vmatprep.subr.bf16.mxu0 %v2771
    %2858 = vmatpush1.bf16.msra.mxu0 %v2770
    %2859 = vmatprep.subr.bf16.mxu0 %v2773
    %2860 = vmatpush1.bf16.msra.mxu0 %v2772
    %2861 = vmatprep.subr.bf16.mxu0 %v2775
    %2862 = vmatpush1.bf16.msra.mxu0 %v2774
    %2863 = vmatprep.subr.bf16.mxu0 %v2777
    %2864 = vmatpush1.bf16.msra.mxu0 %v2776
    %2865 = vmatprep.subr.bf16.mxu0 %v2779
    %2866 = vmatpush1.bf16.msra.mxu0 %v2778
    %2867 = vmatprep.subr.bf16.mxu0 %v2781
    %2868 = vmatpush1.bf16.msra.mxu0 %v2780
    %2869 = vmatprep.subr.bf16.mxu0 %v2783
    %2870 = vmatpush1.bf16.msra.mxu0 %v2782
    %2871 = vmatprep.subr.bf16.mxu0 %v2785
    %2872 = vmatpush1.bf16.msra.mxu0 %v2784
    %2873 = vmatprep.subr.bf16.mxu0 %v2787
    %2874 = vmatpush1.bf16.msra.mxu0 %v2786
    %2875 = vmatprep.subr.bf16.mxu0 %v2789
    %2876 = vmatpush1.bf16.msra.mxu0 %v2788
    %2877 = vmatprep.subr.bf16.mxu0 %v2791
    %2878 = vmatpush1.bf16.msra.mxu0 %v2790
    %2879 = vmatprep.subr.bf16.mxu0 %v2793
    %2880 = vmatpush1.bf16.msra.mxu0 %v2792
    %2881 = vmatprep.subr.bf16.mxu0 %v2795
    %2882 = vmatpush1.bf16.msra.mxu0 %v2794
    %2883 = vmatprep.subr.bf16.mxu0 %v2797
    %2884 = vmatpush1.bf16.msra.mxu0 %v2796
    %2885 = vmatprep.subr.bf16.mxu0 %v2799
    %2886 = vmatpush1.bf16.msra.mxu0 %v2798
    %2887 = vmatprep.subr.bf16.mxu0 %v2801
    %2888 = vmatpush1.bf16.msra.mxu0 %v2800
    %2889 = vmatprep.mubr.bf16.mxu0 %v2737
    %2890 = vmatmul.mubr.bf16.gmra.mrb[0].mxu0 %v2736
    %v2891 = vpop.f32.mrb[0].mxu0
    %v2892 = vadd.f32 %v2849, %v2891
    %v2893 = vpop.f32.mrb[0].mxu0
    %v2894 = vadd.f32 %v2851, %v2893
    %v2895 = vpop.f32.mrb[0].mxu0
    %v2896 = vadd.f32 %v2853, %v2895
    %v2897 = vpop.f32.mrb[0].mxu0
    %v2898 = vadd.f32 %v2855, %v2897
    %2899 = vdwg.mxu0
    %v2900 = vmax.f32 %v2892, 0.0
    %v2901 = vmax.f32 %v2894, 0.0
    %v2902 = vmax.f32 %v2896, 0.0
    %v2903 = vmax.f32 %v2898, 0.0
    %s2904 = sshll.u32 %s2238, 4
    %2905 = dma.done %s355, %s2904
    %v2906 = vpack.c.bf16 %v2902, %v2900
    %v2907 = vpack.c.bf16 %v2903, %v2901
    %v2909 = vshrl.u32 %v2906, 16
    %v2911 = vrot.slane %v2909, 7
    %v2912 = vshll.u32 %v2906, 16
    %v2914 = vor.u32 %v2911, %v2912
    %v2916 = vshrl.u32 %v2907, 16
    %v2918 = vrot.slane %v2916, 7
    %v2919 = vshll.u32 %v2907, 16
    %v2921 = vor.u32 %v2918, %v2919
    %v2924 = vsel %vm2261, 0, %v2914
    %v2925 = vsel %vm2261, 0, %v2921
    %v2926 = vsel %vm2271, 0, %v2924
    %v2927 = vsel %vm2271, 0, %v2925
    %v2928 = vrot.slane %v2912, 1
    %v2929 = vor.u32 %v2909, %v2928
    %v2930 = vrot.slane %v2919, 1
    %v2931 = vor.u32 %v2916, %v2930
    %v2934 = vsel %vm2282, %v2929, 0
    %v2935 = vsel %vm2282, %v2931, 0
    %v2936 = vsel %vm2292, 0, %v2934
    %v2937 = vsel %vm2292, 0, %v2935
    %v2938 = vld [vmem:[#allocation6] sm:$0xff]
    %v2939 = vld [vmem:[#allocation6 + $0x8] sm:$0xff]
    %v2940 = vld [vmem:[#allocation6 + $0x10] sm:$0xff]
    %v2941 = vld [vmem:[#allocation6 + $0x18] sm:$0xff]
    %v2942 = vld [vmem:[#allocation6 + $0x20] sm:$0xff]
    %v2943 = vld [vmem:[#allocation6 + $0x28] sm:$0xff]
    %v2944 = vld [vmem:[#allocation6 + $0x30] sm:$0xff]
    %v2945 = vld [vmem:[#allocation6 + $0x38] sm:$0xff]
    %v2946 = vld [vmem:[#allocation6 + $0x40] sm:$0xff]
    %v2947 = vld [vmem:[#allocation6 + $0x48] sm:$0xff]
    %v2948 = vld [vmem:[#allocation6 + $0x50] sm:$0xff]
    %v2949 = vld [vmem:[#allocation6 + $0x58] sm:$0xff]
    %v2950 = vld [vmem:[#allocation6 + $0x60] sm:$0xff]
    %v2951 = vld [vmem:[#allocation6 + $0x68] sm:$0xff]
    %v2952 = vld [vmem:[#allocation6 + $0x70] sm:$0xff]
    %v2953 = vld [vmem:[#allocation6 + $0x78] sm:$0xff]
    %v2954 = vld [vmem:[#allocation6 + $0x80] sm:$0xff]
    %v2955 = vld [vmem:[#allocation6 + $0x88] sm:$0xff]
    %v2956 = vld [vmem:[#allocation6 + $0x90] sm:$0xff]
    %v2957 = vld [vmem:[#allocation6 + $0x98] sm:$0xff]
    %v2958 = vld [vmem:[#allocation6 + $0xa0] sm:$0xff]
    %v2959 = vld [vmem:[#allocation6 + $0xa8] sm:$0xff]
    %v2960 = vld [vmem:[#allocation6 + $0xb0] sm:$0xff]
    %v2961 = vld [vmem:[#allocation6 + $0xb8] sm:$0xff]
    %v2962 = vld [vmem:[#allocation6 + $0xc0] sm:$0xff]
    %v2963 = vld [vmem:[#allocation6 + $0xc8] sm:$0xff]
    %v2964 = vld [vmem:[#allocation6 + $0xd0] sm:$0xff]
    %v2965 = vld [vmem:[#allocation6 + $0xd8] sm:$0xff]
    %v2966 = vld [vmem:[#allocation6 + $0xe0] sm:$0xff]
    %v2967 = vld [vmem:[#allocation6 + $0xe8] sm:$0xff]
    %v2968 = vld [vmem:[#allocation6 + $0xf0] sm:$0xff]
    %v2969 = vld [vmem:[#allocation6 + $0xf8] sm:$0xff]
    %v2970 = vld [vmem:[#allocation6 + $0x100] sm:$0xff]
    %v2971 = vld [vmem:[#allocation6 + $0x108] sm:$0xff]
    %v2972 = vld [vmem:[#allocation6 + $0x110] sm:$0xff]
    %v2973 = vld [vmem:[#allocation6 + $0x118] sm:$0xff]
    %v2974 = vld [vmem:[#allocation6 + $0x120] sm:$0xff]
    %v2975 = vld [vmem:[#allocation6 + $0x128] sm:$0xff]
    %v2976 = vld [vmem:[#allocation6 + $0x130] sm:$0xff]
    %v2977 = vld [vmem:[#allocation6 + $0x138] sm:$0xff]
    %v2978 = vld [vmem:[#allocation6 + $0x140] sm:$0xff]
    %v2979 = vld [vmem:[#allocation6 + $0x148] sm:$0xff]
    %v2980 = vld [vmem:[#allocation6 + $0x150] sm:$0xff]
    %v2981 = vld [vmem:[#allocation6 + $0x158] sm:$0xff]
    %v2982 = vld [vmem:[#allocation6 + $0x160] sm:$0xff]
    %v2983 = vld [vmem:[#allocation6 + $0x168] sm:$0xff]
    %v2984 = vld [vmem:[#allocation6 + $0x170] sm:$0xff]
    %v2985 = vld [vmem:[#allocation6 + $0x178] sm:$0xff]
    %v2986 = vld [vmem:[#allocation6 + $0x180] sm:$0xff]
    %v2987 = vld [vmem:[#allocation6 + $0x188] sm:$0xff]
    %v2988 = vld [vmem:[#allocation6 + $0x190] sm:$0xff]
    %v2989 = vld [vmem:[#allocation6 + $0x198] sm:$0xff]
    %v2990 = vld [vmem:[#allocation6 + $0x1a0] sm:$0xff]
    %v2991 = vld [vmem:[#allocation6 + $0x1a8] sm:$0xff]
    %v2992 = vld [vmem:[#allocation6 + $0x1b0] sm:$0xff]
    %v2993 = vld [vmem:[#allocation6 + $0x1b8] sm:$0xff]
    %v2994 = vld [vmem:[#allocation6 + $0x1c0] sm:$0xff]
    %v2995 = vld [vmem:[#allocation6 + $0x1c8] sm:$0xff]
    %v2996 = vld [vmem:[#allocation6 + $0x1d0] sm:$0xff]
    %v2997 = vld [vmem:[#allocation6 + $0x1d8] sm:$0xff]
    %v2998 = vld [vmem:[#allocation6 + $0x1e0] sm:$0xff]
    %v2999 = vld [vmem:[#allocation6 + $0x1e8] sm:$0xff]
    %v3000 = vld [vmem:[#allocation6 + $0x1f0] sm:$0xff]
    %v3001 = vld [vmem:[#allocation6 + $0x1f8] sm:$0xff]
    %v3002 = vld [vmem:[#allocation6 + $0x200] sm:$0xff]
    %v3003 = vld [vmem:[#allocation6 + $0x208] sm:$0xff]
    %v3004 = vld [vmem:[#allocation6 + $0x210] sm:$0xff]
    %v3005 = vld [vmem:[#allocation6 + $0x218] sm:$0xff]
    %v3006 = vld [vmem:[#allocation6 + $0x220] sm:$0xff]
    %v3007 = vld [vmem:[#allocation6 + $0x228] sm:$0xff]
    %v3008 = vld [vmem:[#allocation6 + $0x230] sm:$0xff]
    %v3009 = vld [vmem:[#allocation6 + $0x238] sm:$0xff]
    %v3010 = vld [vmem:[#allocation6 + $0x240] sm:$0xff]
    %v3011 = vld [vmem:[#allocation6 + $0x248] sm:$0xff]
    %v3012 = vld [vmem:[#allocation6 + $0x250] sm:$0xff]
    %v3013 = vld [vmem:[#allocation6 + $0x258] sm:$0xff]
    %v3014 = vld [vmem:[#allocation6 + $0x260] sm:$0xff]
    %v3015 = vld [vmem:[#allocation6 + $0x268] sm:$0xff]
    %v3016 = vld [vmem:[#allocation6 + $0x270] sm:$0xff]
    %v3017 = vld [vmem:[#allocation6 + $0x278] sm:$0xff]
    %v3018 = vld [vmem:[#allocation6 + $0x280] sm:$0xff]
    %v3019 = vld [vmem:[#allocation6 + $0x288] sm:$0xff]
    %v3020 = vld [vmem:[#allocation6 + $0x290] sm:$0xff]
    %v3021 = vld [vmem:[#allocation6 + $0x298] sm:$0xff]
    %v3022 = vld [vmem:[#allocation6 + $0x2a0] sm:$0xff]
    %v3023 = vld [vmem:[#allocation6 + $0x2a8] sm:$0xff]
    %v3024 = vld [vmem:[#allocation6 + $0x2b0] sm:$0xff]
    %v3025 = vld [vmem:[#allocation6 + $0x2b8] sm:$0xff]
    %v3026 = vld [vmem:[#allocation6 + $0x2c0] sm:$0xff]
    %v3027 = vld [vmem:[#allocation6 + $0x2c8] sm:$0xff]
    %v3028 = vld [vmem:[#allocation6 + $0x2d0] sm:$0xff]
    %v3029 = vld [vmem:[#allocation6 + $0x2d8] sm:$0xff]
    %v3030 = vld [vmem:[#allocation6 + $0x2e0] sm:$0xff]
    %v3031 = vld [vmem:[#allocation6 + $0x2e8] sm:$0xff]
    %v3032 = vld [vmem:[#allocation6 + $0x2f0] sm:$0xff]
    %v3033 = vld [vmem:[#allocation6 + $0x2f8] sm:$0xff]
    %v3034 = vld [vmem:[#allocation25] sm:$0x3]
    %v3036 = vlaneseq
    %v3037 = vshrl.u32 %v3036, 7
    %v3038 = vsub.s32 0, %v3037
    %v3039 = vrot.slane %v3034, %v3038
    %v3040 = vlaneseq
    %v3041 = vshrl.u32 %v3040, 7
    %v3042 = vsub.s32 1, %v3041
    %v3043 = vrot.slane %v3034, %v3042
    %3046 = vmatprep.subr.bf16.mxu0 %v2939
    %3047 = vmatpush1.bf16.msra.mxu0 %v2938
    %3048 = vmatprep.subr.bf16.mxu0 %v2941
    %3049 = vmatpush1.bf16.msra.mxu0 %v2940
    %3050 = vmatprep.subr.bf16.mxu0 %v2943
    %3051 = vmatpush1.bf16.msra.mxu0 %v2942
    %3052 = vmatprep.subr.bf16.mxu0 %v2945
    %3053 = vmatpush1.bf16.msra.mxu0 %v2944
    %3054 = vmatprep.subr.bf16.mxu0 %v2947
    %3055 = vmatpush1.bf16.msra.mxu0 %v2946
    %3056 = vmatprep.subr.bf16.mxu0 %v2949
    %3057 = vmatpush1.bf16.msra.mxu0 %v2948
    %3058 = vmatprep.subr.bf16.mxu0 %v2951
    %3059 = vmatpush1.bf16.msra.mxu0 %v2950
    %3060 = vmatprep.subr.bf16.mxu0 %v2953
    %3061 = vmatpush1.bf16.msra.mxu0 %v2952
    %3062 = vmatprep.subr.bf16.mxu0 %v2955
    %3063 = vmatpush1.bf16.msra.mxu0 %v2954
    %3064 = vmatprep.subr.bf16.mxu0 %v2957
    %3065 = vmatpush1.bf16.msra.mxu0 %v2956
    %3066 = vmatprep.subr.bf16.mxu0 %v2959
    %3067 = vmatpush1.bf16.msra.mxu0 %v2958
    %3068 = vmatprep.subr.bf16.mxu0 %v2961
    %3069 = vmatpush1.bf16.msra.mxu0 %v2960
    %3070 = vmatprep.subr.bf16.mxu0 %v2963
    %3071 = vmatpush1.bf16.msra.mxu0 %v2962
    %3072 = vmatprep.subr.bf16.mxu0 %v2965
    %3073 = vmatpush1.bf16.msra.mxu0 %v2964
    %3074 = vmatprep.subr.bf16.mxu0 %v2967
    %3075 = vmatpush1.bf16.msra.mxu0 %v2966
    %3076 = vmatprep.subr.bf16.mxu0 %v2969
    %3077 = vmatpush1.bf16.msra.mxu0 %v2968
    %3078 = vmatprep.mubr.bf16.mxu0 %v2927
    %3079 = vmatmul.mubr.bf16.gmra.mrb[0].mxu0 %v2926
    %v3080 = vpop.f32.mrb[0].mxu0
    %v3081 = vadd.f32 %v3039, %v3080
    %v3082 = vpop.f32.mrb[0].mxu0
    %v3083 = vadd.f32 %v3043, %v3082
    %v3084 = vpop.f32.mrb[0].mxu0
    %v3085 = vadd.f32 %v3039, %v3084
    %v3086 = vpop.f32.mrb[0].mxu0
    %v3087 = vadd.f32 %v3043, %v3086
    %3088 = vdwg.mxu0
    %3089 = vmatprep.subr.bf16.mxu0 %v2971
    %3090 = vmatpush1.bf16.msra.mxu0 %v2970
    %3091 = vmatprep.subr.bf16.mxu0 %v2973
    %3092 = vmatpush1.bf16.msra.mxu0 %v2972
    %3093 = vmatprep.subr.bf16.mxu0 %v2975
    %3094 = vmatpush1.bf16.msra.mxu0 %v2974
    %3095 = vmatprep.subr.bf16.mxu0 %v2977
    %3096 = vmatpush1.bf16.msra.mxu0 %v2976
    %3097 = vmatprep.subr.bf16.mxu0 %v2979
    %3098 = vmatpush1.bf16.msra.mxu0 %v2978
    %3099 = vmatprep.subr.bf16.mxu0 %v2981
    %3100 = vmatpush1.bf16.msra.mxu0 %v2980
    %3101 = vmatprep.subr.bf16.mxu0 %v2983
    %3102 = vmatpush1.bf16.msra.mxu0 %v2982
    %3103 = vmatprep.subr.bf16.mxu0 %v2985
    %3104 = vmatpush1.bf16.msra.mxu0 %v2984
    %3105 = vmatprep.subr.bf16.mxu0 %v2987
    %3106 = vmatpush1.bf16.msra.mxu0 %v2986
    %3107 = vmatprep.subr.bf16.mxu0 %v2989
    %3108 = vmatpush1.bf16.msra.mxu0 %v2988
    %3109 = vmatprep.subr.bf16.mxu0 %v2991
    %3110 = vmatpush1.bf16.msra.mxu0 %v2990
    %3111 = vmatprep.subr.bf16.mxu0 %v2993
    %3112 = vmatpush1.bf16.msra.mxu0 %v2992
    %3113 = vmatprep.subr.bf16.mxu0 %v2995
    %3114 = vmatpush1.bf16.msra.mxu0 %v2994
    %3115 = vmatprep.subr.bf16.mxu0 %v2997
    %3116 = vmatpush1.bf16.msra.mxu0 %v2996
    %3117 = vmatprep.subr.bf16.mxu0 %v2999
    %3118 = vmatpush1.bf16.msra.mxu0 %v2998
    %3119 = vmatprep.subr.bf16.mxu0 %v3001
    %3120 = vmatpush1.bf16.msra.mxu0 %v3000
    %3121 = vmatprep.mubr.bf16.mxu0 %v2907
    %3122 = vmatmul.mubr.bf16.gmra.mrb[0].mxu0 %v2906
    %v3123 = vpop.f32.mrb[0].mxu0
    %v3124 = vadd.f32 %v3081, %v3123
    %v3125 = vpop.f32.mrb[0].mxu0
    %v3126 = vadd.f32 %v3083, %v3125
    %v3127 = vpop.f32.mrb[0].mxu0
    %v3128 = vadd.f32 %v3085, %v3127
    %v3129 = vpop.f32.mrb[0].mxu0
    %v3130 = vadd.f32 %v3087, %v3129
    %3131 = vdwg.mxu0
    %3132 = vmatprep.subr.bf16.mxu0 %v3003
    %3133 = vmatpush1.bf16.msra.mxu0 %v3002
    %3134 = vmatprep.subr.bf16.mxu0 %v3005
    %3135 = vmatpush1.bf16.msra.mxu0 %v3004
    %3136 = vmatprep.subr.bf16.mxu0 %v3007
    %3137 = vmatpush1.bf16.msra.mxu0 %v3006
    %3138 = vmatprep.subr.bf16.mxu0 %v3009
    %3139 = vmatpush1.bf16.msra.mxu0 %v3008
    %3140 = vmatprep.subr.bf16.mxu0 %v3011
    %3141 = vmatpush1.bf16.msra.mxu0 %v3010
    %3142 = vmatprep.subr.bf16.mxu0 %v3013
    %3143 = vmatpush1.bf16.msra.mxu0 %v3012
    %3144 = vmatprep.subr.bf16.mxu0 %v3015
    %3145 = vmatpush1.bf16.msra.mxu0 %v3014
    %3146 = vmatprep.subr.bf16.mxu0 %v3017
    %3147 = vmatpush1.bf16.msra.mxu0 %v3016
    %3148 = vmatprep.subr.bf16.mxu0 %v3019
    %3149 = vmatpush1.bf16.msra.mxu0 %v3018
    %3150 = vmatprep.subr.bf16.mxu0 %v3021
    %3151 = vmatpush1.bf16.msra.mxu0 %v3020
    %3152 = vmatprep.subr.bf16.mxu0 %v3023
    %3153 = vmatpush1.bf16.msra.mxu0 %v3022
    %3154 = vmatprep.subr.bf16.mxu0 %v3025
    %3155 = vmatpush1.bf16.msra.mxu0 %v3024
    %3156 = vmatprep.subr.bf16.mxu0 %v3027
    %3157 = vmatpush1.bf16.msra.mxu0 %v3026
    %3158 = vmatprep.subr.bf16.mxu0 %v3029
    %3159 = vmatpush1.bf16.msra.mxu0 %v3028
    %3160 = vmatprep.subr.bf16.mxu0 %v3031
    %3161 = vmatpush1.bf16.msra.mxu0 %v3030
    %3162 = vmatprep.subr.bf16.mxu0 %v3033
    %3163 = vmatpush1.bf16.msra.mxu0 %v3032
    %3164 = vmatprep.mubr.bf16.mxu0 %v2937
    %3165 = vmatmul.mubr.bf16.gmra.mrb[0].mxu0 %v2936
    %v3166 = vpop.f32.mrb[0].mxu0
    %v3167 = vadd.f32 %v3124, %v3166
    %v3168 = vpop.f32.mrb[0].mxu0
    %v3169 = vadd.f32 %v3126, %v3168
    %v3170 = vpop.f32.mrb[0].mxu0
    %v3171 = vadd.f32 %v3128, %v3170
    %v3172 = vpop.f32.mrb[0].mxu0
    %v3173 = vadd.f32 %v3130, %v3172
    %3174 = vdwg.mxu0
    %v3175 = vmax.f32 %v3167, 0.0
    %v3176 = vmax.f32 %v3169, 0.0
    %v3177 = vmax.f32 %v3171, 0.0
    %v3178 = vmax.f32 %v3173, 0.0
    %s3179 = sshll.u32 %s2537, 4
    %3180 = dma.done %s390, %s3179
    %v3181 = vpack.c.bf16 %v3177, %v3175
    %v3182 = vpack.c.bf16 %v3178, %v3176
    %v3183 = vld [vmem:[#allocation7] sm:$0xff]
    %v3184 = vld [vmem:[#allocation7 + $0x8] sm:$0xff]
    %v3185 = vld [vmem:[#allocation7 + $0x10] sm:$0xff]
    %v3186 = vld [vmem:[#allocation7 + $0x18] sm:$0xff]
    %v3187 = vld [vmem:[#allocation7 + $0x20] sm:$0xff]
    %v3188 = vld [vmem:[#allocation7 + $0x28] sm:$0xff]
    %v3189 = vld [vmem:[#allocation7 + $0x30] sm:$0xff]
    %v3190 = vld [vmem:[#allocation7 + $0x38] sm:$0xff]
    %v3191 = vld [vmem:[#allocation7 + $0x40] sm:$0xff]
    %v3192 = vld [vmem:[#allocation7 + $0x48] sm:$0xff]
    %v3193 = vld [vmem:[#allocation7 + $0x50] sm:$0xff]
    %v3194 = vld [vmem:[#allocation7 + $0x58] sm:$0xff]
    %v3195 = vld [vmem:[#allocation7 + $0x60] sm:$0xff]
    %v3196 = vld [vmem:[#allocation7 + $0x68] sm:$0xff]
    %v3197 = vld [vmem:[#allocation7 + $0x70] sm:$0xff]
    %v3198 = vld [vmem:[#allocation7 + $0x78] sm:$0xff]
    %v3199 = vld [vmem:[#allocation7 + $0x80] sm:$0xff]
    %v3200 = vld [vmem:[#allocation7 + $0x88] sm:$0xff]
    %v3201 = vld [vmem:[#allocation7 + $0x90] sm:$0xff]
    %v3202 = vld [vmem:[#allocation7 + $0x98] sm:$0xff]
    %v3203 = vld [vmem:[#allocation7 + $0xa0] sm:$0xff]
    %v3204 = vld [vmem:[#allocation7 + $0xa8] sm:$0xff]
    %v3205 = vld [vmem:[#allocation7 + $0xb0] sm:$0xff]
    %v3206 = vld [vmem:[#allocation7 + $0xb8] sm:$0xff]
    %v3207 = vld [vmem:[#allocation7 + $0xc0] sm:$0xff]
    %v3208 = vld [vmem:[#allocation7 + $0xc8] sm:$0xff]
    %v3209 = vld [vmem:[#allocation7 + $0xd0] sm:$0xff]
    %v3210 = vld [vmem:[#allocation7 + $0xd8] sm:$0xff]
    %v3211 = vld [vmem:[#allocation7 + $0xe0] sm:$0xff]
    %v3212 = vld [vmem:[#allocation7 + $0xe8] sm:$0xff]
    %v3213 = vld [vmem:[#allocation7 + $0xf0] sm:$0xff]
    %v3214 = vld [vmem:[#allocation7 + $0xf8] sm:$0xff]
    %v3215 = vld [vmem:[#allocation7 + $0x100] sm:$0xff]
    %v3216 = vld [vmem:[#allocation7 + $0x108] sm:$0xff]
    %v3217 = vld [vmem:[#allocation7 + $0x110] sm:$0xff]
    %v3218 = vld [vmem:[#allocation7 + $0x118] sm:$0xff]
    %v3219 = vld [vmem:[#allocation7 + $0x120] sm:$0xff]
    %v3220 = vld [vmem:[#allocation7 + $0x128] sm:$0xff]
    %v3221 = vld [vmem:[#allocation7 + $0x130] sm:$0xff]
    %v3222 = vld [vmem:[#allocation7 + $0x138] sm:$0xff]
    %v3223 = vld [vmem:[#allocation7 + $0x140] sm:$0xff]
    %v3224 = vld [vmem:[#allocation7 + $0x148] sm:$0xff]
    %v3225 = vld [vmem:[#allocation7 + $0x150] sm:$0xff]
    %v3226 = vld [vmem:[#allocation7 + $0x158] sm:$0xff]
    %v3227 = vld [vmem:[#allocation7 + $0x160] sm:$0xff]
    %v3228 = vld [vmem:[#allocation7 + $0x168] sm:$0xff]
    %v3229 = vld [vmem:[#allocation7 + $0x170] sm:$0xff]
    %v3230 = vld [vmem:[#allocation7 + $0x178] sm:$0xff]
    %v3231 = vld [vmem:[#allocation7 + $0x180] sm:$0xff]
    %v3232 = vld [vmem:[#allocation7 + $0x188] sm:$0xff]
    %v3233 = vld [vmem:[#allocation7 + $0x190] sm:$0xff]
    %v3234 = vld [vmem:[#allocation7 + $0x198] sm:$0xff]
    %v3235 = vld [vmem:[#allocation7 + $0x1a0] sm:$0xff]
    %v3236 = vld [vmem:[#allocation7 + $0x1a8] sm:$0xff]
    %v3237 = vld [vmem:[#allocation7 + $0x1b0] sm:$0xff]
    %v3238 = vld [vmem:[#allocation7 + $0x1b8] sm:$0xff]
    %v3239 = vld [vmem:[#allocation7 + $0x1c0] sm:$0xff]
    %v3240 = vld [vmem:[#allocation7 + $0x1c8] sm:$0xff]
    %v3241 = vld [vmem:[#allocation7 + $0x1d0] sm:$0xff]
    %v3242 = vld [vmem:[#allocation7 + $0x1d8] sm:$0xff]
    %v3243 = vld [vmem:[#allocation7 + $0x1e0] sm:$0xff]
    %v3244 = vld [vmem:[#allocation7 + $0x1e8] sm:$0xff]
    %v3245 = vld [vmem:[#allocation7 + $0x1f0] sm:$0xff]
    %v3246 = vld [vmem:[#allocation7 + $0x1f8] sm:$0xff]
    %v3247 = vld [vmem:[#allocation27] sm:$0xf]
    %v3249 = vlaneseq
    %v3250 = vshrl.u32 %v3249, 7
    %v3251 = vsub.s32 0, %v3250
    %v3252 = vrot.slane %v3247, %v3251
    %v3253 = vlaneseq
    %v3254 = vshrl.u32 %v3253, 7
    %v3255 = vsub.s32 1, %v3254
    %v3256 = vrot.slane %v3247, %v3255
    %v3257 = vlaneseq
    %v3258 = vshrl.u32 %v3257, 7
    %v3259 = vsub.s32 2, %v3258
    %v3260 = vrot.slane %v3247, %v3259
    %v3261 = vlaneseq
    %v3262 = vshrl.u32 %v3261, 7
    %v3263 = vsub.s32 3, %v3262
    %v3264 = vrot.slane %v3247, %v3263
    %3269 = vmatprep.subr.bf16.mxu0 %v3184
    %3270 = vmatpush1.bf16.msra.mxu0 %v3183
    %3271 = vmatprep.subr.bf16.mxu0 %v3188
    %3272 = vmatpush1.bf16.msra.mxu0 %v3187
    %3273 = vmatprep.subr.bf16.mxu0 %v3192
    %3274 = vmatpush1.bf16.msra.mxu0 %v3191
    %3275 = vmatprep.subr.bf16.mxu0 %v3196
    %3276 = vmatpush1.bf16.msra.mxu0 %v3195
    %3277 = vmatprep.subr.bf16.mxu0 %v3200
    %3278 = vmatpush1.bf16.msra.mxu0 %v3199
    %3279 = vmatprep.subr.bf16.mxu0 %v3204
    %3280 = vmatpush1.bf16.msra.mxu0 %v3203
    %3281 = vmatprep.subr.bf16.mxu0 %v3208
    %3282 = vmatpush1.bf16.msra.mxu0 %v3207
    %3283 = vmatprep.subr.bf16.mxu0 %v3212
    %3284 = vmatpush1.bf16.msra.mxu0 %v3211
    %3285 = vmatprep.subr.bf16.mxu0 %v3216
    %3286 = vmatpush1.bf16.msra.mxu0 %v3215
    %3287 = vmatprep.subr.bf16.mxu0 %v3220
    %3288 = vmatpush1.bf16.msra.mxu0 %v3219
    %3289 = vmatprep.subr.bf16.mxu0 %v3224
    %3290 = vmatpush1.bf16.msra.mxu0 %v3223
    %3291 = vmatprep.subr.bf16.mxu0 %v3228
    %3292 = vmatpush1.bf16.msra.mxu0 %v3227
    %3293 = vmatprep.subr.bf16.mxu0 %v3232
    %3294 = vmatpush1.bf16.msra.mxu0 %v3231
    %3295 = vmatprep.subr.bf16.mxu0 %v3236
    %3296 = vmatpush1.bf16.msra.mxu0 %v3235
    %3297 = vmatprep.subr.bf16.mxu0 %v3240
    %3298 = vmatpush1.bf16.msra.mxu0 %v3239
    %3299 = vmatprep.subr.bf16.mxu0 %v3244
    %3300 = vmatpush1.bf16.msra.mxu0 %v3243
    %3301 = vmatprep.mubr.bf16.mxu0 %v3182
    %3302 = vmatmul.mubr.bf16.gmra.mrb[0].mxu0 %v3181
    %v3303 = vpop.f32.mrb[0].mxu0
    %v3304 = vadd.f32 %v3252, %v3303
    %v3305 = vpop.f32.mrb[0].mxu0
    %v3306 = vadd.f32 %v3256, %v3305
    %v3307 = vpop.f32.mrb[0].mxu0
    %v3308 = vadd.f32 %v3252, %v3307
    %v3309 = vpop.f32.mrb[0].mxu0
    %v3310 = vadd.f32 %v3256, %v3309
    %3311 = vdwg.mxu0
    %3312 = vmatprep.subr.bf16.mxu0 %v3186
    %3313 = vmatpush1.bf16.msra.mxu0 %v3185
    %3314 = vmatprep.subr.bf16.mxu0 %v3190
    %3315 = vmatpush1.bf16.msra.mxu0 %v3189
    %3316 = vmatprep.subr.bf16.mxu0 %v3194
    %3317 = vmatpush1.bf16.msra.mxu0 %v3193
    %3318 = vmatprep.subr.bf16.mxu0 %v3198
    %3319 = vmatpush1.bf16.msra.mxu0 %v3197
    %3320 = vmatprep.subr.bf16.mxu0 %v3202
    %3321 = vmatpush1.bf16.msra.mxu0 %v3201
    %3322 = vmatprep.subr.bf16.mxu0 %v3206
    %3323 = vmatpush1.bf16.msra.mxu0 %v3205
    %3324 = vmatprep.subr.bf16.mxu0 %v3210
    %3325 = vmatpush1.bf16.msra.mxu0 %v3209
    %3326 = vmatprep.subr.bf16.mxu0 %v3214
    %3327 = vmatpush1.bf16.msra.mxu0 %v3213
    %3328 = vmatprep.subr.bf16.mxu0 %v3218
    %3329 = vmatpush1.bf16.msra.mxu0 %v3217
    %3330 = vmatprep.subr.bf16.mxu0 %v3222
    %3331 = vmatpush1.bf16.msra.mxu0 %v3221
    %3332 = vmatprep.subr.bf16.mxu0 %v3226
    %3333 = vmatpush1.bf16.msra.mxu0 %v3225
    %3334 = vmatprep.subr.bf16.mxu0 %v3230
    %3335 = vmatpush1.bf16.msra.mxu0 %v3229
    %3336 = vmatprep.subr.bf16.mxu0 %v3234
    %3337 = vmatpush1.bf16.msra.mxu0 %v3233
    %3338 = vmatprep.subr.bf16.mxu0 %v3238
    %3339 = vmatpush1.bf16.msra.mxu0 %v3237
    %3340 = vmatprep.subr.bf16.mxu0 %v3242
    %3341 = vmatpush1.bf16.msra.mxu0 %v3241
    %3342 = vmatprep.subr.bf16.mxu0 %v3246
    %3343 = vmatpush1.bf16.msra.mxu0 %v3245
    %3344 = vmatprep.mubr.bf16.mxu0 %v3182
    %3345 = vmatmul.mubr.bf16.gmra.mrb[0].mxu0 %v3181
    %v3346 = vpop.f32.mrb[0].mxu0
    %v3347 = vadd.f32 %v3260, %v3346
    %v3348 = vpop.f32.mrb[0].mxu0
    %v3349 = vadd.f32 %v3264, %v3348
    %v3350 = vpop.f32.mrb[0].mxu0
    %v3351 = vadd.f32 %v3260, %v3350
    %v3352 = vpop.f32.mrb[0].mxu0
    %v3353 = vadd.f32 %v3264, %v3352
    %3354 = vdwg.mxu0
    %v3355 = vadd.f32 %v3304, %v2722
    %v3356 = vadd.f32 %v3306, %v2723
    %v3357 = vadd.f32 %v3347, %v2724
    %v3358 = vadd.f32 %v3349, %v2725
    %v3359 = vadd.f32 %v3308, %v2726
    %v3360 = vadd.f32 %v3310, %v2727
    %v3361 = vadd.f32 %v3351, %v2728
    %v3362 = vadd.f32 %v3353, %v2729
    %v3363 = vmax.f32 %v3355, 0.0
    %v3364 = vmax.f32 %v3356, 0.0
    %v3365 = vmax.f32 %v3357, 0.0
    %v3366 = vmax.f32 %v3358, 0.0
    %v3367 = vmax.f32 %v3359, 0.0
    %v3368 = vmax.f32 %v3360, 0.0
    %v3369 = vmax.f32 %v3361, 0.0
    %v3370 = vmax.f32 %v3362, 0.0
    %s3371 = sshll.u32 %s2731, 4
    %3372 = dma.done %s425, %s3371
    %v3373 = vpack.c.bf16 %v3367, %v3363
    %v3374 = vpack.c.bf16 %v3368, %v3364
    %v3375 = vpack.c.bf16 %v3369, %v3365
    %v3376 = vpack.c.bf16 %v3370, %v3366
    %v3377 = vld [vmem:[#allocation8] sm:$0xff]
    %v3378 = vld [vmem:[#allocation8 + $0x8] sm:$0xff]
    %v3379 = vld [vmem:[#allocation8 + $0x10] sm:$0xff]
    %v3380 = vld [vmem:[#allocation8 + $0x18] sm:$0xff]
    %v3381 = vld [vmem:[#allocation8 + $0x20] sm:$0xff]
    %v3382 = vld [vmem:[#allocation8 + $0x28] sm:$0xff]
    %v3383 = vld [vmem:[#allocation8 + $0x30] sm:$0xff]
    %v3384 = vld [vmem:[#allocation8 + $0x38] sm:$0xff]
    %v3385 = vld [vmem:[#allocation8 + $0x40] sm:$0xff]
    %v3386 = vld [vmem:[#allocation8 + $0x48] sm:$0xff]
    %v3387 = vld [vmem:[#allocation8 + $0x50] sm:$0xff]
    %v3388 = vld [vmem:[#allocation8 + $0x58] sm:$0xff]
    %v3389 = vld [vmem:[#allocation8 + $0x60] sm:$0xff]
    %v3390 = vld [vmem:[#allocation8 + $0x68] sm:$0xff]
    %v3391 = vld [vmem:[#allocation8 + $0x70] sm:$0xff]
    %v3392 = vld [vmem:[#allocation8 + $0x78] sm:$0xff]
    %v3393 = vld [vmem:[#allocation8 + $0x80] sm:$0xff]
    %v3394 = vld [vmem:[#allocation8 + $0x88] sm:$0xff]
    %v3395 = vld [vmem:[#allocation8 + $0x90] sm:$0xff]
    %v3396 = vld [vmem:[#allocation8 + $0x98] sm:$0xff]
    %v3397 = vld [vmem:[#allocation8 + $0xa0] sm:$0xff]
    %v3398 = vld [vmem:[#allocation8 + $0xa8] sm:$0xff]
    %v3399 = vld [vmem:[#allocation8 + $0xb0] sm:$0xff]
    %v3400 = vld [vmem:[#allocation8 + $0xb8] sm:$0xff]
    %v3401 = vld [vmem:[#allocation8 + $0xc0] sm:$0xff]
    %v3402 = vld [vmem:[#allocation8 + $0xc8] sm:$0xff]
    %v3403 = vld [vmem:[#allocation8 + $0xd0] sm:$0xff]
    %v3404 = vld [vmem:[#allocation8 + $0xd8] sm:$0xff]
    %v3405 = vld [vmem:[#allocation8 + $0xe0] sm:$0xff]
    %v3406 = vld [vmem:[#allocation8 + $0xe8] sm:$0xff]
    %v3407 = vld [vmem:[#allocation8 + $0xf0] sm:$0xff]
    %v3408 = vld [vmem:[#allocation8 + $0xf8] sm:$0xff]
    %v3409 = vld [vmem:[#allocation8 + $0x100] sm:$0xff]
    %v3410 = vld [vmem:[#allocation8 + $0x108] sm:$0xff]
    %v3411 = vld [vmem:[#allocation8 + $0x110] sm:$0xff]
    %v3412 = vld [vmem:[#allocation8 + $0x118] sm:$0xff]
    %v3413 = vld [vmem:[#allocation8 + $0x120] sm:$0xff]
    %v3414 = vld [vmem:[#allocation8 + $0x128] sm:$0xff]
    %v3415 = vld [vmem:[#allocation8 + $0x130] sm:$0xff]
    %v3416 = vld [vmem:[#allocation8 + $0x138] sm:$0xff]
    %v3417 = vld [vmem:[#allocation8 + $0x140] sm:$0xff]
    %v3418 = vld [vmem:[#allocation8 + $0x148] sm:$0xff]
    %v3419 = vld [vmem:[#allocation8 + $0x150] sm:$0xff]
    %v3420 = vld [vmem:[#allocation8 + $0x158] sm:$0xff]
    %v3421 = vld [vmem:[#allocation8 + $0x160] sm:$0xff]
    %v3422 = vld [vmem:[#allocation8 + $0x168] sm:$0xff]
    %v3423 = vld [vmem:[#allocation8 + $0x170] sm:$0xff]
    %v3424 = vld [vmem:[#allocation8 + $0x178] sm:$0xff]
    %v3425 = vld [vmem:[#allocation8 + $0x180] sm:$0xff]
    %v3426 = vld [vmem:[#allocation8 + $0x188] sm:$0xff]
    %v3427 = vld [vmem:[#allocation8 + $0x190] sm:$0xff]
    %v3428 = vld [vmem:[#allocation8 + $0x198] sm:$0xff]
    %v3429 = vld [vmem:[#allocation8 + $0x1a0] sm:$0xff]
    %v3430 = vld [vmem:[#allocation8 + $0x1a8] sm:$0xff]
    %v3431 = vld [vmem:[#allocation8 + $0x1b0] sm:$0xff]
    %v3432 = vld [vmem:[#allocation8 + $0x1b8] sm:$0xff]
    %v3433 = vld [vmem:[#allocation8 + $0x1c0] sm:$0xff]
    %v3434 = vld [vmem:[#allocation8 + $0x1c8] sm:$0xff]
    %v3435 = vld [vmem:[#allocation8 + $0x1d0] sm:$0xff]
    %v3436 = vld [vmem:[#allocation8 + $0x1d8] sm:$0xff]
    %v3437 = vld [vmem:[#allocation8 + $0x1e0] sm:$0xff]
    %v3438 = vld [vmem:[#allocation8 + $0x1e8] sm:$0xff]
    %v3439 = vld [vmem:[#allocation8 + $0x1f0] sm:$0xff]
    %v3440 = vld [vmem:[#allocation8 + $0x1f8] sm:$0xff]
    %v3441 = vld [vmem:[#allocation28] sm:$0x3]
    %v3443 = vlaneseq
    %v3444 = vshrl.u32 %v3443, 7
    %v3445 = vsub.s32 0, %v3444
    %v3446 = vrot.slane %v3441, %v3445
    %v3447 = vlaneseq
    %v3448 = vshrl.u32 %v3447, 7
    %v3449 = vsub.s32 1, %v3448
    %v3450 = vrot.slane %v3441, %v3449
    %3453 = vmatprep.subr.bf16.mxu0 %v3378
    %3454 = vmatpush1.bf16.msra.mxu0 %v3377
    %3455 = vmatprep.subr.bf16.mxu0 %v3380
    %3456 = vmatpush1.bf16.msra.mxu0 %v3379
    %3457 = vmatprep.subr.bf16.mxu0 %v3382
    %3458 = vmatpush1.bf16.msra.mxu0 %v3381
    %3459 = vmatprep.subr.bf16.mxu0 %v3384
    %3460 = vmatpush1.bf16.msra.mxu0 %v3383
    %3461 = vmatprep.subr.bf16.mxu0 %v3386
    %3462 = vmatpush1.bf16.msra.mxu0 %v3385
    %3463 = vmatprep.subr.bf16.mxu0 %v3388
    %3464 = vmatpush1.bf16.msra.mxu0 %v3387
    %3465 = vmatprep.subr.bf16.mxu0 %v3390
    %3466 = vmatpush1.bf16.msra.mxu0 %v3389
    %3467 = vmatprep.subr.bf16.mxu0 %v3392
    %3468 = vmatpush1.bf16.msra.mxu0 %v3391
    %3469 = vmatprep.subr.bf16.mxu0 %v3394
    %3470 = vmatpush1.bf16.msra.mxu0 %v3393
    %3471 = vmatprep.subr.bf16.mxu0 %v3396
    %3472 = vmatpush1.bf16.msra.mxu0 %v3395
    %3473 = vmatprep.subr.bf16.mxu0 %v3398
    %3474 = vmatpush1.bf16.msra.mxu0 %v3397
    %3475 = vmatprep.subr.bf16.mxu0 %v3400
    %3476 = vmatpush1.bf16.msra.mxu0 %v3399
    %3477 = vmatprep.subr.bf16.mxu0 %v3402
    %3478 = vmatpush1.bf16.msra.mxu0 %v3401
    %3479 = vmatprep.subr.bf16.mxu0 %v3404
    %3480 = vmatpush1.bf16.msra.mxu0 %v3403
    %3481 = vmatprep.subr.bf16.mxu0 %v3406
    %3482 = vmatpush1.bf16.msra.mxu0 %v3405
    %3483 = vmatprep.subr.bf16.mxu0 %v3408
    %3484 = vmatpush1.bf16.msra.mxu0 %v3407
    %3485 = vmatprep.mubr.bf16.mxu0 %v3374
    %3486 = vmatmul.mubr.bf16.gmra.mrb[0].mxu0 %v3373
    %v3487 = vpop.f32.mrb[0].mxu0
    %v3488 = vadd.f32 %v3446, %v3487
    %v3489 = vpop.f32.mrb[0].mxu0
    %v3490 = vadd.f32 %v3450, %v3489
    %v3491 = vpop.f32.mrb[0].mxu0
    %v3492 = vadd.f32 %v3446, %v3491
    %v3493 = vpop.f32.mrb[0].mxu0
    %v3494 = vadd.f32 %v3450, %v3493
    %3495 = vdwg.mxu0
    %3496 = vmatprep.subr.bf16.mxu0 %v3410
    %3497 = vmatpush1.bf16.msra.mxu0 %v3409
    %3498 = vmatprep.subr.bf16.mxu0 %v3412
    %3499 = vmatpush1.bf16.msra.mxu0 %v3411
    %3500 = vmatprep.subr.bf16.mxu0 %v3414
    %3501 = vmatpush1.bf16.msra.mxu0 %v3413
    %3502 = vmatprep.subr.bf16.mxu0 %v3416
    %3503 = vmatpush1.bf16.msra.mxu0 %v3415
    %3504 = vmatprep.subr.bf16.mxu0 %v3418
    %3505 = vmatpush1.bf16.msra.mxu0 %v3417
    %3506 = vmatprep.subr.bf16.mxu0 %v3420
    %3507 = vmatpush1.bf16.msra.mxu0 %v3419
    %3508 = vmatprep.subr.bf16.mxu0 %v3422
    %3509 = vmatpush1.bf16.msra.mxu0 %v3421
    %3510 = vmatprep.subr.bf16.mxu0 %v3424
    %3511 = vmatpush1.bf16.msra.mxu0 %v3423
    %3512 = vmatprep.subr.bf16.mxu0 %v3426
    %3513 = vmatpush1.bf16.msra.mxu0 %v3425
    %3514 = vmatprep.subr.bf16.mxu0 %v3428
    %3515 = vmatpush1.bf16.msra.mxu0 %v3427
    %3516 = vmatprep.subr.bf16.mxu0 %v3430
    %3517 = vmatpush1.bf16.msra.mxu0 %v3429
    %3518 = vmatprep.subr.bf16.mxu0 %v3432
    %3519 = vmatpush1.bf16.msra.mxu0 %v3431
    %3520 = vmatprep.subr.bf16.mxu0 %v3434
    %3521 = vmatpush1.bf16.msra.mxu0 %v3433
    %3522 = vmatprep.subr.bf16.mxu0 %v3436
    %3523 = vmatpush1.bf16.msra.mxu0 %v3435
    %3524 = vmatprep.subr.bf16.mxu0 %v3438
    %3525 = vmatpush1.bf16.msra.mxu0 %v3437
    %3526 = vmatprep.subr.bf16.mxu0 %v3440
    %3527 = vmatpush1.bf16.msra.mxu0 %v3439
    %3528 = vmatprep.mubr.bf16.mxu0 %v3376
    %3529 = vmatmul.mubr.bf16.gmra.mrb[0].mxu0 %v3375
    %v3530 = vpop.f32.mrb[0].mxu0
    %v3531 = vadd.f32 %v3488, %v3530
    %v3532 = vpop.f32.mrb[0].mxu0
    %v3533 = vadd.f32 %v3490, %v3532
    %v3534 = vpop.f32.mrb[0].mxu0
    %v3535 = vadd.f32 %v3492, %v3534
    %v3536 = vpop.f32.mrb[0].mxu0
    %v3537 = vadd.f32 %v3494, %v3536
    %3538 = vdwg.mxu0
    %v3539 = vmax.f32 %v3531, 0.0
    %v3540 = vmax.f32 %v3533, 0.0
    %v3541 = vmax.f32 %v3535, 0.0
    %v3542 = vmax.f32 %v3537, 0.0
    %s3543 = sshll.u32 %s2238, 4
    %3544 = dma.done %s460, %s3543
    %v3545 = vpack.c.bf16 %v3541, %v3539
    %v3546 = vpack.c.bf16 %v3542, %v3540
    %v3548 = vshrl.u32 %v3545, 16
    %v3550 = vrot.slane %v3548, 7
    %v3551 = vshll.u32 %v3545, 16
    %v3553 = vor.u32 %v3550, %v3551
    %v3555 = vshrl.u32 %v3546, 16
    %v3557 = vrot.slane %v3555, 7
    %v3558 = vshll.u32 %v3546, 16
    %v3560 = vor.u32 %v3557, %v3558
    %v3563 = vsel %vm2261, 0, %v3553
    %v3564 = vsel %vm2261, 0, %v3560
    %v3565 = vsel %vm2271, 0, %v3563
    %v3566 = vsel %vm2271, 0, %v3564
    %v3567 = vrot.slane %v3551, 1
    %v3568 = vor.u32 %v3548, %v3567
    %v3569 = vrot.slane %v3558, 1
    %v3570 = vor.u32 %v3555, %v3569
    %v3573 = vsel %vm2282, %v3568, 0
    %v3574 = vsel %vm2282, %v3570, 0
    %v3575 = vsel %vm2292, 0, %v3573
    %v3576 = vsel %vm2292, 0, %v3574
    %v3577 = vld [vmem:[#allocation9] sm:$0xff]
    %v3578 = vld [vmem:[#allocation9 + $0x8] sm:$0xff]
    %v3579 = vld [vmem:[#allocation9 + $0x10] sm:$0xff]
    %v3580 = vld [vmem:[#allocation9 + $0x18] sm:$0xff]
    %v3581 = vld [vmem:[#allocation9 + $0x20] sm:$0xff]
    %v3582 = vld [vmem:[#allocation9 + $0x28] sm:$0xff]
    %v3583 = vld [vmem:[#allocation9 + $0x30] sm:$0xff]
    %v3584 = vld [vmem:[#allocation9 + $0x38] sm:$0xff]
    %v3585 = vld [vmem:[#allocation9 + $0x40] sm:$0xff]
    %v3586 = vld [vmem:[#allocation9 + $0x48] sm:$0xff]
    %v3587 = vld [vmem:[#allocation9 + $0x50] sm:$0xff]
    %v3588 = vld [vmem:[#allocation9 + $0x58] sm:$0xff]
    %v3589 = vld [vmem:[#allocation9 + $0x60] sm:$0xff]
    %v3590 = vld [vmem:[#allocation9 + $0x68] sm:$0xff]
    %v3591 = vld [vmem:[#allocation9 + $0x70] sm:$0xff]
    %v3592 = vld [vmem:[#allocation9 + $0x78] sm:$0xff]
    %v3593 = vld [vmem:[#allocation9 + $0x80] sm:$0xff]
    %v3594 = vld [vmem:[#allocation9 + $0x88] sm:$0xff]
    %v3595 = vld [vmem:[#allocation9 + $0x90] sm:$0xff]
    %v3596 = vld [vmem:[#allocation9 + $0x98] sm:$0xff]
    %v3597 = vld [vmem:[#allocation9 + $0xa0] sm:$0xff]
    %v3598 = vld [vmem:[#allocation9 + $0xa8] sm:$0xff]
    %v3599 = vld [vmem:[#allocation9 + $0xb0] sm:$0xff]
    %v3600 = vld [vmem:[#allocation9 + $0xb8] sm:$0xff]
    %v3601 = vld [vmem:[#allocation9 + $0xc0] sm:$0xff]
    %v3602 = vld [vmem:[#allocation9 + $0xc8] sm:$0xff]
    %v3603 = vld [vmem:[#allocation9 + $0xd0] sm:$0xff]
    %v3604 = vld [vmem:[#allocation9 + $0xd8] sm:$0xff]
    %v3605 = vld [vmem:[#allocation9 + $0xe0] sm:$0xff]
    %v3606 = vld [vmem:[#allocation9 + $0xe8] sm:$0xff]
    %v3607 = vld [vmem:[#allocation9 + $0xf0] sm:$0xff]
    %v3608 = vld [vmem:[#allocation9 + $0xf8] sm:$0xff]
    %v3609 = vld [vmem:[#allocation9 + $0x100] sm:$0xff]
    %v3610 = vld [vmem:[#allocation9 + $0x108] sm:$0xff]
    %v3611 = vld [vmem:[#allocation9 + $0x110] sm:$0xff]
    %v3612 = vld [vmem:[#allocation9 + $0x118] sm:$0xff]
    %v3613 = vld [vmem:[#allocation9 + $0x120] sm:$0xff]
    %v3614 = vld [vmem:[#allocation9 + $0x128] sm:$0xff]
    %v3615 = vld [vmem:[#allocation9 + $0x130] sm:$0xff]
    %v3616 = vld [vmem:[#allocation9 + $0x138] sm:$0xff]
    %v3617 = vld [vmem:[#allocation9 + $0x140] sm:$0xff]
    %v3618 = vld [vmem:[#allocation9 + $0x148] sm:$0xff]
    %v3619 = vld [vmem:[#allocation9 + $0x150] sm:$0xff]
    %v3620 = vld [vmem:[#allocation9 + $0x158] sm:$0xff]
    %v3621 = vld [vmem:[#allocation9 + $0x160] sm:$0xff]
    %v3622 = vld [vmem:[#allocation9 + $0x168] sm:$0xff]
    %v3623 = vld [vmem:[#allocation9 + $0x170] sm:$0xff]
    %v3624 = vld [vmem:[#allocation9 + $0x178] sm:$0xff]
    %v3625 = vld [vmem:[#allocation9 + $0x180] sm:$0xff]
    %v3626 = vld [vmem:[#allocation9 + $0x188] sm:$0xff]
    %v3627 = vld [vmem:[#allocation9 + $0x190] sm:$0xff]
    %v3628 = vld [vmem:[#allocation9 + $0x198] sm:$0xff]
    %v3629 = vld [vmem:[#allocation9 + $0x1a0] sm:$0xff]
    %v3630 = vld [vmem:[#allocation9 + $0x1a8] sm:$0xff]
    %v3631 = vld [vmem:[#allocation9 + $0x1b0] sm:$0xff]
    %v3632 = vld [vmem:[#allocation9 + $0x1b8] sm:$0xff]
    %v3633 = vld [vmem:[#allocation9 + $0x1c0] sm:$0xff]
    %v3634 = vld [vmem:[#allocation9 + $0x1c8] sm:$0xff]
    %v3635 = vld [vmem:[#allocation9 + $0x1d0] sm:$0xff]
    %v3636 = vld [vmem:[#allocation9 + $0x1d8] sm:$0xff]
    %v3637 = vld [vmem:[#allocation9 + $0x1e0] sm:$0xff]
    %v3638 = vld [vmem:[#allocation9 + $0x1e8] sm:$0xff]
    %v3639 = vld [vmem:[#allocation9 + $0x1f0] sm:$0xff]
    %v3640 = vld [vmem:[#allocation9 + $0x1f8] sm:$0xff]
    %v3641 = vld [vmem:[#allocation9 + $0x200] sm:$0xff]
    %v3642 = vld [vmem:[#allocation9 + $0x208] sm:$0xff]
    %v3643 = vld [vmem:[#allocation9 + $0x210] sm:$0xff]
    %v3644 = vld [vmem:[#allocation9 + $0x218] sm:$0xff]
    %v3645 = vld [vmem:[#allocation9 + $0x220] sm:$0xff]
    %v3646 = vld [vmem:[#allocation9 + $0x228] sm:$0xff]
    %v3647 = vld [vmem:[#allocation9 + $0x230] sm:$0xff]
    %v3648 = vld [vmem:[#allocation9 + $0x238] sm:$0xff]
    %v3649 = vld [vmem:[#allocation9 + $0x240] sm:$0xff]
    %v3650 = vld [vmem:[#allocation9 + $0x248] sm:$0xff]
    %v3651 = vld [vmem:[#allocation9 + $0x250] sm:$0xff]
    %v3652 = vld [vmem:[#allocation9 + $0x258] sm:$0xff]
    %v3653 = vld [vmem:[#allocation9 + $0x260] sm:$0xff]
    %v3654 = vld [vmem:[#allocation9 + $0x268] sm:$0xff]
    %v3655 = vld [vmem:[#allocation9 + $0x270] sm:$0xff]
    %v3656 = vld [vmem:[#allocation9 + $0x278] sm:$0xff]
    %v3657 = vld [vmem:[#allocation9 + $0x280] sm:$0xff]
    %v3658 = vld [vmem:[#allocation9 + $0x288] sm:$0xff]
    %v3659 = vld [vmem:[#allocation9 + $0x290] sm:$0xff]
    %v3660 = vld [vmem:[#allocation9 + $0x298] sm:$0xff]
    %v3661 = vld [vmem:[#allocation9 + $0x2a0] sm:$0xff]
    %v3662 = vld [vmem:[#allocation9 + $0x2a8] sm:$0xff]
    %v3663 = vld [vmem:[#allocation9 + $0x2b0] sm:$0xff]
    %v3664 = vld [vmem:[#allocation9 + $0x2b8] sm:$0xff]
    %v3665 = vld [vmem:[#allocation9 + $0x2c0] sm:$0xff]
    %v3666 = vld [vmem:[#allocation9 + $0x2c8] sm:$0xff]
    %v3667 = vld [vmem:[#allocation9 + $0x2d0] sm:$0xff]
    %v3668 = vld [vmem:[#allocation9 + $0x2d8] sm:$0xff]
    %v3669 = vld [vmem:[#allocation9 + $0x2e0] sm:$0xff]
    %v3670 = vld [vmem:[#allocation9 + $0x2e8] sm:$0xff]
    %v3671 = vld [vmem:[#allocation9 + $0x2f0] sm:$0xff]
    %v3672 = vld [vmem:[#allocation9 + $0x2f8] sm:$0xff]
    %v3673 = vld [vmem:[#allocation30] sm:$0x3]
    %v3675 = vlaneseq
    %v3676 = vshrl.u32 %v3675, 7
    %v3677 = vsub.s32 0, %v3676
    %v3678 = vrot.slane %v3673, %v3677
    %v3679 = vlaneseq
    %v3680 = vshrl.u32 %v3679, 7
    %v3681 = vsub.s32 1, %v3680
    %v3682 = vrot.slane %v3673, %v3681
    %3685 = vmatprep.subr.bf16.mxu0 %v3578
    %3686 = vmatpush1.bf16.msra.mxu0 %v3577
    %3687 = vmatprep.subr.bf16.mxu0 %v3580
    %3688 = vmatpush1.bf16.msra.mxu0 %v3579
    %3689 = vmatprep.subr.bf16.mxu0 %v3582
    %3690 = vmatpush1.bf16.msra.mxu0 %v3581
    %3691 = vmatprep.subr.bf16.mxu0 %v3584
    %3692 = vmatpush1.bf16.msra.mxu0 %v3583
    %3693 = vmatprep.subr.bf16.mxu0 %v3586
    %3694 = vmatpush1.bf16.msra.mxu0 %v3585
    %3695 = vmatprep.subr.bf16.mxu0 %v3588
    %3696 = vmatpush1.bf16.msra.mxu0 %v3587
    %3697 = vmatprep.subr.bf16.mxu0 %v3590
    %3698 = vmatpush1.bf16.msra.mxu0 %v3589
    %3699 = vmatprep.subr.bf16.mxu0 %v3592
    %3700 = vmatpush1.bf16.msra.mxu0 %v3591
    %3701 = vmatprep.subr.bf16.mxu0 %v3594
    %3702 = vmatpush1.bf16.msra.mxu0 %v3593
    %3703 = vmatprep.subr.bf16.mxu0 %v3596
    %3704 = vmatpush1.bf16.msra.mxu0 %v3595
    %3705 = vmatprep.subr.bf16.mxu0 %v3598
    %3706 = vmatpush1.bf16.msra.mxu0 %v3597
    %3707 = vmatprep.subr.bf16.mxu0 %v3600
    %3708 = vmatpush1.bf16.msra.mxu0 %v3599
    %3709 = vmatprep.subr.bf16.mxu0 %v3602
    %3710 = vmatpush1.bf16.msra.mxu0 %v3601
    %3711 = vmatprep.subr.bf16.mxu0 %v3604
    %3712 = vmatpush1.bf16.msra.mxu0 %v3603
    %3713 = vmatprep.subr.bf16.mxu0 %v3606
    %3714 = vmatpush1.bf16.msra.mxu0 %v3605
    %3715 = vmatprep.subr.bf16.mxu0 %v3608
    %3716 = vmatpush1.bf16.msra.mxu0 %v3607
    %3717 = vmatprep.mubr.bf16.mxu0 %v3566
    %3718 = vmatmul.mubr.bf16.gmra.mrb[0].mxu0 %v3565
    %v3719 = vpop.f32.mrb[0].mxu0
    %v3720 = vadd.f32 %v3678, %v3719
    %v3721 = vpop.f32.mrb[0].mxu0
    %v3722 = vadd.f32 %v3682, %v3721
    %v3723 = vpop.f32.mrb[0].mxu0
    %v3724 = vadd.f32 %v3678, %v3723
    %v3725 = vpop.f32.mrb[0].mxu0
    %v3726 = vadd.f32 %v3682, %v3725
    %3727 = vdwg.mxu0
    %3728 = vmatprep.subr.bf16.mxu0 %v3610
    %3729 = vmatpush1.bf16.msra.mxu0 %v3609
    %3730 = vmatprep.subr.bf16.mxu0 %v3612
    %3731 = vmatpush1.bf16.msra.mxu0 %v3611
    %3732 = vmatprep.subr.bf16.mxu0 %v3614
    %3733 = vmatpush1.bf16.msra.mxu0 %v3613
    %3734 = vmatprep.subr.bf16.mxu0 %v3616
    %3735 = vmatpush1.bf16.msra.mxu0 %v3615
    %3736 = vmatprep.subr.bf16.mxu0 %v3618
    %3737 = vmatpush1.bf16.msra.mxu0 %v3617
    %3738 = vmatprep.subr.bf16.mxu0 %v3620
    %3739 = vmatpush1.bf16.msra.mxu0 %v3619
    %3740 = vmatprep.subr.bf16.mxu0 %v3622
    %3741 = vmatpush1.bf16.msra.mxu0 %v3621
    %3742 = vmatprep.subr.bf16.mxu0 %v3624
    %3743 = vmatpush1.bf16.msra.mxu0 %v3623
    %3744 = vmatprep.subr.bf16.mxu0 %v3626
    %3745 = vmatpush1.bf16.msra.mxu0 %v3625
    %3746 = vmatprep.subr.bf16.mxu0 %v3628
    %3747 = vmatpush1.bf16.msra.mxu0 %v3627
    %3748 = vmatprep.subr.bf16.mxu0 %v3630
    %3749 = vmatpush1.bf16.msra.mxu0 %v3629
    %3750 = vmatprep.subr.bf16.mxu0 %v3632
    %3751 = vmatpush1.bf16.msra.mxu0 %v3631
    %3752 = vmatprep.subr.bf16.mxu0 %v3634
    %3753 = vmatpush1.bf16.msra.mxu0 %v3633
    %3754 = vmatprep.subr.bf16.mxu0 %v3636
    %3755 = vmatpush1.bf16.msra.mxu0 %v3635
    %3756 = vmatprep.subr.bf16.mxu0 %v3638
    %3757 = vmatpush1.bf16.msra.mxu0 %v3637
    %3758 = vmatprep.subr.bf16.mxu0 %v3640
    %3759 = vmatpush1.bf16.msra.mxu0 %v3639
    %3760 = vmatprep.mubr.bf16.mxu0 %v3546
    %3761 = vmatmul.mubr.bf16.gmra.mrb[0].mxu0 %v3545
    %v3762 = vpop.f32.mrb[0].mxu0
    %v3763 = vadd.f32 %v3720, %v3762
    %v3764 = vpop.f32.mrb[0].mxu0
    %v3765 = vadd.f32 %v3722, %v3764
    %v3766 = vpop.f32.mrb[0].mxu0
    %v3767 = vadd.f32 %v3724, %v3766
    %v3768 = vpop.f32.mrb[0].mxu0
    %v3769 = vadd.f32 %v3726, %v3768
    %3770 = vdwg.mxu0
    %3771 = vmatprep.subr.bf16.mxu0 %v3642
    %3772 = vmatpush1.bf16.msra.mxu0 %v3641
    %3773 = vmatprep.subr.bf16.mxu0 %v3644
    %3774 = vmatpush1.bf16.msra.mxu0 %v3643
    %3775 = vmatprep.subr.bf16.mxu0 %v3646
    %3776 = vmatpush1.bf16.msra.mxu0 %v3645
    %3777 = vmatprep.subr.bf16.mxu0 %v3648
    %3778 = vmatpush1.bf16.msra.mxu0 %v3647
    %3779 = vmatprep.subr.bf16.mxu0 %v3650
    %3780 = vmatpush1.bf16.msra.mxu0 %v3649
    %3781 = vmatprep.subr.bf16.mxu0 %v3652
    %3782 = vmatpush1.bf16.msra.mxu0 %v3651
    %3783 = vmatprep.subr.bf16.mxu0 %v3654
    %3784 = vmatpush1.bf16.msra.mxu0 %v3653
    %3785 = vmatprep.subr.bf16.mxu0 %v3656
    %3786 = vmatpush1.bf16.msra.mxu0 %v3655
    %3787 = vmatprep.subr.bf16.mxu0 %v3658
    %3788 = vmatpush1.bf16.msra.mxu0 %v3657
    %3789 = vmatprep.subr.bf16.mxu0 %v3660
    %3790 = vmatpush1.bf16.msra.mxu0 %v3659
    %3791 = vmatprep.subr.bf16.mxu0 %v3662
    %3792 = vmatpush1.bf16.msra.mxu0 %v3661
    %3793 = vmatprep.subr.bf16.mxu0 %v3664
    %3794 = vmatpush1.bf16.msra.mxu0 %v3663
    %3795 = vmatprep.subr.bf16.mxu0 %v3666
    %3796 = vmatpush1.bf16.msra.mxu0 %v3665
    %3797 = vmatprep.subr.bf16.mxu0 %v3668
    %3798 = vmatpush1.bf16.msra.mxu0 %v3667
    %3799 = vmatprep.subr.bf16.mxu0 %v3670
    %3800 = vmatpush1.bf16.msra.mxu0 %v3669
    %3801 = vmatprep.subr.bf16.mxu0 %v3672
    %3802 = vmatpush1.bf16.msra.mxu0 %v3671
    %3803 = vmatprep.mubr.bf16.mxu0 %v3576
    %3804 = vmatmul.mubr.bf16.gmra.mrb[0].mxu0 %v3575
    %v3805 = vpop.f32.mrb[0].mxu0
    %v3806 = vadd.f32 %v3763, %v3805
    %v3807 = vpop.f32.mrb[0].mxu0
    %v3808 = vadd.f32 %v3765, %v3807
    %v3809 = vpop.f32.mrb[0].mxu0
    %v3810 = vadd.f32 %v3767, %v3809
    %v3811 = vpop.f32.mrb[0].mxu0
    %v3812 = vadd.f32 %v3769, %v3811
    %3813 = vdwg.mxu0
    %v3814 = vmax.f32 %v3806, 0.0
    %v3815 = vmax.f32 %v3808, 0.0
    %v3816 = vmax.f32 %v3810, 0.0
    %v3817 = vmax.f32 %v3812, 0.0
    %s3818 = sshll.u32 %s2537, 4
    %3819 = dma.done %s495, %s3818
    %v3820 = vpack.c.bf16 %v3816, %v3814
    %v3821 = vpack.c.bf16 %v3817, %v3815
    %v3822 = vld [vmem:[#allocation10] sm:$0xff]
    %v3823 = vld [vmem:[#allocation10 + $0x8] sm:$0xff]
    %v3824 = vld [vmem:[#allocation10 + $0x10] sm:$0xff]
    %v3825 = vld [vmem:[#allocation10 + $0x18] sm:$0xff]
    %v3826 = vld [vmem:[#allocation10 + $0x20] sm:$0xff]
    %v3827 = vld [vmem:[#allocation10 + $0x28] sm:$0xff]
    %v3828 = vld [vmem:[#allocation10 + $0x30] sm:$0xff]
    %v3829 = vld [vmem:[#allocation10 + $0x38] sm:$0xff]
    %v3830 = vld [vmem:[#allocation10 + $0x40] sm:$0xff]
    %v3831 = vld [vmem:[#allocation10 + $0x48] sm:$0xff]
    %v3832 = vld [vmem:[#allocation10 + $0x50] sm:$0xff]
    %v3833 = vld [vmem:[#allocation10 + $0x58] sm:$0xff]
    %v3834 = vld [vmem:[#allocation10 + $0x60] sm:$0xff]
    %v3835 = vld [vmem:[#allocation10 + $0x68] sm:$0xff]
    %v3836 = vld [vmem:[#allocation10 + $0x70] sm:$0xff]
    %v3837 = vld [vmem:[#allocation10 + $0x78] sm:$0xff]
    %v3838 = vld [vmem:[#allocation10 + $0x80] sm:$0xff]
    %v3839 = vld [vmem:[#allocation10 + $0x88] sm:$0xff]
    %v3840 = vld [vmem:[#allocation10 + $0x90] sm:$0xff]
    %v3841 = vld [vmem:[#allocation10 + $0x98] sm:$0xff]
    %v3842 = vld [vmem:[#allocation10 + $0xa0] sm:$0xff]
    %v3843 = vld [vmem:[#allocation10 + $0xa8] sm:$0xff]
    %v3844 = vld [vmem:[#allocation10 + $0xb0] sm:$0xff]
    %v3845 = vld [vmem:[#allocation10 + $0xb8] sm:$0xff]
    %v3846 = vld [vmem:[#allocation10 + $0xc0] sm:$0xff]
    %v3847 = vld [vmem:[#allocation10 + $0xc8] sm:$0xff]
    %v3848 = vld [vmem:[#allocation10 + $0xd0] sm:$0xff]
    %v3849 = vld [vmem:[#allocation10 + $0xd8] sm:$0xff]
    %v3850 = vld [vmem:[#allocation10 + $0xe0] sm:$0xff]
    %v3851 = vld [vmem:[#allocation10 + $0xe8] sm:$0xff]
    %v3852 = vld [vmem:[#allocation10 + $0xf0] sm:$0xff]
    %v3853 = vld [vmem:[#allocation10 + $0xf8] sm:$0xff]
    %v3854 = vld [vmem:[#allocation10 + $0x100] sm:$0xff]
    %v3855 = vld [vmem:[#allocation10 + $0x108] sm:$0xff]
    %v3856 = vld [vmem:[#allocation10 + $0x110] sm:$0xff]
    %v3857 = vld [vmem:[#allocation10 + $0x118] sm:$0xff]
    %v3858 = vld [vmem:[#allocation10 + $0x120] sm:$0xff]
    %v3859 = vld [vmem:[#allocation10 + $0x128] sm:$0xff]
    %v3860 = vld [vmem:[#allocation10 + $0x130] sm:$0xff]
    %v3861 = vld [vmem:[#allocation10 + $0x138] sm:$0xff]
    %v3862 = vld [vmem:[#allocation10 + $0x140] sm:$0xff]
    %v3863 = vld [vmem:[#allocation10 + $0x148] sm:$0xff]
    %v3864 = vld [vmem:[#allocation10 + $0x150] sm:$0xff]
    %v3865 = vld [vmem:[#allocation10 + $0x158] sm:$0xff]
    %v3866 = vld [vmem:[#allocation10 + $0x160] sm:$0xff]
    %v3867 = vld [vmem:[#allocation10 + $0x168] sm:$0xff]
    %v3868 = vld [vmem:[#allocation10 + $0x170] sm:$0xff]
    %v3869 = vld [vmem:[#allocation10 + $0x178] sm:$0xff]
    %v3870 = vld [vmem:[#allocation10 + $0x180] sm:$0xff]
    %v3871 = vld [vmem:[#allocation10 + $0x188] sm:$0xff]
    %v3872 = vld [vmem:[#allocation10 + $0x190] sm:$0xff]
    %v3873 = vld [vmem:[#allocation10 + $0x198] sm:$0xff]
    %v3874 = vld [vmem:[#allocation10 + $0x1a0] sm:$0xff]
    %v3875 = vld [vmem:[#allocation10 + $0x1a8] sm:$0xff]
    %v3876 = vld [vmem:[#allocation10 + $0x1b0] sm:$0xff]
    %v3877 = vld [vmem:[#allocation10 + $0x1b8] sm:$0xff]
    %v3878 = vld [vmem:[#allocation10 + $0x1c0] sm:$0xff]
    %v3879 = vld [vmem:[#allocation10 + $0x1c8] sm:$0xff]
    %v3880 = vld [vmem:[#allocation10 + $0x1d0] sm:$0xff]
    %v3881 = vld [vmem:[#allocation10 + $0x1d8] sm:$0xff]
    %v3882 = vld [vmem:[#allocation10 + $0x1e0] sm:$0xff]
    %v3883 = vld [vmem:[#allocation10 + $0x1e8] sm:$0xff]
    %v3884 = vld [vmem:[#allocation10 + $0x1f0] sm:$0xff]
    %v3885 = vld [vmem:[#allocation10 + $0x1f8] sm:$0xff]
    %v3886 = vld [vmem:[#allocation31] sm:$0xf]
    %v3888 = vlaneseq
    %v3889 = vshrl.u32 %v3888, 7
    %v3890 = vsub.s32 0, %v3889
    %v3891 = vrot.slane %v3886, %v3890
    %v3892 = vlaneseq
    %v3893 = vshrl.u32 %v3892, 7
    %v3894 = vsub.s32 1, %v3893
    %v3895 = vrot.slane %v3886, %v3894
    %v3896 = vlaneseq
    %v3897 = vshrl.u32 %v3896, 7
    %v3898 = vsub.s32 2, %v3897
    %v3899 = vrot.slane %v3886, %v3898
    %v3900 = vlaneseq
    %v3901 = vshrl.u32 %v3900, 7
    %v3902 = vsub.s32 3, %v3901
    %v3903 = vrot.slane %v3886, %v3902
    %3908 = vmatprep.subr.bf16.mxu0 %v3823
    %3909 = vmatpush1.bf16.msra.mxu0 %v3822
    %3910 = vmatprep.subr.bf16.mxu0 %v3827
    %3911 = vmatpush1.bf16.msra.mxu0 %v3826
    %3912 = vmatprep.subr.bf16.mxu0 %v3831
    %3913 = vmatpush1.bf16.msra.mxu0 %v3830
    %3914 = vmatprep.subr.bf16.mxu0 %v3835
    %3915 = vmatpush1.bf16.msra.mxu0 %v3834
    %3916 = vmatprep.subr.bf16.mxu0 %v3839
    %3917 = vmatpush1.bf16.msra.mxu0 %v3838
    %3918 = vmatprep.subr.bf16.mxu0 %v3843
    %3919 = vmatpush1.bf16.msra.mxu0 %v3842
    %3920 = vmatprep.subr.bf16.mxu0 %v3847
    %3921 = vmatpush1.bf16.msra.mxu0 %v3846
    %3922 = vmatprep.subr.bf16.mxu0 %v3851
    %3923 = vmatpush1.bf16.msra.mxu0 %v3850
    %3924 = vmatprep.subr.bf16.mxu0 %v3855
    %3925 = vmatpush1.bf16.msra.mxu0 %v3854
    %3926 = vmatprep.subr.bf16.mxu0 %v3859
    %3927 = vmatpush1.bf16.msra.mxu0 %v3858
    %3928 = vmatprep.subr.bf16.mxu0 %v3863
    %3929 = vmatpush1.bf16.msra.mxu0 %v3862
    %3930 = vmatprep.subr.bf16.mxu0 %v3867
    %3931 = vmatpush1.bf16.msra.mxu0 %v3866
    %3932 = vmatprep.subr.bf16.mxu0 %v3871
    %3933 = vmatpush1.bf16.msra.mxu0 %v3870
    %3934 = vmatprep.subr.bf16.mxu0 %v3875
    %3935 = vmatpush1.bf16.msra.mxu0 %v3874
    %3936 = vmatprep.subr.bf16.mxu0 %v3879
    %3937 = vmatpush1.bf16.msra.mxu0 %v3878
    %3938 = vmatprep.subr.bf16.mxu0 %v3883
    %3939 = vmatpush1.bf16.msra.mxu0 %v3882
    %3940 = vmatprep.mubr.bf16.mxu0 %v3821
    %3941 = vmatmul.mubr.bf16.gmra.mrb[0].mxu0 %v3820
    %v3942 = vpop.f32.mrb[0].mxu0
    %v3943 = vadd.f32 %v3891, %v3942
    %v3944 = vpop.f32.mrb[0].mxu0
    %v3945 = vadd.f32 %v3895, %v3944
    %v3946 = vpop.f32.mrb[0].mxu0
    %v3947 = vadd.f32 %v3891, %v3946
    %v3948 = vpop.f32.mrb[0].mxu0
    %v3949 = vadd.f32 %v3895, %v3948
    %3950 = vdwg.mxu0
    %3951 = vmatprep.subr.bf16.mxu0 %v3825
    %3952 = vmatpush1.bf16.msra.mxu0 %v3824
    %3953 = vmatprep.subr.bf16.mxu0 %v3829
    %3954 = vmatpush1.bf16.msra.mxu0 %v3828
    %3955 = vmatprep.subr.bf16.mxu0 %v3833
    %3956 = vmatpush1.bf16.msra.mxu0 %v3832
    %3957 = vmatprep.subr.bf16.mxu0 %v3837
    %3958 = vmatpush1.bf16.msra.mxu0 %v3836
    %3959 = vmatprep.subr.bf16.mxu0 %v3841
    %3960 = vmatpush1.bf16.msra.mxu0 %v3840
    %3961 = vmatprep.subr.bf16.mxu0 %v3845
    %3962 = vmatpush1.bf16.msra.mxu0 %v3844
    %3963 = vmatprep.subr.bf16.mxu0 %v3849
    %3964 = vmatpush1.bf16.msra.mxu0 %v3848
    %3965 = vmatprep.subr.bf16.mxu0 %v3853
    %3966 = vmatpush1.bf16.msra.mxu0 %v3852
    %3967 = vmatprep.subr.bf16.mxu0 %v3857
    %3968 = vmatpush1.bf16.msra.mxu0 %v3856
    %3969 = vmatprep.subr.bf16.mxu0 %v3861
    %3970 = vmatpush1.bf16.msra.mxu0 %v3860
    %3971 = vmatprep.subr.bf16.mxu0 %v3865
    %3972 = vmatpush1.bf16.msra.mxu0 %v3864
    %3973 = vmatprep.subr.bf16.mxu0 %v3869
    %3974 = vmatpush1.bf16.msra.mxu0 %v3868
    %3975 = vmatprep.subr.bf16.mxu0 %v3873
    %3976 = vmatpush1.bf16.msra.mxu0 %v3872
    %3977 = vmatprep.subr.bf16.mxu0 %v3877
    %3978 = vmatpush1.bf16.msra.mxu0 %v3876
    %3979 = vmatprep.subr.bf16.mxu0 %v3881
    %3980 = vmatpush1.bf16.msra.mxu0 %v3880
    %3981 = vmatprep.subr.bf16.mxu0 %v3885
    %3982 = vmatpush1.bf16.msra.mxu0 %v3884
    %3983 = vmatprep.mubr.bf16.mxu0 %v3821
    %3984 = vmatmul.mubr.bf16.gmra.mrb[0].mxu0 %v3820
    %v3985 = vpop.f32.mrb[0].mxu0
    %v3986 = vadd.f32 %v3899, %v3985
    %v3987 = vpop.f32.mrb[0].mxu0
    %v3988 = vadd.f32 %v3903, %v3987
    %v3989 = vpop.f32.mrb[0].mxu0
    %v3990 = vadd.f32 %v3899, %v3989
    %v3991 = vpop.f32.mrb[0].mxu0
    %v3992 = vadd.f32 %v3903, %v3991
    %3993 = vdwg.mxu0
    %v3994 = vadd.f32 %v3943, %v3363
    %v3995 = vadd.f32 %v3945, %v3364
    %v3996 = vadd.f32 %v3986, %v3365
    %v3997 = vadd.f32 %v3988, %v3366
    %v3998 = vadd.f32 %v3947, %v3367
    %v3999 = vadd.f32 %v3949, %v3368
    %v4000 = vadd.f32 %v3990, %v3369
    %v4001 = vadd.f32 %v3992, %v3370
    %v4002 = vmax.f32 %v3994, 0.0
    %v4003 = vmax.f32 %v3995, 0.0
    %v4004 = vmax.f32 %v3996, 0.0
    %v4005 = vmax.f32 %v3997, 0.0
    %v4006 = vmax.f32 %v3998, 0.0
    %v4007 = vmax.f32 %v3999, 0.0
    %v4008 = vmax.f32 %v4000, 0.0
    %v4009 = vmax.f32 %v4001, 0.0
    %v4010 = vrot.slane %v4002, 4
    %v4011 = vadd.f32 %v4002, %v4010
    %v4012 = vrot.slane %v4011, 2
    %v4013 = vadd.f32 %v4011, %v4012
    %v4014 = vrot.slane %v4013, 1
    %v4015 = vadd.f32 %v4013, %v4014
    %v4016 = vrot.slane %v4003, 4
    %v4017 = vadd.f32 %v4003, %v4016
    %v4018 = vrot.slane %v4017, 2
    %v4019 = vadd.f32 %v4017, %v4018
    %v4020 = vrot.slane %v4019, 1
    %v4021 = vadd.f32 %v4019, %v4020
    %v4022 = vrot.slane %v4004, 4
    %v4023 = vadd.f32 %v4004, %v4022
    %v4024 = vrot.slane %v4023, 2
    %v4025 = vadd.f32 %v4023, %v4024
    %v4026 = vrot.slane %v4025, 1
    %v4027 = vadd.f32 %v4025, %v4026
    %v4028 = vrot.slane %v4005, 4
    %v4029 = vadd.f32 %v4005, %v4028
    %v4030 = vrot.slane %v4029, 2
    %v4031 = vadd.f32 %v4029, %v4030
    %v4032 = vrot.slane %v4031, 1
    %v4033 = vadd.f32 %v4031, %v4032
    %v4034 = vrot.slane %v4006, 4
    %v4035 = vadd.f32 %v4006, %v4034
    %v4036 = vrot.slane %v4035, 2
    %v4037 = vadd.f32 %v4035, %v4036
    %v4038 = vrot.slane %v4037, 1
    %v4039 = vadd.f32 %v4037, %v4038
    %v4040 = vrot.slane %v4007, 4
    %v4041 = vadd.f32 %v4007, %v4040
    %v4042 = vrot.slane %v4041, 2
    %v4043 = vadd.f32 %v4041, %v4042
    %v4044 = vrot.slane %v4043, 1
    %v4045 = vadd.f32 %v4043, %v4044
    %v4046 = vrot.slane %v4008, 4
    %v4047 = vadd.f32 %v4008, %v4046
    %v4048 = vrot.slane %v4047, 2
    %v4049 = vadd.f32 %v4047, %v4048
    %v4050 = vrot.slane %v4049, 1
    %v4051 = vadd.f32 %v4049, %v4050
    %v4052 = vrot.slane %v4009, 4
    %v4053 = vadd.f32 %v4009, %v4052
    %v4054 = vrot.slane %v4053, 2
    %v4055 = vadd.f32 %v4053, %v4054
    %v4056 = vrot.slane %v4055, 1
    %v4057 = vadd.f32 %v4055, %v4056
    %v4058 = vrcp.pop 8.0
    %v4059 = vmul.f32 %v4015, %v4058
    %v4060 = vmul.f32 %v4021, %v4058
    %v4061 = vmul.f32 %v4027, %v4058
    %v4062 = vmul.f32 %v4033, %v4058
    %v4063 = vmul.f32 %v4039, %v4058
    %v4064 = vmul.f32 %v4045, %v4058
    %v4065 = vmul.f32 %v4051, %v4058
    %v4066 = vmul.f32 %v4057, %v4058
    %s4067 = smul.u32 %s2730, 4
    %s4068 = sshll.u32 %s4067, 4
    %4069 = dma.done %s530, %s4068
    %v4070 = vpack.c.bf16 %v4059, %v4059
    %v4071 = vpack.c.bf16 %v4060, %v4060
    %v4072 = vpack.c.bf16 %v4061, %v4061
    %v4073 = vpack.c.bf16 %v4062, %v4062
    %v4074 = vpack.c.bf16 %v4063, %v4063
    %v4075 = vpack.c.bf16 %v4064, %v4064
    %v4076 = vpack.c.bf16 %v4065, %v4065
    %v4077 = vpack.c.bf16 %v4066, %v4066
    %v4078 = vld [vmem:[#allocation11] sm:$0xff]
    %v4079 = vld [vmem:[#allocation11 + $0x8] sm:$0xff]
    %v4080 = vld [vmem:[#allocation11 + $0x10] sm:$0xff]
    %v4081 = vld [vmem:[#allocation11 + $0x18] sm:$0xff]
    %v4082 = vld [vmem:[#allocation11 + $0x20] sm:$0xff]
    %v4083 = vld [vmem:[#allocation11 + $0x28] sm:$0xff]
    %v4084 = vld [vmem:[#allocation11 + $0x30] sm:$0xff]
    %v4085 = vld [vmem:[#allocation11 + $0x38] sm:$0xff]
    %v4086 = vld [vmem:[#allocation11 + $0x40] sm:$0xff]
    %v4087 = vld [vmem:[#allocation11 + $0x48] sm:$0xff]
    %v4088 = vld [vmem:[#allocation11 + $0x50] sm:$0xff]
    %v4089 = vld [vmem:[#allocation11 + $0x58] sm:$0xff]
    %v4090 = vld [vmem:[#allocation11 + $0x60] sm:$0xff]
    %v4091 = vld [vmem:[#allocation11 + $0x68] sm:$0xff]
    %v4092 = vld [vmem:[#allocation11 + $0x70] sm:$0xff]
    %v4093 = vld [vmem:[#allocation11 + $0x78] sm:$0xff]
    %v4094 = vld [vmem:[#allocation11 + $0x80] sm:$0xff]
    %v4095 = vld [vmem:[#allocation11 + $0x88] sm:$0xff]
    %v4096 = vld [vmem:[#allocation11 + $0x90] sm:$0xff]
    %v4097 = vld [vmem:[#allocation11 + $0x98] sm:$0xff]
    %v4098 = vld [vmem:[#allocation11 + $0xa0] sm:$0xff]
    %v4099 = vld [vmem:[#allocation11 + $0xa8] sm:$0xff]
    %v4100 = vld [vmem:[#allocation11 + $0xb0] sm:$0xff]
    %v4101 = vld [vmem:[#allocation11 + $0xb8] sm:$0xff]
    %v4102 = vld [vmem:[#allocation11 + $0xc0] sm:$0xff]
    %v4103 = vld [vmem:[#allocation11 + $0xc8] sm:$0xff]
    %v4104 = vld [vmem:[#allocation11 + $0xd0] sm:$0xff]
    %v4105 = vld [vmem:[#allocation11 + $0xd8] sm:$0xff]
    %v4106 = vld [vmem:[#allocation11 + $0xe0] sm:$0xff]
    %v4107 = vld [vmem:[#allocation11 + $0xe8] sm:$0xff]
    %v4108 = vld [vmem:[#allocation11 + $0xf0] sm:$0xff]
    %v4109 = vld [vmem:[#allocation11 + $0xf8] sm:$0xff]
    %v4110 = vld [vmem:[#allocation11 + $0x100] sm:$0xff]
    %v4111 = vld [vmem:[#allocation11 + $0x108] sm:$0xff]
    %v4112 = vld [vmem:[#allocation11 + $0x110] sm:$0xff]
    %v4113 = vld [vmem:[#allocation11 + $0x118] sm:$0xff]
    %v4114 = vld [vmem:[#allocation11 + $0x120] sm:$0xff]
    %v4115 = vld [vmem:[#allocation11 + $0x128] sm:$0xff]
    %v4116 = vld [vmem:[#allocation11 + $0x130] sm:$0xff]
    %v4117 = vld [vmem:[#allocation11 + $0x138] sm:$0xff]
    %v4118 = vld [vmem:[#allocation11 + $0x140] sm:$0xff]
    %v4119 = vld [vmem:[#allocation11 + $0x148] sm:$0xff]
    %v4120 = vld [vmem:[#allocation11 + $0x150] sm:$0xff]
    %v4121 = vld [vmem:[#allocation11 + $0x158] sm:$0xff]
    %v4122 = vld [vmem:[#allocation11 + $0x160] sm:$0xff]
    %v4123 = vld [vmem:[#allocation11 + $0x168] sm:$0xff]
    %v4124 = vld [vmem:[#allocation11 + $0x170] sm:$0xff]
    %v4125 = vld [vmem:[#allocation11 + $0x178] sm:$0xff]
    %v4126 = vld [vmem:[#allocation11 + $0x180] sm:$0xff]
    %v4127 = vld [vmem:[#allocation11 + $0x188] sm:$0xff]
    %v4128 = vld [vmem:[#allocation11 + $0x190] sm:$0xff]
    %v4129 = vld [vmem:[#allocation11 + $0x198] sm:$0xff]
    %v4130 = vld [vmem:[#allocation11 + $0x1a0] sm:$0xff]
    %v4131 = vld [vmem:[#allocation11 + $0x1a8] sm:$0xff]
    %v4132 = vld [vmem:[#allocation11 + $0x1b0] sm:$0xff]
    %v4133 = vld [vmem:[#allocation11 + $0x1b8] sm:$0xff]
    %v4134 = vld [vmem:[#allocation11 + $0x1c0] sm:$0xff]
    %v4135 = vld [vmem:[#allocation11 + $0x1c8] sm:$0xff]
    %v4136 = vld [vmem:[#allocation11 + $0x1d0] sm:$0xff]
    %v4137 = vld [vmem:[#allocation11 + $0x1d8] sm:$0xff]
    %v4138 = vld [vmem:[#allocation11 + $0x1e0] sm:$0xff]
    %v4139 = vld [vmem:[#allocation11 + $0x1e8] sm:$0xff]
    %v4140 = vld [vmem:[#allocation11 + $0x1f0] sm:$0xff]
    %v4141 = vld [vmem:[#allocation11 + $0x1f8] sm:$0xff]
    %v4142 = vld [vmem:[#allocation11 + $0x200] sm:$0xff]
    %v4143 = vld [vmem:[#allocation11 + $0x208] sm:$0xff]
    %v4144 = vld [vmem:[#allocation11 + $0x210] sm:$0xff]
    %v4145 = vld [vmem:[#allocation11 + $0x218] sm:$0xff]
    %v4146 = vld [vmem:[#allocation11 + $0x220] sm:$0xff]
    %v4147 = vld [vmem:[#allocation11 + $0x228] sm:$0xff]
    %v4148 = vld [vmem:[#allocation11 + $0x230] sm:$0xff]
    %v4149 = vld [vmem:[#allocation11 + $0x238] sm:$0xff]
    %v4150 = vld [vmem:[#allocation11 + $0x240] sm:$0xff]
    %v4151 = vld [vmem:[#allocation11 + $0x248] sm:$0xff]
    %v4152 = vld [vmem:[#allocation11 + $0x250] sm:$0xff]
    %v4153 = vld [vmem:[#allocation11 + $0x258] sm:$0xff]
    %v4154 = vld [vmem:[#allocation11 + $0x260] sm:$0xff]
    %v4155 = vld [vmem:[#allocation11 + $0x268] sm:$0xff]
    %v4156 = vld [vmem:[#allocation11 + $0x270] sm:$0xff]
    %v4157 = vld [vmem:[#allocation11 + $0x278] sm:$0xff]
    %v4158 = vld [vmem:[#allocation11 + $0x280] sm:$0xff]
    %v4159 = vld [vmem:[#allocation11 + $0x288] sm:$0xff]
    %v4160 = vld [vmem:[#allocation11 + $0x290] sm:$0xff]
    %v4161 = vld [vmem:[#allocation11 + $0x298] sm:$0xff]
    %v4162 = vld [vmem:[#allocation11 + $0x2a0] sm:$0xff]
    %v4163 = vld [vmem:[#allocation11 + $0x2a8] sm:$0xff]
    %v4164 = vld [vmem:[#allocation11 + $0x2b0] sm:$0xff]
    %v4165 = vld [vmem:[#allocation11 + $0x2b8] sm:$0xff]
    %v4166 = vld [vmem:[#allocation11 + $0x2c0] sm:$0xff]
    %v4167 = vld [vmem:[#allocation11 + $0x2c8] sm:$0xff]
    %v4168 = vld [vmem:[#allocation11 + $0x2d0] sm:$0xff]
    %v4169 = vld [vmem:[#allocation11 + $0x2d8] sm:$0xff]
    %v4170 = vld [vmem:[#allocation11 + $0x2e0] sm:$0xff]
    %v4171 = vld [vmem:[#allocation11 + $0x2e8] sm:$0xff]
    %v4172 = vld [vmem:[#allocation11 + $0x2f0] sm:$0xff]
    %v4173 = vld [vmem:[#allocation11 + $0x2f8] sm:$0xff]
    %v4174 = vld [vmem:[#allocation11 + $0x300] sm:$0xff]
    %v4175 = vld [vmem:[#allocation11 + $0x308] sm:$0xff]
    %v4176 = vld [vmem:[#allocation11 + $0x310] sm:$0xff]
    %v4177 = vld [vmem:[#allocation11 + $0x318] sm:$0xff]
    %v4178 = vld [vmem:[#allocation11 + $0x320] sm:$0xff]
    %v4179 = vld [vmem:[#allocation11 + $0x328] sm:$0xff]
    %v4180 = vld [vmem:[#allocation11 + $0x330] sm:$0xff]
    %v4181 = vld [vmem:[#allocation11 + $0x338] sm:$0xff]
    %v4182 = vld [vmem:[#allocation11 + $0x340] sm:$0xff]
    %v4183 = vld [vmem:[#allocation11 + $0x348] sm:$0xff]
    %v4184 = vld [vmem:[#allocation11 + $0x350] sm:$0xff]
    %v4185 = vld [vmem:[#allocation11 + $0x358] sm:$0xff]
    %v4186 = vld [vmem:[#allocation11 + $0x360] sm:$0xff]
    %v4187 = vld [vmem:[#allocation11 + $0x368] sm:$0xff]
    %v4188 = vld [vmem:[#allocation11 + $0x370] sm:$0xff]
    %v4189 = vld [vmem:[#allocation11 + $0x378] sm:$0xff]
    %v4190 = vld [vmem:[#allocation11 + $0x380] sm:$0xff]
    %v4191 = vld [vmem:[#allocation11 + $0x388] sm:$0xff]
    %v4192 = vld [vmem:[#allocation11 + $0x390] sm:$0xff]
    %v4193 = vld [vmem:[#allocation11 + $0x398] sm:$0xff]
    %v4194 = vld [vmem:[#allocation11 + $0x3a0] sm:$0xff]
    %v4195 = vld [vmem:[#allocation11 + $0x3a8] sm:$0xff]
    %v4196 = vld [vmem:[#allocation11 + $0x3b0] sm:$0xff]
    %v4197 = vld [vmem:[#allocation11 + $0x3b8] sm:$0xff]
    %v4198 = vld [vmem:[#allocation11 + $0x3c0] sm:$0xff]
    %v4199 = vld [vmem:[#allocation11 + $0x3c8] sm:$0xff]
    %v4200 = vld [vmem:[#allocation11 + $0x3d0] sm:$0xff]
    %v4201 = vld [vmem:[#allocation11 + $0x3d8] sm:$0xff]
    %v4202 = vld [vmem:[#allocation11 + $0x3e0] sm:$0xff]
    %v4203 = vld [vmem:[#allocation11 + $0x3e8] sm:$0xff]
    %v4204 = vld [vmem:[#allocation11 + $0x3f0] sm:$0xff]
    %v4205 = vld [vmem:[#allocation11 + $0x3f8] sm:$0xff]
    %v4206 = vld [vmem:[#allocation33] sm:$0xf]
    %v4208 = vlaneseq
    %v4209 = vshrl.u32 %v4208, 7
    %v4210 = vsub.s32 0, %v4209
    %v4211 = vrot.slane %v4206, %v4210
    %v4212 = vlaneseq
    %v4213 = vshrl.u32 %v4212, 7
    %v4214 = vsub.s32 1, %v4213
    %v4215 = vrot.slane %v4206, %v4214
    %v4216 = vlaneseq
    %v4217 = vshrl.u32 %v4216, 7
    %v4218 = vsub.s32 2, %v4217
    %v4219 = vrot.slane %v4206, %v4218
    %v4220 = vlaneseq
    %v4221 = vshrl.u32 %v4220, 7
    %v4222 = vsub.s32 3, %v4221
    %v4223 = vrot.slane %v4206, %v4222
    %v4236 = vunpack.c.l.b16 %v4070
    %v4237 = vunpack.c.l.b16 %v4071
    %v4238 = vunpack.c.l.b16 %v4072
    %v4239 = vunpack.c.l.b16 %v4073
    %v4240 = vunpack.c.l.b16 %v4074
    %v4241 = vunpack.c.l.b16 %v4075
    %v4242 = vunpack.c.l.b16 %v4076
    %v4243 = vunpack.c.l.b16 %v4077
    %vm4244 = vcmask 1041409
    %v4245 = vsel %vm4244, %v4240, %v4236
    %v4246 = vsel %vm4244, %v4241, %v4237
    %v4247 = vsel %vm4244, %v4242, %v4238
    %v4248 = vsel %vm4244, %v4243, %v4239
    %v4249 = vpack.c.b16 %v4245, %v4245
    %v4250 = vpack.c.b16 %v4246, %v4246
    %v4251 = vpack.c.b16 %v4247, %v4247
    %v4252 = vpack.c.b16 %v4248, %v4248
    %4257 = vmatprep.subr.bf16.mxu0 %v4079
    %4258 = vmatpush1.bf16.msra.mxu0 %v4078
    %4259 = vmatprep.subr.bf16.mxu0 %v4083
    %4260 = vmatpush1.bf16.msra.mxu0 %v4082
    %4261 = vmatprep.subr.bf16.mxu0 %v4087
    %4262 = vmatpush1.bf16.msra.mxu0 %v4086
    %4263 = vmatprep.subr.bf16.mxu0 %v4091
    %4264 = vmatpush1.bf16.msra.mxu0 %v4090
    %4265 = vmatprep.subr.bf16.mxu0 %v4095
    %4266 = vmatpush1.bf16.msra.mxu0 %v4094
    %4267 = vmatprep.subr.bf16.mxu0 %v4099
    %4268 = vmatpush1.bf16.msra.mxu0 %v4098
    %4269 = vmatprep.subr.bf16.mxu0 %v4103
    %4270 = vmatpush1.bf16.msra.mxu0 %v4102
    %4271 = vmatprep.subr.bf16.mxu0 %v4107
    %4272 = vmatpush1.bf16.msra.mxu0 %v4106
    %4273 = vmatprep.subr.bf16.mxu0 %v4111
    %4274 = vmatpush1.bf16.msra.mxu0 %v4110
    %4275 = vmatprep.subr.bf16.mxu0 %v4115
    %4276 = vmatpush1.bf16.msra.mxu0 %v4114
    %4277 = vmatprep.subr.bf16.mxu0 %v4119
    %4278 = vmatpush1.bf16.msra.mxu0 %v4118
    %4279 = vmatprep.subr.bf16.mxu0 %v4123
    %4280 = vmatpush1.bf16.msra.mxu0 %v4122
    %4281 = vmatprep.subr.bf16.mxu0 %v4127
    %4282 = vmatpush1.bf16.msra.mxu0 %v4126
    %4283 = vmatprep.subr.bf16.mxu0 %v4131
    %4284 = vmatpush1.bf16.msra.mxu0 %v4130
    %4285 = vmatprep.subr.bf16.mxu0 %v4135
    %4286 = vmatpush1.bf16.msra.mxu0 %v4134
    %4287 = vmatprep.subr.bf16.mxu0 %v4139
    %4288 = vmatpush1.bf16.msra.mxu0 %v4138
    %4289 = vmatprep.mubr.bf16.mxu0 %v4250
    %4290 = vmatmul.mubr.bf16.gmra.mrb[0].mxu0 %v4249
    %v4291 = vpop.f32.mrb[0].mxu0
    %v4292 = vadd.f32 %v4211, %v4291
    %v4293 = vpop.f32.mrb[0].mxu0
    %v4294 = vadd.f32 %v4215, %v4293
    %v4295 = vpop.f32.mrb[0].mxu0
    %v4296 = vpop.f32.mrb[0].mxu0
    %4297 = vdwg.mxu0
    %4298 = vmatprep.subr.bf16.mxu0 %v4143
    %4299 = vmatpush1.bf16.msra.mxu0 %v4142
    %4300 = vmatprep.subr.bf16.mxu0 %v4147
    %4301 = vmatpush1.bf16.msra.mxu0 %v4146
    %4302 = vmatprep.subr.bf16.mxu0 %v4151
    %4303 = vmatpush1.bf16.msra.mxu0 %v4150
    %4304 = vmatprep.subr.bf16.mxu0 %v4155
    %4305 = vmatpush1.bf16.msra.mxu0 %v4154
    %4306 = vmatprep.subr.bf16.mxu0 %v4159
    %4307 = vmatpush1.bf16.msra.mxu0 %v4158
    %4308 = vmatprep.subr.bf16.mxu0 %v4163
    %4309 = vmatpush1.bf16.msra.mxu0 %v4162
    %4310 = vmatprep.subr.bf16.mxu0 %v4167
    %4311 = vmatpush1.bf16.msra.mxu0 %v4166
    %4312 = vmatprep.subr.bf16.mxu0 %v4171
    %4313 = vmatpush1.bf16.msra.mxu0 %v4170
    %4314 = vmatprep.subr.bf16.mxu0 %v4175
    %4315 = vmatpush1.bf16.msra.mxu0 %v4174
    %4316 = vmatprep.subr.bf16.mxu0 %v4179
    %4317 = vmatpush1.bf16.msra.mxu0 %v4178
    %4318 = vmatprep.subr.bf16.mxu0 %v4183
    %4319 = vmatpush1.bf16.msra.mxu0 %v4182
    %4320 = vmatprep.subr.bf16.mxu0 %v4187
    %4321 = vmatpush1.bf16.msra.mxu0 %v4186
    %4322 = vmatprep.subr.bf16.mxu0 %v4191
    %4323 = vmatpush1.bf16.msra.mxu0 %v4190
    %4324 = vmatprep.subr.bf16.mxu0 %v4195
    %4325 = vmatpush1.bf16.msra.mxu0 %v4194
    %4326 = vmatprep.subr.bf16.mxu0 %v4199
    %4327 = vmatpush1.bf16.msra.mxu0 %v4198
    %4328 = vmatprep.subr.bf16.mxu0 %v4203
    %4329 = vmatpush1.bf16.msra.mxu0 %v4202
    %4330 = vmatprep.mubr.bf16.mxu0 %v4252
    %4331 = vmatmul.mubr.bf16.gmra.mrb[0].mxu0 %v4251
    %v4332 = vpop.f32.mrb[0].mxu0
    %v4333 = vadd.f32 %v4292, %v4332
    %v4334 = vpop.f32.mrb[0].mxu0
    %v4335 = vadd.f32 %v4294, %v4334
    %v4336 = vpop.f32.mrb[0].mxu0
    %v4337 = vpop.f32.mrb[0].mxu0
    %4338 = vdwg.mxu0
    %4339 = vmatprep.subr.bf16.mxu0 %v4081
    %4340 = vmatpush1.bf16.msra.mxu0 %v4080
    %4341 = vmatprep.subr.bf16.mxu0 %v4085
    %4342 = vmatpush1.bf16.msra.mxu0 %v4084
    %4343 = vmatprep.subr.bf16.mxu0 %v4089
    %4344 = vmatpush1.bf16.msra.mxu0 %v4088
    %4345 = vmatprep.subr.bf16.mxu0 %v4093
    %4346 = vmatpush1.bf16.msra.mxu0 %v4092
    %4347 = vmatprep.subr.bf16.mxu0 %v4097
    %4348 = vmatpush1.bf16.msra.mxu0 %v4096
    %4349 = vmatprep.subr.bf16.mxu0 %v4101
    %4350 = vmatpush1.bf16.msra.mxu0 %v4100
    %4351 = vmatprep.subr.bf16.mxu0 %v4105
    %4352 = vmatpush1.bf16.msra.mxu0 %v4104
    %4353 = vmatprep.subr.bf16.mxu0 %v4109
    %4354 = vmatpush1.bf16.msra.mxu0 %v4108
    %4355 = vmatprep.subr.bf16.mxu0 %v4113
    %4356 = vmatpush1.bf16.msra.mxu0 %v4112
    %4357 = vmatprep.subr.bf16.mxu0 %v4117
    %4358 = vmatpush1.bf16.msra.mxu0 %v4116
    %4359 = vmatprep.subr.bf16.mxu0 %v4121
    %4360 = vmatpush1.bf16.msra.mxu0 %v4120
    %4361 = vmatprep.subr.bf16.mxu0 %v4125
    %4362 = vmatpush1.bf16.msra.mxu0 %v4124
    %4363 = vmatprep.subr.bf16.mxu0 %v4129
    %4364 = vmatpush1.bf16.msra.mxu0 %v4128
    %4365 = vmatprep.subr.bf16.mxu0 %v4133
    %4366 = vmatpush1.bf16.msra.mxu0 %v4132
    %4367 = vmatprep.subr.bf16.mxu0 %v4137
    %4368 = vmatpush1.bf16.msra.mxu0 %v4136
    %4369 = vmatprep.subr.bf16.mxu0 %v4141
    %4370 = vmatpush1.bf16.msra.mxu0 %v4140
    %4371 = vmatprep.mubr.bf16.mxu0 %v4250
    %4372 = vmatmul.mubr.bf16.gmra.mrb[0].mxu0 %v4249
    %v4373 = vpop.f32.mrb[0].mxu0
    %v4374 = vadd.f32 %v4219, %v4373
    %v4375 = vpop.f32.mrb[0].mxu0
    %v4376 = vadd.f32 %v4223, %v4375
    %v4377 = vpop.f32.mrb[0].mxu0
    %v4378 = vpop.f32.mrb[0].mxu0
    %4379 = vdwg.mxu0
    %4380 = vmatprep.subr.bf16.mxu0 %v4145
    %4381 = vmatpush1.bf16.msra.mxu0 %v4144
    %4382 = vmatprep.subr.bf16.mxu0 %v4149
    %4383 = vmatpush1.bf16.msra.mxu0 %v4148
    %4384 = vmatprep.subr.bf16.mxu0 %v4153
    %4385 = vmatpush1.bf16.msra.mxu0 %v4152
    %4386 = vmatprep.subr.bf16.mxu0 %v4157
    %4387 = vmatpush1.bf16.msra.mxu0 %v4156
    %4388 = vmatprep.subr.bf16.mxu0 %v4161
    %4389 = vmatpush1.bf16.msra.mxu0 %v4160
    %4390 = vmatprep.subr.bf16.mxu0 %v4165
    %4391 = vmatpush1.bf16.msra.mxu0 %v4164
    %4392 = vmatprep.subr.bf16.mxu0 %v4169
    %4393 = vmatpush1.bf16.msra.mxu0 %v4168
    %4394 = vmatprep.subr.bf16.mxu0 %v4173
    %4395 = vmatpush1.bf16.msra.mxu0 %v4172
    %4396 = vmatprep.subr.bf16.mxu0 %v4177
    %4397 = vmatpush1.bf16.msra.mxu0 %v4176
    %4398 = vmatprep.subr.bf16.mxu0 %v4181
    %4399 = vmatpush1.bf16.msra.mxu0 %v4180
    %4400 = vmatprep.subr.bf16.mxu0 %v4185
    %4401 = vmatpush1.bf16.msra.mxu0 %v4184
    %4402 = vmatprep.subr.bf16.mxu0 %v4189
    %4403 = vmatpush1.bf16.msra.mxu0 %v4188
    %4404 = vmatprep.subr.bf16.mxu0 %v4193
    %4405 = vmatpush1.bf16.msra.mxu0 %v4192
    %4406 = vmatprep.subr.bf16.mxu0 %v4197
    %4407 = vmatpush1.bf16.msra.mxu0 %v4196
    %4408 = vmatprep.subr.bf16.mxu0 %v4201
    %4409 = vmatpush1.bf16.msra.mxu0 %v4200
    %4410 = vmatprep.subr.bf16.mxu0 %v4205
    %4411 = vmatpush1.bf16.msra.mxu0 %v4204
    %4412 = vmatprep.mubr.bf16.mxu0 %v4252
    %4413 = vmatmul.mubr.bf16.gmra.mrb[0].mxu0 %v4251
    %v4414 = vpop.f32.mrb[0].mxu0
    %v4415 = vadd.f32 %v4374, %v4414
    %v4416 = vpop.f32.mrb[0].mxu0
    %v4417 = vadd.f32 %v4376, %v4416
    %v4418 = vpop.f32.mrb[0].mxu0
    %v4419 = vpop.f32.mrb[0].mxu0
    %4420 = vdwg.mxu0
    %v4425 = vcombine.low %v4333, %v4335
    %v4426 = vcombine.low %v4415, %v4417
    %v4428 = vunpack.c.l.s4 1983009808
    %v4429 = vunpack.c.0.s8 %v4428
    %v4430 = vlaneseq
    %v4431 = vshrl.u32 %v4430, 7
    %v4432 = vsub.s32 %v4429, %v4431
    %v4433 = vrot.slane %v4425, %v4432
    %v4435 = vunpack.c.l.s4 1983009808
    %v4436 = vunpack.c.0.s8 %v4435
    %v4437 = vlaneseq
    %v4438 = vshrl.u32 %v4437, 7
    %v4439 = vsub.s32 %v4436, %v4438
    %v4440 = vrot.slane %v4426, %v4439
    %v4441 = vcombine.low %v4433, %v4440
    %4443 = vst [vmem:[#allocation35] sm:$0xff] %v4441
    // Predicated region
    $region106: #{tpu_custom_call.1} parent=1 // pred_check
      _
    $region107: #{tpu_custom_call.1} parent=1 // pred_check_branch
      %4445 = sbr.rel (0) target = $region109
    $region108: #{tpu_custom_call.1} parent=1 // pred_region
      %s4447 = ssub.s32 128, 128
      %4448 = vsyncadd [#allocation15], %s4447
      %s4450 = sshll.u32 [#allocation34], 4
      %s4451 = int_to_ptr.vmem [resolvable:$true] %s4450
      %4453 = dma.vmem_to_hbm [thread:$0]  %s4451, 128, %s23, [#allocation15]
    $region109: #{tpu_custom_call.1} parent=1 // pred_fallthru
      _
    // Predicated region
    $region110: #{tpu_custom_call.1} parent=1 // pred_check
      _
    $region111: #{tpu_custom_call.1} parent=1 // pred_check_branch
      %4455 = sbr.rel (0) target = $region113
    $region112: #{tpu_custom_call.1} parent=1 // pred_region
      %s4457 = ssub.s32 128, 128
      %4458 = vsyncadd [#allocation36], %s4457
      %s4460 = sshll.u32 [#allocation35], 4
      %s4461 = int_to_ptr.vmem [resolvable:$true] %s4460
      %4463 = dma.vmem_to_hbm [thread:$0]  %s4461, 128, %s24, [#allocation36]
    $region113: #{tpu_custom_call.1} parent=1 // pred_fallthru
      _
    // Predicated region
    $region114: #{tpu_custom_call.1} parent=1 // pred_check
      _
    $region115: #{tpu_custom_call.1} parent=1 // pred_check_branch
      %4465 = sbr.rel (0) target = $region117
    $region116: #{tpu_custom_call.1} parent=1 // pred_region
      %4466 = dma.done [#allocation15], 128
    $region117: #{tpu_custom_call.1} parent=1 // pred_fallthru
      _
    // Predicated region
    $region118: #{tpu_custom_call.1} parent=1 // pred_check
      _
    $region119: #{tpu_custom_call.1} parent=1 // pred_check_branch
      %4468 = sbr.rel (0) target = $region121
    $region120: #{tpu_custom_call.1} parent=1 // pred_region
      %4469 = dma.done [#allocation36], 128
    $region121: #{tpu_custom_call.1} parent=1 // pred_fallthru
      _
    %4470 = vsyncpa [#allocation14], 1
    %4471 = vsyncpa [#allocation17], 1
    %4472 = vsyncpa [#allocation20], 1
    %4473 = vsyncpa [#allocation23], 1
    %4474 = vsyncpa [#allocation26], 1
    %4475 = vsyncpa [#allocation29], 1
    %4476 = vsyncpa [#allocation32], 1
    %4477 = vsyncpa [#allocation15], 1
    %4478 = vsyncpa [#allocation36], 1
  %4479 = vsyncmov [#allocation12]
  %s4480 = vpop.sfrf %4479
  %p4481 = scmp.eq.s32.totalorder %s4480, 0
  %p4482 = pneg %p4481
  %4484 = shalt.err (%p4482)
  %s4485 = scalar_lea.sflag [#allocation12], 1
  %4486 = vsyncmov %s4485
  %s4487 = vpop.sfrf %4486
  %p4488 = scmp.eq.s32.totalorder %s4487, 0
  %p4489 = pneg %p4488
  %4491 = shalt.err (%p4489)
  %s4492 = scalar_lea.sflag [#allocation12], 2
  %4493 = vsyncmov %s4492
  %s4494 = vpop.sfrf %4493
  %p4495 = scmp.eq.s32.totalorder %s4494, 0
  %p4496 = pneg %p4495
  %4498 = shalt.err (%p4496)
  %s4499 = scalar_lea.sflag [#allocation12], 3
  %4500 = vsyncmov %s4499
  %s4501 = vpop.sfrf %4500
  %p4502 = scmp.eq.s32.totalorder %s4501, 0
  %p4503 = pneg %p4502
  %4505 = shalt.err (%p4503)
  %s4506 = scalar_lea.sflag [#allocation12], 4
  %4507 = vsyncmov %s4506
  %s4508 = vpop.sfrf %4507
  %p4509 = scmp.eq.s32.totalorder %s4508, 0
  %p4510 = pneg %p4509
  %4512 = shalt.err (%p4510)
  %s4513 = scalar_lea.sflag [#allocation12], 5
  %4514 = vsyncmov %s4513
  %s4515 = vpop.sfrf %4514
  %p4516 = scmp.eq.s32.totalorder %s4515, 0
  %p4517 = pneg %p4516
  %4519 = shalt.err (%p4517)
  %s4520 = scalar_lea.sflag [#allocation12], 6
  %4521 = vsyncmov %s4520
  %s4522 = vpop.sfrf %4521
  %p4523 = scmp.eq.s32.totalorder %s4522, 0
  %p4524 = pneg %p4523
  %4526 = shalt.err (%p4524)
  %s4527 = scalar_lea.sflag [#allocation12], 7
  %4528 = vsyncmov %s4527
  %s4529 = vpop.sfrf %4528
  %p4530 = scmp.eq.s32.totalorder %s4529, 0
  %p4531 = pneg %p4530
  %4533 = shalt.err (%p4531)
  %s4534 = scalar_lea.sflag [#allocation12], 8
  %4535 = vsyncmov %s4534
  %s4536 = vpop.sfrf %4535
  %p4537 = scmp.eq.s32.totalorder %s4536, 0
  %p4538 = pneg %p4537
  %4540 = shalt.err (%p4538)
  %s4541 = scalar_lea.sflag [#allocation12], 9
  %4542 = vsyncmov %s4541
  %s4543 = vpop.sfrf %4542
  %p4544 = scmp.eq.s32.totalorder %s4543, 0
  %p4545 = pneg %p4544
  %4547 = shalt.err (%p4545)

</llo_original>
